<compile_context>
chip_gen: v7x
topology: tpu7x:2x2x1
jax: 0.10.0
libtpu: 0.0.40
codegen_flags: <defaults>
</compile_context>

<pallas_src>
import functools

import jax
import jax.numpy as jnp
from jax.experimental import pallas as pl
from jax.experimental.pallas import tpu as pltpu


NUM_CLASSES = 5  # DR grades
_VMEM_LIMIT = 32 * 1024 * 1024  # safe on v5e / v6e / v7x


# ---------------------------------------------------------------------------
# Pallas kernels
# ---------------------------------------------------------------------------
def _conv_matmul_kernel(x_ref, w_ref, s_ref, b_ref, o_ref, *, relu):
    # y = (x @ w) * scale + bias  [+ ReLU]  -- bf16 MXU matmul, f32 accumulate,
    # folded-BN epilogue fused in the same kernel.
    y = jnp.dot(x_ref[...], w_ref[...], preferred_element_type=jnp.float32)
    y = y * s_ref[...] + b_ref[...]
    if relu:
        y = jnp.maximum(y, 0.0)
    o_ref[...] = y.astype(o_ref.dtype)


def _conv_matmul_res_kernel(x_ref, w_ref, s_ref, b_ref, r_ref, o_ref, *, relu):
    # Same as above but with the residual branch fused into the epilogue:
    # y = ReLU((x @ w) * scale + bias + residual)
    y = jnp.dot(x_ref[...], w_ref[...], preferred_element_type=jnp.float32)
    y = y * s_ref[...] + b_ref[...] + r_ref[...]
    if relu:
        y = jnp.maximum(y, 0.0)
    o_ref[...] = y.astype(o_ref.dtype)


def _gap_fc_kernel(x_ref, w_ref, b_ref, o_ref):
    # global average pool over spatial axis (B, S, C) -> (B, C), then Linear.
    feat = jnp.mean(x_ref[...], axis=1)
    o_ref[...] = jnp.dot(feat, w_ref[...],
                         preferred_element_type=jnp.float32) + b_ref[...]


# ---------------------------------------------------------------------------
# Pallas wrappers
# ---------------------------------------------------------------------------
def _round_up(x, m):
    return (x + m - 1) // m * m


def pallas_conv_matmul(cols, w_bf16, scale, bias, residual=None, relu=True,
                       tile_m=256):
    """Tiled (M,K)x(K,N) matmul with fused BN (+residual) (+ReLU) epilogue.

    cols is streamed in M-tiles (double-buffered by Pallas); K and N are small
    (<= 288 / 64) so each tile holds the full reduction.
    """
    M, K = cols.shape
    N = w_bf16.shape[1]

    TM = min(tile_m, M)
    TM = max(8, (TM // 8) * 8)            # sublane-aligned tile
    Mp = _round_up(M, TM)
    if Mp != M:
        cols = jnp.pad(cols, ((0, Mp - M), (0, 0)))
        if residual is not None:
            residual = jnp.pad(residual, ((0, Mp - M), (0, 0)))
    grid = (Mp // TM,)

    in_specs = [
        pl.BlockSpec((TM, K), lambda i: (i, 0)),   # streamed activation tile
        pl.BlockSpec((K, N), lambda i: (0, 0)),    # resident weights
        pl.BlockSpec((1, N), lambda i: (0, 0)),    # folded-BN scale
        pl.BlockSpec((1, N), lambda i: (0, 0)),    # folded-BN bias
    ]
    args = [cols.astype(jnp.bfloat16), w_bf16,
            scale.reshape(1, N), bias.reshape(1, N)]

    if residual is not None:
        in_specs.append(pl.BlockSpec((TM, N), lambda i: (i, 0)))
        args.append(residual.astype(jnp.float32))
        kernel = functools.partial(_conv_matmul_res_kernel, relu=relu)
    else:
        kernel = functools.partial(_conv_matmul_kernel, relu=relu)

    out = pl.pallas_call(
        kernel,
        out_shape=jax.ShapeDtypeStruct((Mp, N), jnp.float32),
        grid=grid,
        in_specs=in_specs,
        out_specs=pl.BlockSpec((TM, N), lambda i: (i, 0)),
        compiler_params=pltpu.CompilerParams(
            dimension_semantics=("parallel",),     # megacore sharding on v7x
            vmem_limit_bytes=_VMEM_LIMIT),
    )(*args)

    return out[:M] if Mp != M else out


def pallas_gap_fc(x_bsc, fc_w, fc_b):
    """Fused global average pool (over S) + Linear classifier."""
    B, S, C = x_bsc.shape
    N = fc_w.shape[1]
    return pl.pallas_call(
        _gap_fc_kernel,
        out_shape=jax.ShapeDtypeStruct((B, N), jnp.float32),
        grid=(1,),
        in_specs=[
            pl.BlockSpec((B, S, C), lambda i: (0, 0, 0)),
            pl.BlockSpec((C, N), lambda i: (0, 0)),
            pl.BlockSpec((1, N), lambda i: (0, 0)),
        ],
        out_specs=pl.BlockSpec((B, N), lambda i: (0, 0)),
        compiler_params=pltpu.CompilerParams(vmem_limit_bytes=_VMEM_LIMIT),
    )(x_bsc, fc_w, fc_b)


# ---------------------------------------------------------------------------
# Plain-JAX glue: im2col (streamed through the tiled matmul), BN folding
# ---------------------------------------------------------------------------
def im2col(x_nhwc, kh, kw, stride, pad):
    x = jnp.pad(x_nhwc, ((0, 0), (pad, pad), (pad, pad), (0, 0)))
    B, H, W, C = x.shape
    Ho = (H - kh) // stride + 1
    Wo = (W - kw) // stride + 1
    taps = []
    for i in range(kh):
        for j in range(kw):
            taps.append(x[:, i:i + Ho * stride:stride, j:j + Wo * stride:stride, :])
    cols = jnp.stack(taps, axis=-2)            # (B, Ho, Wo, kh*kw, C)
    return cols.reshape(B, Ho, Wo, kh * kw * C), Ho, Wo


def fold_bn(gamma, beta, mean, var, eps=1e-5):
    scale = gamma / jnp.sqrt(var + eps)
    bias = beta - mean * scale
    return scale, bias


def conv_bn(x_nhwc, layer, stride, pad, relu, residual=None):
    """conv2d + folded BN (+residual) (+ReLU) via the tiled Pallas matmul."""
    kh, kw = layer["kh"], layer["kw"]
    cols, Ho, Wo = im2col(x_nhwc.astype(jnp.bfloat16), kh, kw, stride, pad)
    B = x_nhwc.shape[0]
    M = B * Ho * Wo
    Cout = layer["w"].shape[1]
    res2d = residual.reshape(M, Cout) if residual is not None else None
    y = pallas_conv_matmul(cols.reshape(M, -1), layer["w"],
                           layer["scale"], layer["bias"],
                           residual=res2d, relu=relu)
    return y.reshape(B, Ho, Wo, Cout)


# ---------------------------------------------------------------------------
# Parameters (deterministic, synthetic) + one-time preprocessing
# ---------------------------------------------------------------------------
def init_params(key):
    ks = iter(jax.random.split(key, 32))

    def conv_w(shape):
        return jax.random.normal(next(ks), shape, jnp.float32) * 0.1

    def bn_params(c):
        gamma = 1.0 + 0.05 * jax.random.normal(next(ks), (c,), jnp.float32)
        beta = 0.05 * jax.random.normal(next(ks), (c,), jnp.float32)
        mean = 0.05 * jax.random.normal(next(ks), (c,), jnp.float32)
        var = jnp.abs(jax.random.normal(next(ks), (c,), jnp.float32)) + 1.0
        return (gamma, beta, mean, var)

    p = {}
    # stem: conv3x3 3->16 + BN
    p["stem_w"] = conv_w((16, 3, 3, 3));   p["stem_bn"] = bn_params(16)
    # block1 (16->16, stride 1, identity skip)
    p["b1a_w"] = conv_w((16, 16, 3, 3));   p["b1a_bn"] = bn_params(16)
    p["b1b_w"] = conv_w((16, 16, 3, 3));   p["b1b_bn"] = bn_params(16)
    # block2 (16->32, stride 2, 1x1 downsample skip)
    p["b2a_w"] = conv_w((32, 16, 3, 3));   p["b2a_bn"] = bn_params(32)
    p["b2b_w"] = conv_w((32, 32, 3, 3));   p["b2b_bn"] = bn_params(32)
    p["b2d_w"] = conv_w((32, 16, 1, 1));   p["b2d_bn"] = bn_params(32)
    # classifier Linear(32 -> NUM_CLASSES)
    p["fc_w"] = jax.random.normal(next(ks), (NUM_CLASSES, 32), jnp.float32) * 0.1
    p["fc_b"] = 0.05 * jax.random.normal(next(ks), (NUM_CLASSES,), jnp.float32)
    return p


def prepare_params(raw):
    """One-time hoist: fold BN, transpose/reshape conv weights, cast to bf16."""
    def prep_conv(w_oihw, bn):
        Cout, Cin, kh, kw = w_oihw.shape
        # match im2col tap ordering: (kh, kw, Cin) -> rows ; Cout -> cols
        w_mat = jnp.transpose(w_oihw, (2, 3, 1, 0)).reshape(kh * kw * Cin, Cout)
        scale, bias = fold_bn(*bn)
        return {"w": w_mat.astype(jnp.bfloat16),
                "scale": scale.astype(jnp.float32),
                "bias": bias.astype(jnp.float32),
                "kh": int(kh), "kw": int(kw)}

    p = {
        "stem": prep_conv(raw["stem_w"], raw["stem_bn"]),
        "b1a": prep_conv(raw["b1a_w"], raw["b1a_bn"]),
        "b1b": prep_conv(raw["b1b_w"], raw["b1b_bn"]),
        "b2a": prep_conv(raw["b2a_w"], raw["b2a_bn"]),
        "b2b": prep_conv(raw["b2b_w"], raw["b2b_bn"]),
        "b2d": prep_conv(raw["b2d_w"], raw["b2d_bn"]),
        "fc_w": raw["fc_w"].T.astype(jnp.float32),              # (32, 5)
        "fc_b": raw["fc_b"].reshape(1, NUM_CLASSES).astype(jnp.float32),
    }
    return p


# ---------------------------------------------------------------------------
# Forward pass (mirrors Wide_ResNet_with_GRADCAM.forward)
# ---------------------------------------------------------------------------
def forward(params, x_nchw):
    p = params
    x = jnp.transpose(x_nchw, (0, 2, 3, 1)).astype(jnp.float32)  # NCHW -> NHWC

    # --- self.CNN(x) ------------------------------------------------------
    # stem
    x = conv_bn(x, p["stem"], stride=1, pad=1, relu=True)

    # basic block 1 (identity skip; add+ReLU fused into 2nd conv epilogue)
    out = conv_bn(x, p["b1a"], stride=1, pad=1, relu=True)
    x = conv_bn(out, p["b1b"], stride=1, pad=1, relu=True, residual=x)

    # basic block 2 (stride 2, 1x1-conv downsample skip; fused add+ReLU)
    identity = conv_bn(x, p["b2d"], stride=2, pad=0, relu=False)
    out = conv_bn(x, p["b2a"], stride=2, pad=1, relu=True)
    x = conv_bn(out, p["b2b"], stride=1, pad=1, relu=True, residual=identity)

    # (activations x are what the Grad-CAM hook would capture)

    # --- self.pool(x).view(B, -1) ; self.classifier(...) -------------------
    B, H, W, C = x.shape
    logits = pallas_gap_fc(x.reshape(B, H * W, C), p["fc_w"], p["fc_b"])
    return logits


# ---------------------------------------------------------------------------
if __name__ == "__main__":
    key = jax.random.PRNGKey(0)
    pkey, xkey = jax.random.split(key)
    raw_params = init_params(pkey)
    params = prepare_params(raw_params)          # one-time weight prep (hoisted)
    x = jax.random.normal(xkey, (2, 3, 16, 16), jnp.float32)  # NCHW, like PyTorch

    fwd = jax.jit(lambda inp: forward(params, inp))
    logits = fwd(x)
    jax.block_until_ready(logits)
    assert logits.shape == (2, NUM_CLASSES)
    print("KERNEL_OK")
</pallas_src>

<mosaic_0001>
module attributes {stable_mosaic.version = 11 : i64} {
  func.func @_conv_matmul_kernel(%arg0: i32, %arg1: memref<256x27xbf16, #tpu.memory_space<vmem>>, %arg2: memref<27x16xbf16, #tpu.memory_space<vmem>>, %arg3: memref<1x16xf32, #tpu.memory_space<vmem>>, %arg4: memref<1x16xf32, #tpu.memory_space<vmem>>, %arg5: memref<256x16xf32, #tpu.memory_space<vmem>>) attributes {dimension_semantics = [#tpu.dimension_semantics<parallel>], iteration_bounds = array<i64: 2>, scalar_prefetch = 0 : i64, scratch_operands = 0 : i64, tpu.core_type = #tpu.core_type<tc>, window_params = [{transform_indices = @transform_0, window_bounds = array<i64: 256, 27>}, {pipeline_mode = #tpu.pipeline_mode<synchronous>, transform_indices = @transform_1, window_bounds = array<i64: 27, 16>}, {pipeline_mode = #tpu.pipeline_mode<synchronous>, transform_indices = @transform_2, window_bounds = array<i64: 1, 16>}, {pipeline_mode = #tpu.pipeline_mode<synchronous>, transform_indices = @transform_3, window_bounds = array<i64: 1, 16>}, {transform_indices = @transform_4, window_bounds = array<i64: 256, 16>}]} {
    %c0 = arith.constant 0 : index
    %c0_0 = arith.constant 0 : index
    %0 = vector.load %arg1[%c0, %c0_0] : memref<256x27xbf16, #tpu.memory_space<vmem>>, vector<256x27xbf16>
    %c0_1 = arith.constant 0 : index
    %c0_2 = arith.constant 0 : index
    %1 = vector.load %arg2[%c0_1, %c0_2] : memref<27x16xbf16, #tpu.memory_space<vmem>>, vector<27x16xbf16>
    %cst = arith.constant dense<0.000000e+00> : vector<256x16xf32>
    %2 = tpu.matmul %0, %1, %cst {dimension_numbers = #tpu.dot_dimension_numbers<[1], [0], [0], [1], [0, 0, 1, 1], [], []>} : vector<256x27xbf16>, vector<27x16xbf16>, vector<256x16xf32> -> vector<256x16xf32>
    %c0_3 = arith.constant 0 : index
    %c0_4 = arith.constant 0 : index
    %3 = vector.load %arg3[%c0_3, %c0_4] : memref<1x16xf32, #tpu.memory_space<vmem>>, vector<1x16xf32>
    %4 = vector.broadcast %3 : vector<1x16xf32> to vector<256x16xf32>
    %5 = arith.mulf %2, %4 : vector<256x16xf32>
    %c0_5 = arith.constant 0 : index
    %c0_6 = arith.constant 0 : index
    %6 = vector.load %arg4[%c0_5, %c0_6] : memref<1x16xf32, #tpu.memory_space<vmem>>, vector<1x16xf32>
    %7 = vector.broadcast %6 : vector<1x16xf32> to vector<256x16xf32>
    %8 = arith.addf %5, %7 : vector<256x16xf32>
    %cst_7 = arith.constant 0.000000e+00 : f32
    %9 = vector.broadcast %cst_7 : f32 to vector<256x16xf32>
    %10 = arith.maximumf %8, %9 : vector<256x16xf32>
    %c0_8 = arith.constant 0 : index
    %c0_9 = arith.constant 0 : index
    %11 = vector.load %arg5[%c0_8, %c0_9] : memref<256x16xf32, #tpu.memory_space<vmem>>, vector<256x16xf32>
    tpu.vector_store %arg5[%c0_8, %c0_9], %10 {strides = array<i32>} : memref<256x16xf32, #tpu.memory_space<vmem>>, vector<256x16xf32>,
    return
  }
  func.func @transform_0(%arg0: i32) -> (i32, i32) {
    %c0_i32 = arith.constant 0 : i32
    %c0_i32_0 = arith.constant 0 : i32
    return %arg0, %c0_i32 : i32, i32
  }
  func.func @transform_1(%arg0: i32) -> (i32, i32) {
    %c0_i32 = arith.constant 0 : i32
    %c0_i32_0 = arith.constant 0 : i32
    %c0_i32_1 = arith.constant 0 : i32
    return %c0_i32, %c0_i32_0 : i32, i32
  }
  func.func @transform_2(%arg0: i32) -> (i32, i32) {
    %c0_i32 = arith.constant 0 : i32
    %c0_i32_0 = arith.constant 0 : i32
    %c0_i32_1 = arith.constant 0 : i32
    return %c0_i32, %c0_i32_0 : i32, i32
  }
  func.func @transform_3(%arg0: i32) -> (i32, i32) {
    %c0_i32 = arith.constant 0 : i32
    %c0_i32_0 = arith.constant 0 : i32
    %c0_i32_1 = arith.constant 0 : i32
    return %c0_i32, %c0_i32_0 : i32, i32
  }
  func.func @transform_4(%arg0: i32) -> (i32, i32) {
    %c0_i32 = arith.constant 0 : i32
    %c0_i32_0 = arith.constant 0 : i32
    return %arg0, %c0_i32 : i32, i32
  }
}

module attributes {stable_mosaic.version = 11 : i64} {
  func.func @_conv_matmul_kernel(%arg0: i32, %arg1: memref<256x144xbf16, #tpu.memory_space<vmem>>, %arg2: memref<144x16xbf16, #tpu.memory_space<vmem>>, %arg3: memref<1x16xf32, #tpu.memory_space<vmem>>, %arg4: memref<1x16xf32, #tpu.memory_space<vmem>>, %arg5: memref<256x16xf32, #tpu.memory_space<vmem>>) attributes {dimension_semantics = [#tpu.dimension_semantics<parallel>], iteration_bounds = array<i64: 2>, scalar_prefetch = 0 : i64, scratch_operands = 0 : i64, tpu.core_type = #tpu.core_type<tc>, window_params = [{transform_indices = @transform_0, window_bounds = array<i64: 256, 144>}, {pipeline_mode = #tpu.pipeline_mode<synchronous>, transform_indices = @transform_1, window_bounds = array<i64: 144, 16>}, {pipeline_mode = #tpu.pipeline_mode<synchronous>, transform_indices = @transform_2, window_bounds = array<i64: 1, 16>}, {pipeline_mode = #tpu.pipeline_mode<synchronous>, transform_indices = @transform_3, window_bounds = array<i64: 1, 16>}, {transform_indices = @transform_4, window_bounds = array<i64: 256, 16>}]} {
    %c0 = arith.constant 0 : index
    %c0_0 = arith.constant 0 : index
    %0 = vector.load %arg1[%c0, %c0_0] : memref<256x144xbf16, #tpu.memory_space<vmem>>, vector<256x144xbf16>
    %c0_1 = arith.constant 0 : index
    %c0_2 = arith.constant 0 : index
    %1 = vector.load %arg2[%c0_1, %c0_2] : memref<144x16xbf16, #tpu.memory_space<vmem>>, vector<144x16xbf16>
    %cst = arith.constant dense<0.000000e+00> : vector<256x16xf32>
    %2 = tpu.matmul %0, %1, %cst {dimension_numbers = #tpu.dot_dimension_numbers<[1], [0], [0], [1], [0, 0, 1, 1], [], []>} : vector<256x144xbf16>, vector<144x16xbf16>, vector<256x16xf32> -> vector<256x16xf32>
    %c0_3 = arith.constant 0 : index
    %c0_4 = arith.constant 0 : index
    %3 = vector.load %arg3[%c0_3, %c0_4] : memref<1x16xf32, #tpu.memory_space<vmem>>, vector<1x16xf32>
    %4 = vector.broadcast %3 : vector<1x16xf32> to vector<256x16xf32>
    %5 = arith.mulf %2, %4 : vector<256x16xf32>
    %c0_5 = arith.constant 0 : index
    %c0_6 = arith.constant 0 : index
    %6 = vector.load %arg4[%c0_5, %c0_6] : memref<1x16xf32, #tpu.memory_space<vmem>>, vector<1x16xf32>
    %7 = vector.broadcast %6 : vector<1x16xf32> to vector<256x16xf32>
    %8 = arith.addf %5, %7 : vector<256x16xf32>
    %cst_7 = arith.constant 0.000000e+00 : f32
    %9 = vector.broadcast %cst_7 : f32 to vector<256x16xf32>
    %10 = arith.maximumf %8, %9 : vector<256x16xf32>
    %c0_8 = arith.constant 0 : index
    %c0_9 = arith.constant 0 : index
    %11 = vector.load %arg5[%c0_8, %c0_9] : memref<256x16xf32, #tpu.memory_space<vmem>>, vector<256x16xf32>
    tpu.vector_store %arg5[%c0_8, %c0_9], %10 {strides = array<i32>} : memref<256x16xf32, #tpu.memory_space<vmem>>, vector<256x16xf32>,
    return
  }
  func.func @transform_0(%arg0: i32) -> (i32, i32) {
    %c0_i32 = arith.constant 0 : i32
    %c0_i32_0 = arith.constant 0 : i32
    return %arg0, %c0_i32 : i32, i32
  }
  func.func @transform_1(%arg0: i32) -> (i32, i32) {
    %c0_i32 = arith.constant 0 : i32
    %c0_i32_0 = arith.constant 0 : i32
    %c0_i32_1 = arith.constant 0 : i32
    return %c0_i32, %c0_i32_0 : i32, i32
  }
  func.func @transform_2(%arg0: i32) -> (i32, i32) {
    %c0_i32 = arith.constant 0 : i32
    %c0_i32_0 = arith.constant 0 : i32
    %c0_i32_1 = arith.constant 0 : i32
    return %c0_i32, %c0_i32_0 : i32, i32
  }
  func.func @transform_3(%arg0: i32) -> (i32, i32) {
    %c0_i32 = arith.constant 0 : i32
    %c0_i32_0 = arith.constant 0 : i32
    %c0_i32_1 = arith.constant 0 : i32
    return %c0_i32, %c0_i32_0 : i32, i32
  }
  func.func @transform_4(%arg0: i32) -> (i32, i32) {
    %c0_i32 = arith.constant 0 : i32
    %c0_i32_0 = arith.constant 0 : i32
    return %arg0, %c0_i32 : i32, i32
  }
}

module attributes {stable_mosaic.version = 11 : i64} {
  func.func @_conv_matmul_res_kernel(%arg0: i32, %arg1: memref<256x144xbf16, #tpu.memory_space<vmem>>, %arg2: memref<144x16xbf16, #tpu.memory_space<vmem>>, %arg3: memref<1x16xf32, #tpu.memory_space<vmem>>, %arg4: memref<1x16xf32, #tpu.memory_space<vmem>>, %arg5: memref<256x16xf32, #tpu.memory_space<vmem>>, %arg6: memref<256x16xf32, #tpu.memory_space<vmem>>) attributes {dimension_semantics = [#tpu.dimension_semantics<parallel>], iteration_bounds = array<i64: 2>, scalar_prefetch = 0 : i64, scratch_operands = 0 : i64, tpu.core_type = #tpu.core_type<tc>, window_params = [{transform_indices = @transform_0, window_bounds = array<i64: 256, 144>}, {pipeline_mode = #tpu.pipeline_mode<synchronous>, transform_indices = @transform_1, window_bounds = array<i64: 144, 16>}, {pipeline_mode = #tpu.pipeline_mode<synchronous>, transform_indices = @transform_2, window_bounds = array<i64: 1, 16>}, {pipeline_mode = #tpu.pipeline_mode<synchronous>, transform_indices = @transform_3, window_bounds = array<i64: 1, 16>}, {transform_indices = @transform_4, window_bounds = array<i64: 256, 16>}, {transform_indices = @transform_5, window_bounds = array<i64: 256, 16>}]} {
    %c0 = arith.constant 0 : index
    %c0_0 = arith.constant 0 : index
    %0 = vector.load %arg1[%c0, %c0_0] : memref<256x144xbf16, #tpu.memory_space<vmem>>, vector<256x144xbf16>
    %c0_1 = arith.constant 0 : index
    %c0_2 = arith.constant 0 : index
    %1 = vector.load %arg2[%c0_1, %c0_2] : memref<144x16xbf16, #tpu.memory_space<vmem>>, vector<144x16xbf16>
    %cst = arith.constant dense<0.000000e+00> : vector<256x16xf32>
    %2 = tpu.matmul %0, %1, %cst {dimension_numbers = #tpu.dot_dimension_numbers<[1], [0], [0], [1], [0, 0, 1, 1], [], []>} : vector<256x144xbf16>, vector<144x16xbf16>, vector<256x16xf32> -> vector<256x16xf32>
    %c0_3 = arith.constant 0 : index
    %c0_4 = arith.constant 0 : index
    %3 = vector.load %arg3[%c0_3, %c0_4] : memref<1x16xf32, #tpu.memory_space<vmem>>, vector<1x16xf32>
    %4 = vector.broadcast %3 : vector<1x16xf32> to vector<256x16xf32>
    %5 = arith.mulf %2, %4 : vector<256x16xf32>
    %c0_5 = arith.constant 0 : index
    %c0_6 = arith.constant 0 : index
    %6 = vector.load %arg4[%c0_5, %c0_6] : memref<1x16xf32, #tpu.memory_space<vmem>>, vector<1x16xf32>
    %7 = vector.broadcast %6 : vector<1x16xf32> to vector<256x16xf32>
    %8 = arith.addf %5, %7 : vector<256x16xf32>
    %c0_7 = arith.constant 0 : index
    %c0_8 = arith.constant 0 : index
    %9 = vector.load %arg5[%c0_7, %c0_8] : memref<256x16xf32, #tpu.memory_space<vmem>>, vector<256x16xf32>
    %10 = arith.addf %8, %9 : vector<256x16xf32>
    %cst_9 = arith.constant 0.000000e+00 : f32
    %11 = vector.broadcast %cst_9 : f32 to vector<256x16xf32>
    %12 = arith.maximumf %10, %11 : vector<256x16xf32>
    %c0_10 = arith.constant 0 : index
    %c0_11 = arith.constant 0 : index
    %13 = vector.load %arg6[%c0_10, %c0_11] : memref<256x16xf32, #tpu.memory_space<vmem>>, vector<256x16xf32>
    tpu.vector_store %arg6[%c0_10, %c0_11], %12 {strides = array<i32>} : memref<256x16xf32, #tpu.memory_space<vmem>>, vector<256x16xf32>,
    return
  }
  func.func @transform_0(%arg0: i32) -> (i32, i32) {
    %c0_i32 = arith.constant 0 : i32
    %c0_i32_0 = arith.constant 0 : i32
    return %arg0, %c0_i32 : i32, i32
  }
  func.func @transform_1(%arg0: i32) -> (i32, i32) {
    %c0_i32 = arith.constant 0 : i32
    %c0_i32_0 = arith.constant 0 : i32
    %c0_i32_1 = arith.constant 0 : i32
    return %c0_i32, %c0_i32_0 : i32, i32
  }
  func.func @transform_2(%arg0: i32) -> (i32, i32) {
    %c0_i32 = arith.constant 0 : i32
    %c0_i32_0 = arith.constant 0 : i32
    %c0_i32_1 = arith.constant 0 : i32
    return %c0_i32, %c0_i32_0 : i32, i32
  }
  func.func @transform_3(%arg0: i32) -> (i32, i32) {
    %c0_i32 = arith.constant 0 : i32
    %c0_i32_0 = arith.constant 0 : i32
    %c0_i32_1 = arith.constant 0 : i32
    return %c0_i32, %c0_i32_0 : i32, i32
  }
  func.func @transform_4(%arg0: i32) -> (i32, i32) {
    %c0_i32 = arith.constant 0 : i32
    %c0_i32_0 = arith.constant 0 : i32
    return %arg0, %c0_i32 : i32, i32
  }
  func.func @transform_5(%arg0: i32) -> (i32, i32) {
    %c0_i32 = arith.constant 0 : i32
    %c0_i32_0 = arith.constant 0 : i32
    return %arg0, %c0_i32 : i32, i32
  }
}

module attributes {stable_mosaic.version = 11 : i64} {
  func.func @_conv_matmul_kernel(%arg0: i32, %arg1: memref<128x16xbf16, #tpu.memory_space<vmem>>, %arg2: memref<16x32xbf16, #tpu.memory_space<vmem>>, %arg3: memref<1x32xf32, #tpu.memory_space<vmem>>, %arg4: memref<1x32xf32, #tpu.memory_space<vmem>>, %arg5: memref<128x32xf32, #tpu.memory_space<vmem>>) attributes {dimension_semantics = [#tpu.dimension_semantics<parallel>], iteration_bounds = array<i64: 1>, scalar_prefetch = 0 : i64, scratch_operands = 0 : i64, tpu.core_type = #tpu.core_type<tc>, window_params = [{transform_indices = @transform_0, window_bounds = array<i64: 128, 16>}, {pipeline_mode = #tpu.pipeline_mode<synchronous>, transform_indices = @transform_1, window_bounds = array<i64: 16, 32>}, {pipeline_mode = #tpu.pipeline_mode<synchronous>, transform_indices = @transform_2, window_bounds = array<i64: 1, 32>}, {pipeline_mode = #tpu.pipeline_mode<synchronous>, transform_indices = @transform_3, window_bounds = array<i64: 1, 32>}, {transform_indices = @transform_4, window_bounds = array<i64: 128, 32>}]} {
    %c0 = arith.constant 0 : index
    %c0_0 = arith.constant 0 : index
    %0 = vector.load %arg1[%c0, %c0_0] : memref<128x16xbf16, #tpu.memory_space<vmem>>, vector<128x16xbf16>
    %c0_1 = arith.constant 0 : index
    %c0_2 = arith.constant 0 : index
    %1 = vector.load %arg2[%c0_1, %c0_2] : memref<16x32xbf16, #tpu.memory_space<vmem>>, vector<16x32xbf16>
    %cst = arith.constant dense<0.000000e+00> : vector<128x32xf32>
    %2 = tpu.matmul %0, %1, %cst {dimension_numbers = #tpu.dot_dimension_numbers<[1], [0], [0], [1], [0, 0, 1, 1], [], []>} : vector<128x16xbf16>, vector<16x32xbf16>, vector<128x32xf32> -> vector<128x32xf32>
    %c0_3 = arith.constant 0 : index
    %c0_4 = arith.constant 0 : index
    %3 = vector.load %arg3[%c0_3, %c0_4] : memref<1x32xf32, #tpu.memory_space<vmem>>, vector<1x32xf32>
    %4 = vector.broadcast %3 : vector<1x32xf32> to vector<128x32xf32>
    %5 = arith.mulf %2, %4 : vector<128x32xf32>
    %c0_5 = arith.constant 0 : index
    %c0_6 = arith.constant 0 : index
    %6 = vector.load %arg4[%c0_5, %c0_6] : memref<1x32xf32, #tpu.memory_space<vmem>>, vector<1x32xf32>
    %7 = vector.broadcast %6 : vector<1x32xf32> to vector<128x32xf32>
    %8 = arith.addf %5, %7 : vector<128x32xf32>
    %c0_7 = arith.constant 0 : index
    %c0_8 = arith.constant 0 : index
    %9 = vector.load %arg5[%c0_7, %c0_8] : memref<128x32xf32, #tpu.memory_space<vmem>>, vector<128x32xf32>
    tpu.vector_store %arg5[%c0_7, %c0_8], %8 {strides = array<i32>} : memref<128x32xf32, #tpu.memory_space<vmem>>, vector<128x32xf32>,
    return
  }
  func.func @transform_0(%arg0: i32) -> (i32, i32) {
    %c0_i32 = arith.constant 0 : i32
    %c0_i32_0 = arith.constant 0 : i32
    return %arg0, %c0_i32 : i32, i32
  }
  func.func @transform_1(%arg0: i32) -> (i32, i32) {
    %c0_i32 = arith.constant 0 : i32
    %c0_i32_0 = arith.constant 0 : i32
    %c0_i32_1 = arith.constant 0 : i32
    return %c0_i32, %c0_i32_0 : i32, i32
  }
  func.func @transform_2(%arg0: i32) -> (i32, i32) {
    %c0_i32 = arith.constant 0 : i32
    %c0_i32_0 = arith.constant 0 : i32
    %c0_i32_1 = arith.constant 0 : i32
    return %c0_i32, %c0_i32_0 : i32, i32
  }
  func.func @transform_3(%arg0: i32) -> (i32, i32) {
    %c0_i32 = arith.constant 0 : i32
    %c0_i32_0 = arith.constant 0 : i32
    %c0_i32_1 = arith.constant 0 : i32
    return %c0_i32, %c0_i32_0 : i32, i32
  }
  func.func @transform_4(%arg0: i32) -> (i32, i32) {
    %c0_i32 = arith.constant 0 : i32
    %c0_i32_0 = arith.constant 0 : i32
    return %arg0, %c0_i32 : i32, i32
  }
}

module attributes {stable_mosaic.version = 11 : i64} {
  func.func @_conv_matmul_kernel(%arg0: i32, %arg1: memref<128x144xbf16, #tpu.memory_space<vmem>>, %arg2: memref<144x32xbf16, #tpu.memory_space<vmem>>, %arg3: memref<1x32xf32, #tpu.memory_space<vmem>>, %arg4: memref<1x32xf32, #tpu.memory_space<vmem>>, %arg5: memref<128x32xf32, #tpu.memory_space<vmem>>) attributes {dimension_semantics = [#tpu.dimension_semantics<parallel>], iteration_bounds = array<i64: 1>, scalar_prefetch = 0 : i64, scratch_operands = 0 : i64, tpu.core_type = #tpu.core_type<tc>, window_params = [{transform_indices = @transform_0, window_bounds = array<i64: 128, 144>}, {pipeline_mode = #tpu.pipeline_mode<synchronous>, transform_indices = @transform_1, window_bounds = array<i64: 144, 32>}, {pipeline_mode = #tpu.pipeline_mode<synchronous>, transform_indices = @transform_2, window_bounds = array<i64: 1, 32>}, {pipeline_mode = #tpu.pipeline_mode<synchronous>, transform_indices = @transform_3, window_bounds = array<i64: 1, 32>}, {transform_indices = @transform_4, window_bounds = array<i64: 128, 32>}]} {
    %c0 = arith.constant 0 : index
    %c0_0 = arith.constant 0 : index
    %0 = vector.load %arg1[%c0, %c0_0] : memref<128x144xbf16, #tpu.memory_space<vmem>>, vector<128x144xbf16>
    %c0_1 = arith.constant 0 : index
    %c0_2 = arith.constant 0 : index
    %1 = vector.load %arg2[%c0_1, %c0_2] : memref<144x32xbf16, #tpu.memory_space<vmem>>, vector<144x32xbf16>
    %cst = arith.constant dense<0.000000e+00> : vector<128x32xf32>
    %2 = tpu.matmul %0, %1, %cst {dimension_numbers = #tpu.dot_dimension_numbers<[1], [0], [0], [1], [0, 0, 1, 1], [], []>} : vector<128x144xbf16>, vector<144x32xbf16>, vector<128x32xf32> -> vector<128x32xf32>
    %c0_3 = arith.constant 0 : index
    %c0_4 = arith.constant 0 : index
    %3 = vector.load %arg3[%c0_3, %c0_4] : memref<1x32xf32, #tpu.memory_space<vmem>>, vector<1x32xf32>
    %4 = vector.broadcast %3 : vector<1x32xf32> to vector<128x32xf32>
    %5 = arith.mulf %2, %4 : vector<128x32xf32>
    %c0_5 = arith.constant 0 : index
    %c0_6 = arith.constant 0 : index
    %6 = vector.load %arg4[%c0_5, %c0_6] : memref<1x32xf32, #tpu.memory_space<vmem>>, vector<1x32xf32>
    %7 = vector.broadcast %6 : vector<1x32xf32> to vector<128x32xf32>
    %8 = arith.addf %5, %7 : vector<128x32xf32>
    %cst_7 = arith.constant 0.000000e+00 : f32
    %9 = vector.broadcast %cst_7 : f32 to vector<128x32xf32>
    %10 = arith.maximumf %8, %9 : vector<128x32xf32>
    %c0_8 = arith.constant 0 : index
    %c0_9 = arith.constant 0 : index
    %11 = vector.load %arg5[%c0_8, %c0_9] : memref<128x32xf32, #tpu.memory_space<vmem>>, vector<128x32xf32>
    tpu.vector_store %arg5[%c0_8, %c0_9], %10 {strides = array<i32>} : memref<128x32xf32, #tpu.memory_space<vmem>>, vector<128x32xf32>,
    return
  }
  func.func @transform_0(%arg0: i32) -> (i32, i32) {
    %c0_i32 = arith.constant 0 : i32
    %c0_i32_0 = arith.constant 0 : i32
    return %arg0, %c0_i32 : i32, i32
  }
  func.func @transform_1(%arg0: i32) -> (i32, i32) {
    %c0_i32 = arith.constant 0 : i32
    %c0_i32_0 = arith.constant 0 : i32
    %c0_i32_1 = arith.constant 0 : i32
    return %c0_i32, %c0_i32_0 : i32, i32
  }
  func.func @transform_2(%arg0: i32) -> (i32, i32) {
    %c0_i32 = arith.constant 0 : i32
    %c0_i32_0 = arith.constant 0 : i32
    %c0_i32_1 = arith.constant 0 : i32
    return %c0_i32, %c0_i32_0 : i32, i32
  }
  func.func @transform_3(%arg0: i32) -> (i32, i32) {
    %c0_i32 = arith.constant 0 : i32
    %c0_i32_0 = arith.constant 0 : i32
    %c0_i32_1 = arith.constant 0 : i32
    return %c0_i32, %c0_i32_0 : i32, i32
  }
  func.func @transform_4(%arg0: i32) -> (i32, i32) {
    %c0_i32 = arith.constant 0 : i32
    %c0_i32_0 = arith.constant 0 : i32
    return %arg0, %c0_i32 : i32, i32
  }
}

module attributes {stable_mosaic.version = 11 : i64} {
  func.func @_conv_matmul_res_kernel(%arg0: i32, %arg1: memref<128x288xbf16, #tpu.memory_space<vmem>>, %arg2: memref<288x32xbf16, #tpu.memory_space<vmem>>, %arg3: memref<1x32xf32, #tpu.memory_space<vmem>>, %arg4: memref<1x32xf32, #tpu.memory_space<vmem>>, %arg5: memref<128x32xf32, #tpu.memory_space<vmem>>, %arg6: memref<128x32xf32, #tpu.memory_space<vmem>>) attributes {dimension_semantics = [#tpu.dimension_semantics<parallel>], iteration_bounds = array<i64: 1>, scalar_prefetch = 0 : i64, scratch_operands = 0 : i64, tpu.core_type = #tpu.core_type<tc>, window_params = [{transform_indices = @transform_0, window_bounds = array<i64: 128, 288>}, {pipeline_mode = #tpu.pipeline_mode<synchronous>, transform_indices = @transform_1, window_bounds = array<i64: 288, 32>}, {pipeline_mode = #tpu.pipeline_mode<synchronous>, transform_indices = @transform_2, window_bounds = array<i64: 1, 32>}, {pipeline_mode = #tpu.pipeline_mode<synchronous>, transform_indices = @transform_3, window_bounds = array<i64: 1, 32>}, {transform_indices = @transform_4, window_bounds = array<i64: 128, 32>}, {transform_indices = @transform_5, window_bounds = array<i64: 128, 32>}]} {
    %c0 = arith.constant 0 : index
    %c0_0 = arith.constant 0 : index
    %0 = vector.load %arg1[%c0, %c0_0] : memref<128x288xbf16, #tpu.memory_space<vmem>>, vector<128x288xbf16>
    %c0_1 = arith.constant 0 : index
    %c0_2 = arith.constant 0 : index
    %1 = vector.load %arg2[%c0_1, %c0_2] : memref<288x32xbf16, #tpu.memory_space<vmem>>, vector<288x32xbf16>
    %cst = arith.constant dense<0.000000e+00> : vector<128x32xf32>
    %2 = tpu.matmul %0, %1, %cst {dimension_numbers = #tpu.dot_dimension_numbers<[1], [0], [0], [1], [0, 0, 1, 1], [], []>} : vector<128x288xbf16>, vector<288x32xbf16>, vector<128x32xf32> -> vector<128x32xf32>
    %c0_3 = arith.constant 0 : index
    %c0_4 = arith.constant 0 : index
    %3 = vector.load %arg3[%c0_3, %c0_4] : memref<1x32xf32, #tpu.memory_space<vmem>>, vector<1x32xf32>
    %4 = vector.broadcast %3 : vector<1x32xf32> to vector<128x32xf32>
    %5 = arith.mulf %2, %4 : vector<128x32xf32>
    %c0_5 = arith.constant 0 : index
    %c0_6 = arith.constant 0 : index
    %6 = vector.load %arg4[%c0_5, %c0_6] : memref<1x32xf32, #tpu.memory_space<vmem>>, vector<1x32xf32>
    %7 = vector.broadcast %6 : vector<1x32xf32> to vector<128x32xf32>
    %8 = arith.addf %5, %7 : vector<128x32xf32>
    %c0_7 = arith.constant 0 : index
    %c0_8 = arith.constant 0 : index
    %9 = vector.load %arg5[%c0_7, %c0_8] : memref<128x32xf32, #tpu.memory_space<vmem>>, vector<128x32xf32>
    %10 = arith.addf %8, %9 : vector<128x32xf32>
    %cst_9 = arith.constant 0.000000e+00 : f32
    %11 = vector.broadcast %cst_9 : f32 to vector<128x32xf32>
    %12 = arith.maximumf %10, %11 : vector<128x32xf32>
    %c0_10 = arith.constant 0 : index
    %c0_11 = arith.constant 0 : index
    %13 = vector.load %arg6[%c0_10, %c0_11] : memref<128x32xf32, #tpu.memory_space<vmem>>, vector<128x32xf32>
    tpu.vector_store %arg6[%c0_10, %c0_11], %12 {strides = array<i32>} : memref<128x32xf32, #tpu.memory_space<vmem>>, vector<128x32xf32>,
    return
  }
  func.func @transform_0(%arg0: i32) -> (i32, i32) {
    %c0_i32 = arith.constant 0 : i32
    %c0_i32_0 = arith.constant 0 : i32
    return %arg0, %c0_i32 : i32, i32
  }
  func.func @transform_1(%arg0: i32) -> (i32, i32) {
    %c0_i32 = arith.constant 0 : i32
    %c0_i32_0 = arith.constant 0 : i32
    %c0_i32_1 = arith.constant 0 : i32
    return %c0_i32, %c0_i32_0 : i32, i32
  }
  func.func @transform_2(%arg0: i32) -> (i32, i32) {
    %c0_i32 = arith.constant 0 : i32
    %c0_i32_0 = arith.constant 0 : i32
    %c0_i32_1 = arith.constant 0 : i32
    return %c0_i32, %c0_i32_0 : i32, i32
  }
  func.func @transform_3(%arg0: i32) -> (i32, i32) {
    %c0_i32 = arith.constant 0 : i32
    %c0_i32_0 = arith.constant 0 : i32
    %c0_i32_1 = arith.constant 0 : i32
    return %c0_i32, %c0_i32_0 : i32, i32
  }
  func.func @transform_4(%arg0: i32) -> (i32, i32) {
    %c0_i32 = arith.constant 0 : i32
    %c0_i32_0 = arith.constant 0 : i32
    return %arg0, %c0_i32 : i32, i32
  }
  func.func @transform_5(%arg0: i32) -> (i32, i32) {
    %c0_i32 = arith.constant 0 : i32
    %c0_i32_0 = arith.constant 0 : i32
    return %arg0, %c0_i32 : i32, i32
  }
}

module attributes {stable_mosaic.version = 11 : i64} {
  func.func @_gap_fc_kernel(%arg0: i32, %arg1: memref<2x64x32xf32, #tpu.memory_space<vmem>>, %arg2: memref<32x5xf32, #tpu.memory_space<vmem>>, %arg3: memref<1x5xf32, #tpu.memory_space<vmem>>, %arg4: memref<2x5xf32, #tpu.memory_space<vmem>>) attributes {dimension_semantics = [#tpu.dimension_semantics<arbitrary>], iteration_bounds = array<i64: 1>, scalar_prefetch = 0 : i64, scratch_operands = 0 : i64, tpu.core_type = #tpu.core_type<tc>, window_params = [{pipeline_mode = #tpu.pipeline_mode<synchronous>, transform_indices = @transform_0, window_bounds = array<i64: 2, 64, 32>}, {pipeline_mode = #tpu.pipeline_mode<synchronous>, transform_indices = @transform_1, window_bounds = array<i64: 32, 5>}, {pipeline_mode = #tpu.pipeline_mode<synchronous>, transform_indices = @transform_2, window_bounds = array<i64: 1, 5>}, {pipeline_mode = #tpu.pipeline_mode<synchronous>, transform_indices = @transform_3, window_bounds = array<i64: 2, 5>}]} {
    %c0 = arith.constant 0 : index
    %c0_0 = arith.constant 0 : index
    %c0_1 = arith.constant 0 : index
    %0 = vector.load %arg1[%c0, %c0_0, %c0_1] : memref<2x64x32xf32, #tpu.memory_space<vmem>>, vector<2x64x32xf32>
    %cst = arith.constant dense<0.000000e+00> : vector<2x32xf32>
    %1 = vector.multi_reduction <add>, %0, %cst [1] : vector<2x64x32xf32> to vector<2x32xf32>
    %cst_2 = arith.constant 6.400000e+01 : f32
    %2 = vector.broadcast %cst_2 : f32 to vector<2x32xf32>
    %3 = arith.divf %1, %2 : vector<2x32xf32>
    %c0_3 = arith.constant 0 : index
    %c0_4 = arith.constant 0 : index
    %4 = vector.load %arg2[%c0_3, %c0_4] : memref<32x5xf32, #tpu.memory_space<vmem>>, vector<32x5xf32>
    %cst_5 = arith.constant dense<0.000000e+00> : vector<2x5xf32>
    %5 = tpu.matmul %3, %4, %cst_5 {dimension_numbers = #tpu.dot_dimension_numbers<[1], [0], [0], [1], [0, 0, 1, 1], [], []>} : vector<2x32xf32>, vector<32x5xf32>, vector<2x5xf32> -> vector<2x5xf32>
    %c0_6 = arith.constant 0 : index
    %c0_7 = arith.constant 0 : index
    %6 = vector.load %arg3[%c0_6, %c0_7] : memref<1x5xf32, #tpu.memory_space<vmem>>, vector<1x5xf32>
    %7 = vector.broadcast %6 : vector<1x5xf32> to vector<2x5xf32>
    %8 = arith.addf %5, %7 : vector<2x5xf32>
    %c0_8 = arith.constant 0 : index
    %c0_9 = arith.constant 0 : index
    %9 = vector.load %arg4[%c0_8, %c0_9] : memref<2x5xf32, #tpu.memory_space<vmem>>, vector<2x5xf32>
    tpu.vector_store %arg4[%c0_8, %c0_9], %8 {strides = array<i32>} : memref<2x5xf32, #tpu.memory_space<vmem>>, vector<2x5xf32>,
    return
  }
  func.func @transform_0(%arg0: i32) -> (i32, i32, i32) {
    %c0_i32 = arith.constant 0 : i32
    %c0_i32_0 = arith.constant 0 : i32
    %c0_i32_1 = arith.constant 0 : i32
    %c0_i32_2 = arith.constant 0 : i32
    return %c0_i32, %c0_i32_0, %c0_i32_1 : i32, i32, i32
  }
  func.func @transform_1(%arg0: i32) -> (i32, i32) {
    %c0_i32 = arith.constant 0 : i32
    %c0_i32_0 = arith.constant 0 : i32
    %c0_i32_1 = arith.constant 0 : i32
    return %c0_i32, %c0_i32_0 : i32, i32
  }
  func.func @transform_2(%arg0: i32) -> (i32, i32) {
    %c0_i32 = arith.constant 0 : i32
    %c0_i32_0 = arith.constant 0 : i32
    %c0_i32_1 = arith.constant 0 : i32
    return %c0_i32, %c0_i32_0 : i32, i32
  }
  func.func @transform_3(%arg0: i32) -> (i32, i32) {
    %c0_i32 = arith.constant 0 : i32
    %c0_i32_0 = arith.constant 0 : i32
    %c0_i32_1 = arith.constant 0 : i32
    return %c0_i32, %c0_i32_0 : i32, i32
  }
}

</mosaic_0001>

<llo_original>
// kernel: _lambda_.7
$region0: #{_lambda_.7}
  #allocation0 [shape = 'u32[]', space=smem, size = 0x4, offset = 0x4, fixed_abs, tag = 'smem constant byte address 0x4 - core index']
  #allocation1 [shape = 'u32[144,128]{1,0:T(1,128)}', space=vmem, size = 0x12000, scoped, tag = 'internal scratch']
  %s0 = inlined_call_operand.vmem [shape: bf16[512,27], index: 0, kind: input, shape index: {}]
  %s1 = inlined_call_operand.vmem [shape: bf16[27,16], index: 1, kind: input, shape index: {}]
  %s2 = inlined_call_operand.vmem [shape: f32[1,16], index: 2, kind: input, shape index: {}]
  %s3 = inlined_call_operand.vmem [shape: f32[1,16], index: 3, kind: input, shape index: {}]
  %s4 = inlined_call_operand.vmem [shape: f32[512,16], index: 4, kind: output, shape index: {}]
  %s5 = sld [smem:[#allocation0]]
  $region49: #{_lambda_.7} parent=0
    _
  %s7 = ssub.s32 1, %s5
  %s8 = scalar_select 0, %s7, %s5
  loop: start=0, step=1, limit=4
  $region2: #{_lambda_.7} parent=0 // loop_pre_header
    _
  $region3: #{_lambda_.7} parent=0 // loop_header
    %s10 = sphi 0, %s14
    %p11 = scmp.ge.s32.totalorder %s10, 4
    %s20 = sphi 0, %s22
    %s23 = sphi 0, %s20
    %s24 = sphi 0, %s23
    %s40 = sphi 0, %s24
    %s44 = sphi 0, %s44
    %s46 = sphi 0, %s44
    %s47 = sphi 0, %s46
    %s61 = sphi 0, %s47
    %s65 = sphi 0, %s65
    %s67 = sphi 0, %s65
    %s68 = sphi 0, %s67
    %s82 = sphi 0, %s68
    %s86 = sphi 0, %s86
    %s88 = sphi 0, %s86
    %s89 = sphi 0, %s88
    %s103 = sphi 0, %s89
    %s109 = sphi 0, %s111
    %s112 = sphi 0, %s109
    %s113 = sphi 0, %s112
    %s129 = sphi 0, %s113
  $region4: #{_lambda_.7} parent=0 // loop_header_branch
    %13 = sbr.rel (%p11) target = $region8
  $region5: #{_lambda_.7} parent=0 // loop_body
    %s15 = ssub.s32 %s10, 1
    %s16 = ssub.s32 %s10, 2
    %s17 = sadd.s32 %s10, 1
    %s18 = ssub.s32 %s10, %s17
    %p19 = scmp.eq.s32.totalorder %s18, 0
    %s21 = sadd.s32 %s20, 1
    %s22 = scalar_select %p19, %s20, %s21
    %p25 = pneg %p19
    %p26 = scmp.eq.s32.totalorder %s10, 1
    %p27 = por %p25, %p26
    %p28 = scmp.ne.s32.totalorder %s20, %s23
    %p29 = scmp.eq.s32.totalorder %s10, 0
    %p30 = por %p28, %p29
    %p31 = scmp.ne.s32.totalorder %s20, %s23
    %p32 = scmp.eq.s32.totalorder %s15, 1
    %p33 = por %p31, %p32
    %p34 = scmp.ne.s32.totalorder %s23, %s24
    %p35 = scmp.eq.s32.totalorder %s15, 0
    %p36 = por %p34, %p35
    %p37 = scmp.ne.s32.totalorder %s23, %s24
    %p38 = scmp.eq.s32.totalorder %s16, 1
    %p39 = por %p37, %p38
    %p41 = scmp.ne.s32.totalorder %s24, %s40
    %p42 = scmp.eq.s32.totalorder %s16, 0
    %p43 = por %p41, %p42
    %s45 = sadd.s32 %s44, 1
    %p48 = scmp.eq.s32.totalorder %s10, 1
    %p49 = scmp.ne.s32.totalorder %s44, %s46
    %p50 = scmp.eq.s32.totalorder %s10, 0
    %p51 = por %p49, %p50
    %p52 = scmp.ne.s32.totalorder %s44, %s46
    %p53 = scmp.eq.s32.totalorder %s15, 1
    %p54 = por %p52, %p53
    %p55 = scmp.ne.s32.totalorder %s46, %s47
    %p56 = scmp.eq.s32.totalorder %s15, 0
    %p57 = por %p55, %p56
    %p58 = scmp.ne.s32.totalorder %s46, %s47
    %p59 = scmp.eq.s32.totalorder %s16, 1
    %p60 = por %p58, %p59
    %p62 = scmp.ne.s32.totalorder %s47, %s61
    %p63 = scmp.eq.s32.totalorder %s16, 0
    %p64 = por %p62, %p63
    %s66 = sadd.s32 %s65, 1
    %p69 = scmp.eq.s32.totalorder %s10, 1
    %p70 = scmp.ne.s32.totalorder %s65, %s67
    %p71 = scmp.eq.s32.totalorder %s10, 0
    %p72 = por %p70, %p71
    %p73 = scmp.ne.s32.totalorder %s65, %s67
    %p74 = scmp.eq.s32.totalorder %s15, 1
    %p75 = por %p73, %p74
    %p76 = scmp.ne.s32.totalorder %s67, %s68
    %p77 = scmp.eq.s32.totalorder %s15, 0
    %p78 = por %p76, %p77
    %p79 = scmp.ne.s32.totalorder %s67, %s68
    %p80 = scmp.eq.s32.totalorder %s16, 1
    %p81 = por %p79, %p80
    %p83 = scmp.ne.s32.totalorder %s68, %s82
    %p84 = scmp.eq.s32.totalorder %s16, 0
    %p85 = por %p83, %p84
    %s87 = sadd.s32 %s86, 1
    %p90 = scmp.eq.s32.totalorder %s10, 1
    %p91 = scmp.ne.s32.totalorder %s86, %s88
    %p92 = scmp.eq.s32.totalorder %s10, 0
    %p93 = por %p91, %p92
    %p94 = scmp.ne.s32.totalorder %s86, %s88
    %p95 = scmp.eq.s32.totalorder %s15, 1
    %p96 = por %p94, %p95
    %p97 = scmp.ne.s32.totalorder %s88, %s89
    %p98 = scmp.eq.s32.totalorder %s15, 0
    %p99 = por %p97, %p98
    %p100 = scmp.ne.s32.totalorder %s88, %s89
    %p101 = scmp.eq.s32.totalorder %s16, 1
    %p102 = por %p100, %p101
    %p104 = scmp.ne.s32.totalorder %s89, %s103
    %p105 = scmp.eq.s32.totalorder %s16, 0
    %p106 = por %p104, %p105
    %s107 = ssub.s32 %s10, %s17
    %p108 = scmp.eq.s32.totalorder %s107, 0
    %s110 = sadd.s32 %s109, 1
    %s111 = scalar_select %p108, %s109, %s110
    %p114 = pneg %p108
    %p115 = scmp.eq.s32.totalorder %s10, 1
    %p116 = por %p114, %p115
    %p117 = scmp.ne.s32.totalorder %s109, %s112
    %p118 = scmp.eq.s32.totalorder %s10, 0
    %p119 = por %p117, %p118
    %p120 = scmp.ne.s32.totalorder %s109, %s112
    %p121 = scmp.eq.s32.totalorder %s15, 1
    %p122 = por %p120, %p121
    %p123 = scmp.ne.s32.totalorder %s112, %s113
    %p124 = scmp.eq.s32.totalorder %s15, 0
    %p125 = por %p123, %p124
    %p126 = scmp.ne.s32.totalorder %s112, %s113
    %p127 = scmp.eq.s32.totalorder %s16, 1
    %p128 = por %p126, %p127
    %p130 = scmp.ne.s32.totalorder %s113, %s129
    %p131 = scmp.eq.s32.totalorder %s16, 0
    %p132 = por %p130, %p131
    %p133 = scmp.le.s32.totalorder 1, %s10
    %p134 = scmp.lt.s32.totalorder %s10, 3
    %p135 = pnand %p133, %p134
    %p136 = pneg %p135
    // Predicated region
    $region9: #{_lambda_.7} parent=5 // pred_check
      _
    $region10: #{_lambda_.7} parent=5 // pred_check_branch
      %138 = sbr.rel (%p135) target = $region12
    $region11: #{_lambda_.7} parent=5 // pred_region
      %s139 = ssub.s32 %s10, 1
      // Predicated region
      $region13: #{_lambda_.7} parent=11 // pred_check
        %p140 = pneg %p57
      $region14: #{_lambda_.7} parent=11 // pred_check_branch
        %142 = sbr.rel (%p140) target = $region16
      $region15: #{_lambda_.7} parent=11 // pred_region
        _
      $region16: #{_lambda_.7} parent=11 // pred_fallthru
        _
      // Predicated region
      $region17: #{_lambda_.7} parent=11 // pred_check
        %p143 = pneg %p78
      $region18: #{_lambda_.7} parent=11 // pred_check_branch
        %145 = sbr.rel (%p143) target = $region20
      $region19: #{_lambda_.7} parent=11 // pred_region
        _
      $region20: #{_lambda_.7} parent=11 // pred_fallthru
        _
      // Predicated region
      $region21: #{_lambda_.7} parent=11 // pred_check
        %p146 = pneg %p99
      $region22: #{_lambda_.7} parent=11 // pred_check_branch
        %148 = sbr.rel (%p146) target = $region24
      $region23: #{_lambda_.7} parent=11 // pred_region
        _
      $region24: #{_lambda_.7} parent=11 // pred_fallthru
        _
    $region12: #{_lambda_.7} parent=5 // pred_fallthru
      _
    %p149 = scmp.lt.s32.totalorder %s10, 2
    // Predicated region
    $region25: #{_lambda_.7} parent=5 // pred_check
      %p150 = pneg %p149
    $region26: #{_lambda_.7} parent=5 // pred_check_branch
      %152 = sbr.rel (%p150) target = $region28
    $region27: #{_lambda_.7} parent=5 // pred_region
      // Predicated region
      $region29: #{_lambda_.7} parent=27 // pred_check
        %p153 = pneg %p30
      $region30: #{_lambda_.7} parent=27 // pred_check_branch
        %155 = sbr.rel (%p153) target = $region32
      $region31: #{_lambda_.7} parent=27 // pred_region
        %s156 = smul.u32 32, %s10
        %p157 = scmp.lt.s32.totalorder %s156, 63
        %s158 = scalar_select %p157, %s156, 63
        %s159 = smul.addr %s158, 4
        %s160 = scalar_lea.vmem %s0, %s159
        %s161 = smul.u32 32, %s10
      $region32: #{_lambda_.7} parent=27 // pred_fallthru
        _
    $region28: #{_lambda_.7} parent=5 // pred_fallthru
      _
    %p162 = scmp.le.s32.totalorder 1, %s10
    %p163 = scmp.lt.s32.totalorder %s10, 3
    %p164 = pnand %p162, %p163
    %p165 = pneg %p164
    // Predicated region
    $region33: #{_lambda_.7} parent=5 // pred_check
      _
    $region34: #{_lambda_.7} parent=5 // pred_check_branch
      %167 = sbr.rel (%p164) target = $region36
    $region35: #{_lambda_.7} parent=5 // pred_region
      %s168 = ssub.s32 %s10, 1
      %s169 = smul.u32 32, %s15
      %p170 = scmp.lt.s32.totalorder %s169, 63
      %s171 = scalar_select %p170, %s169, 63
      %s172 = smul.addr %s171, 4
      %s173 = scalar_lea.vmem %s0, %s172
      %p174 = pneg %p36
      %p175 = pneg %p33
      %p176 = pneg %p57
      %p177 = pneg %p54
      %p178 = pneg %p78
      %p179 = pneg %p75
      %p180 = pneg %p99
      %p181 = pneg %p96
      %p182 = pneg %p125
      %p183 = pneg %p122
      %s184 = smul.u32 32, %s15
      %p185 = scmp.lt.s32.totalorder %s184, 63
      %s186 = scalar_select %p185, %s184, 63
      %s187 = smul.addr %s186, 8
      %s188 = scalar_lea.vmem %s4, %s187
      %s189 = smul.u32 32, %s15
      %p190 = scmp.lt.s32.totalorder %s189, 63
      %s191 = scalar_select %p190, %s189, 63
      %s192 = smul.addr %s191, 4
      %s193 = scalar_lea.vmem %s0, %s192
      %s194 = smul.u32 32, %s15
      %s195 = smul.u32 32, %s15
      %p196 = scmp.lt.s32.totalorder %s195, 63
      %s197 = scalar_select %p196, %s195, 63
      %s198 = smul.addr %s197, 8
      %s199 = scalar_lea.vmem %s4, %s198
      %s200 = smul.u32 32, %s15
      %v202 = vld [vmem:[%s193] sm:$0xf]
      %v203 = vld [vmem:[%s193 + $0x4] sm:$0xf]
      %v204 = vld [vmem:[%s193 + $0x8] sm:$0xf]
      %v205 = vld [vmem:[%s193 + $0xc] sm:$0xf]
      %v206 = vld [vmem:[%s193 + $0x10] sm:$0xf]
      %v207 = vld [vmem:[%s193 + $0x14] sm:$0xf]
      %v208 = vld [vmem:[%s193 + $0x18] sm:$0xf]
      %v209 = vld [vmem:[%s193 + $0x1c] sm:$0xf]
      %v210 = vld [vmem:[%s193 + $0x20] sm:$0xf]
      %v211 = vld [vmem:[%s193 + $0x24] sm:$0xf]
      %v212 = vld [vmem:[%s193 + $0x28] sm:$0xf]
      %v213 = vld [vmem:[%s193 + $0x2c] sm:$0xf]
      %v214 = vld [vmem:[%s193 + $0x30] sm:$0xf]
      %v215 = vld [vmem:[%s193 + $0x34] sm:$0xf]
      %v216 = vld [vmem:[%s193 + $0x38] sm:$0xf]
      %v217 = vld [vmem:[%s193 + $0x3c] sm:$0xf]
      %v218 = vld [vmem:[%s193 + $0x40] sm:$0xf]
      %v219 = vld [vmem:[%s193 + $0x44] sm:$0xf]
      %v220 = vld [vmem:[%s193 + $0x48] sm:$0xf]
      %v221 = vld [vmem:[%s193 + $0x4c] sm:$0xf]
      %v222 = vld [vmem:[%s193 + $0x50] sm:$0xf]
      %v223 = vld [vmem:[%s193 + $0x54] sm:$0xf]
      %v224 = vld [vmem:[%s193 + $0x58] sm:$0xf]
      %v225 = vld [vmem:[%s193 + $0x5c] sm:$0xf]
      %v226 = vld [vmem:[%s193 + $0x60] sm:$0xf]
      %v227 = vld [vmem:[%s193 + $0x64] sm:$0xf]
      %v228 = vld [vmem:[%s193 + $0x68] sm:$0xf]
      %v229 = vld [vmem:[%s193 + $0x6c] sm:$0xf]
      %v230 = vld [vmem:[%s193 + $0x70] sm:$0xf]
      %v231 = vld [vmem:[%s193 + $0x74] sm:$0xf]
      %v232 = vld [vmem:[%s193 + $0x78] sm:$0xf]
      %v233 = vld [vmem:[%s193 + $0x7c] sm:$0xf]
      %v234 = vld [vmem:[%s1] sm:$0xf]
      %v235 = vld [vmem:[%s1 + $0x4] sm:$0xf]
      %v236 = vld [vmem:[%s1 + $0x8] sm:$0xf]
      %v237 = vld [vmem:[%s1 + $0xc] sm:$0x3]
      %v270 = vunpack.c.l.b16 %v202
      %v271 = vunpack.c.l.b16 %v203
      %v272 = vunpack.c.l.b16 %v204
      %v273 = vunpack.c.l.b16 %v205
      %v274 = vunpack.c.l.b16 %v206
      %v275 = vunpack.c.l.b16 %v207
      %v276 = vunpack.c.l.b16 %v208
      %v277 = vunpack.c.l.b16 %v209
      %v278 = vunpack.c.l.b16 %v210
      %v279 = vunpack.c.l.b16 %v211
      %v280 = vunpack.c.l.b16 %v212
      %v281 = vunpack.c.l.b16 %v213
      %v282 = vunpack.c.l.b16 %v214
      %v283 = vunpack.c.l.b16 %v215
      %v284 = vunpack.c.l.b16 %v216
      %v285 = vunpack.c.l.b16 %v217
      %v286 = vunpack.c.l.b16 %v218
      %v287 = vunpack.c.l.b16 %v219
      %v288 = vunpack.c.l.b16 %v220
      %v289 = vunpack.c.l.b16 %v221
      %v290 = vunpack.c.l.b16 %v222
      %v291 = vunpack.c.l.b16 %v223
      %v292 = vunpack.c.l.b16 %v224
      %v293 = vunpack.c.l.b16 %v225
      %v294 = vunpack.c.l.b16 %v226
      %v295 = vunpack.c.l.b16 %v227
      %v296 = vunpack.c.l.b16 %v228
      %v297 = vunpack.c.l.b16 %v229
      %v298 = vunpack.c.l.b16 %v230
      %v299 = vunpack.c.l.b16 %v231
      %v300 = vunpack.c.l.b16 %v232
      %v301 = vunpack.c.l.b16 %v233
      %v302 = vpack.c.b16 %v271, %v270
      %v303 = vpack.c.b16 %v273, %v272
      %v304 = vpack.c.b16 %v275, %v274
      %v305 = vpack.c.b16 %v277, %v276
      %v306 = vpack.c.b16 %v279, %v278
      %v307 = vpack.c.b16 %v281, %v280
      %v308 = vpack.c.b16 %v283, %v282
      %v309 = vpack.c.b16 %v285, %v284
      %v310 = vpack.c.b16 %v287, %v286
      %v311 = vpack.c.b16 %v289, %v288
      %v312 = vpack.c.b16 %v291, %v290
      %v313 = vpack.c.b16 %v293, %v292
      %v314 = vpack.c.b16 %v295, %v294
      %v315 = vpack.c.b16 %v297, %v296
      %v316 = vpack.c.b16 %v299, %v298
      %v317 = vpack.c.b16 %v301, %v300
      %v322 = vunpack.c.l.b16 %v234
      %v323 = vunpack.c.l.b16 %v235
      %v324 = vunpack.c.l.b16 %v236
      %v325 = vunpack.c.l.b16 %v237
      %v326 = vpack.c.b16 %v323, %v322
      %v327 = vpack.c.b16 %v325, %v324
      %vm329 = vcmask 220160
      %v331 = vsel %vm329, %v302, 0
      %v334 = vsel %vm329, %v303, 0
      %v337 = vsel %vm329, %v304, 0
      %v340 = vsel %vm329, %v305, 0
      %v343 = vsel %vm329, %v306, 0
      %v346 = vsel %vm329, %v307, 0
      %v349 = vsel %vm329, %v308, 0
      %v352 = vsel %vm329, %v309, 0
      %v355 = vsel %vm329, %v310, 0
      %v358 = vsel %vm329, %v311, 0
      %v361 = vsel %vm329, %v312, 0
      %v364 = vsel %vm329, %v313, 0
      %v367 = vsel %vm329, %v314, 0
      %v370 = vsel %vm329, %v315, 0
      %v373 = vsel %vm329, %v316, 0
      %v376 = vsel %vm329, %v317, 0
      %vm378 = vcmask 1044480
      %vm379 = vcmask 1045504
      %v380 = vsel %vm378, 4294967295, 65535
      %v381 = vsel %vm379, %v380, 0
      %v383 = vand.u32 %v327, %v381
      %385 = vmatprep.subr.bf16.mxu0 0
      %386 = vmatpush1.bf16.msra.mxu0 %v326
      %387 = vmatprep.subr.bf16.mxu0 0
      %388 = vmatpush1.bf16.msra.mxu0 %v383
      %389 = vmatprep.subr.bf16.mxu0 0
      %390 = vmatpush1.bf16.msra.mxu0 0
      %391 = vmatprep.subr.bf16.mxu0 0
      %392 = vmatpush1.bf16.msra.mxu0 0
      %393 = vmatprep.subr.bf16.mxu0 0
      %394 = vmatpush1.bf16.msra.mxu0 0
      %395 = vmatprep.subr.bf16.mxu0 0
      %396 = vmatpush1.bf16.msra.mxu0 0
      %397 = vmatprep.subr.bf16.mxu0 0
      %398 = vmatpush1.bf16.msra.mxu0 0
      %399 = vmatprep.subr.bf16.mxu0 0
      %400 = vmatpush1.bf16.msra.mxu0 0
      %401 = vmatprep.subr.bf16.mxu0 0
      %402 = vmatpush1.bf16.msra.mxu0 0
      %403 = vmatprep.subr.bf16.mxu0 0
      %404 = vmatpush1.bf16.msra.mxu0 0
      %405 = vmatprep.subr.bf16.mxu0 0
      %406 = vmatpush1.bf16.msra.mxu0 0
      %407 = vmatprep.subr.bf16.mxu0 0
      %408 = vmatpush1.bf16.msra.mxu0 0
      %409 = vmatprep.subr.bf16.mxu0 0
      %410 = vmatpush1.bf16.msra.mxu0 0
      %411 = vmatprep.subr.bf16.mxu0 0
      %412 = vmatpush1.bf16.msra.mxu0 0
      %413 = vmatprep.subr.bf16.mxu0 0
      %414 = vmatpush1.bf16.msra.mxu0 0
      %415 = vmatprep.subr.bf16.mxu0 0
      %416 = vmatpush1.bf16.msra.mxu0 0
      %417 = vmatprep.mubr.bf16.mxu0 0
      %418 = vmatmul.mubr.bf16.gmra.mrb[0].mxu0 %v331
      %v419 = vpop.f32.mrb[0].mxu0
      %v420 = vadd.f32 0.0, %v419
      %v421 = vpop.f32.mrb[0].mxu0
      %v422 = vpop.f32.mrb[0].mxu0
      %v423 = vadd.f32 0.0, %v422
      %v424 = vpop.f32.mrb[0].mxu0
      %425 = vmatprep.mubr.bf16.mxu0 0
      %426 = vmatmul.mubr.bf16.gmra.mrb[0].mxu0 %v334
      %v427 = vpop.f32.mrb[0].mxu0
      %v428 = vadd.f32 0.0, %v427
      %v429 = vpop.f32.mrb[0].mxu0
      %v430 = vpop.f32.mrb[0].mxu0
      %v431 = vadd.f32 0.0, %v430
      %v432 = vpop.f32.mrb[0].mxu0
      %433 = vmatprep.mubr.bf16.mxu0 0
      %434 = vmatmul.mubr.bf16.gmra.mrb[0].mxu0 %v337
      %v435 = vpop.f32.mrb[0].mxu0
      %v436 = vadd.f32 0.0, %v435
      %v437 = vpop.f32.mrb[0].mxu0
      %v438 = vpop.f32.mrb[0].mxu0
      %v439 = vadd.f32 0.0, %v438
      %v440 = vpop.f32.mrb[0].mxu0
      %441 = vmatprep.mubr.bf16.mxu0 0
      %442 = vmatmul.mubr.bf16.gmra.mrb[0].mxu0 %v340
      %v443 = vpop.f32.mrb[0].mxu0
      %v444 = vadd.f32 0.0, %v443
      %v445 = vpop.f32.mrb[0].mxu0
      %v446 = vpop.f32.mrb[0].mxu0
      %v447 = vadd.f32 0.0, %v446
      %v448 = vpop.f32.mrb[0].mxu0
      %449 = vmatprep.mubr.bf16.mxu0 0
      %450 = vmatmul.mubr.bf16.gmra.mrb[0].mxu0 %v343
      %v451 = vpop.f32.mrb[0].mxu0
      %v452 = vadd.f32 0.0, %v451
      %v453 = vpop.f32.mrb[0].mxu0
      %v454 = vpop.f32.mrb[0].mxu0
      %v455 = vadd.f32 0.0, %v454
      %v456 = vpop.f32.mrb[0].mxu0
      %457 = vmatprep.mubr.bf16.mxu0 0
      %458 = vmatmul.mubr.bf16.gmra.mrb[0].mxu0 %v346
      %v459 = vpop.f32.mrb[0].mxu0
      %v460 = vadd.f32 0.0, %v459
      %v461 = vpop.f32.mrb[0].mxu0
      %v462 = vpop.f32.mrb[0].mxu0
      %v463 = vadd.f32 0.0, %v462
      %v464 = vpop.f32.mrb[0].mxu0
      %465 = vmatprep.mubr.bf16.mxu0 0
      %466 = vmatmul.mubr.bf16.gmra.mrb[0].mxu0 %v349
      %v467 = vpop.f32.mrb[0].mxu0
      %v468 = vadd.f32 0.0, %v467
      %v469 = vpop.f32.mrb[0].mxu0
      %v470 = vpop.f32.mrb[0].mxu0
      %v471 = vadd.f32 0.0, %v470
      %v472 = vpop.f32.mrb[0].mxu0
      %473 = vmatprep.mubr.bf16.mxu0 0
      %474 = vmatmul.mubr.bf16.gmra.mrb[0].mxu0 %v352
      %v475 = vpop.f32.mrb[0].mxu0
      %v476 = vadd.f32 0.0, %v475
      %v477 = vpop.f32.mrb[0].mxu0
      %v478 = vpop.f32.mrb[0].mxu0
      %v479 = vadd.f32 0.0, %v478
      %v480 = vpop.f32.mrb[0].mxu0
      %481 = vmatprep.mubr.bf16.mxu0 0
      %482 = vmatmul.mubr.bf16.gmra.mrb[0].mxu0 %v355
      %v483 = vpop.f32.mrb[0].mxu0
      %v484 = vadd.f32 0.0, %v483
      %v485 = vpop.f32.mrb[0].mxu0
      %v486 = vpop.f32.mrb[0].mxu0
      %v487 = vadd.f32 0.0, %v486
      %v488 = vpop.f32.mrb[0].mxu0
      %489 = vmatprep.mubr.bf16.mxu0 0
      %490 = vmatmul.mubr.bf16.gmra.mrb[0].mxu0 %v358
      %v491 = vpop.f32.mrb[0].mxu0
      %v492 = vadd.f32 0.0, %v491
      %v493 = vpop.f32.mrb[0].mxu0
      %v494 = vpop.f32.mrb[0].mxu0
      %v495 = vadd.f32 0.0, %v494
      %v496 = vpop.f32.mrb[0].mxu0
      %497 = vmatprep.mubr.bf16.mxu0 0
      %498 = vmatmul.mubr.bf16.gmra.mrb[0].mxu0 %v361
      %v499 = vpop.f32.mrb[0].mxu0
      %v500 = vadd.f32 0.0, %v499
      %v501 = vpop.f32.mrb[0].mxu0
      %v502 = vpop.f32.mrb[0].mxu0
      %v503 = vadd.f32 0.0, %v502
      %v504 = vpop.f32.mrb[0].mxu0
      %505 = vmatprep.mubr.bf16.mxu0 0
      %506 = vmatmul.mubr.bf16.gmra.mrb[0].mxu0 %v364
      %v507 = vpop.f32.mrb[0].mxu0
      %v508 = vadd.f32 0.0, %v507
      %v509 = vpop.f32.mrb[0].mxu0
      %v510 = vpop.f32.mrb[0].mxu0
      %v511 = vadd.f32 0.0, %v510
      %v512 = vpop.f32.mrb[0].mxu0
      %513 = vmatprep.mubr.bf16.mxu0 0
      %514 = vmatmul.mubr.bf16.gmra.mrb[0].mxu0 %v367
      %v515 = vpop.f32.mrb[0].mxu0
      %v516 = vadd.f32 0.0, %v515
      %v517 = vpop.f32.mrb[0].mxu0
      %v518 = vpop.f32.mrb[0].mxu0
      %v519 = vadd.f32 0.0, %v518
      %v520 = vpop.f32.mrb[0].mxu0
      %521 = vmatprep.mubr.bf16.mxu0 0
      %522 = vmatmul.mubr.bf16.gmra.mrb[0].mxu0 %v370
      %v523 = vpop.f32.mrb[0].mxu0
      %v524 = vadd.f32 0.0, %v523
      %v525 = vpop.f32.mrb[0].mxu0
      %v526 = vpop.f32.mrb[0].mxu0
      %v527 = vadd.f32 0.0, %v526
      %v528 = vpop.f32.mrb[0].mxu0
      %529 = vmatprep.mubr.bf16.mxu0 0
      %530 = vmatmul.mubr.bf16.gmra.mrb[0].mxu0 %v373
      %v531 = vpop.f32.mrb[0].mxu0
      %v532 = vadd.f32 0.0, %v531
      %v533 = vpop.f32.mrb[0].mxu0
      %v534 = vpop.f32.mrb[0].mxu0
      %v535 = vadd.f32 0.0, %v534
      %v536 = vpop.f32.mrb[0].mxu0
      %537 = vmatprep.mubr.bf16.mxu0 0
      %538 = vmatmul.mubr.bf16.gmra.mrb[0].mxu0 %v376
      %v539 = vpop.f32.mrb[0].mxu0
      %v540 = vadd.f32 0.0, %v539
      %v541 = vpop.f32.mrb[0].mxu0
      %v542 = vpop.f32.mrb[0].mxu0
      %v543 = vadd.f32 0.0, %v542
      %v544 = vpop.f32.mrb[0].mxu0
      %545 = vdwg.mxu0
      %v546 = vld [vmem:[%s2] sm:$0x1]
      %v548 = vlaneseq
      %v549 = vshrl.u32 %v548, 7
      %v550 = vsub.s32 0, %v549
      %v551 = vrot.slane %v546, %v550
      %v553 = vmul.f32 %v420, %v551
      %v554 = vmul.f32 %v423, %v551
      %v555 = vmul.f32 %v428, %v551
      %v556 = vmul.f32 %v431, %v551
      %v557 = vmul.f32 %v436, %v551
      %v558 = vmul.f32 %v439, %v551
      %v559 = vmul.f32 %v444, %v551
      %v560 = vmul.f32 %v447, %v551
      %v561 = vmul.f32 %v452, %v551
      %v562 = vmul.f32 %v455, %v551
      %v563 = vmul.f32 %v460, %v551
      %v564 = vmul.f32 %v463, %v551
      %v565 = vmul.f32 %v468, %v551
      %v566 = vmul.f32 %v471, %v551
      %v567 = vmul.f32 %v476, %v551
      %v568 = vmul.f32 %v479, %v551
      %v569 = vmul.f32 %v484, %v551
      %v570 = vmul.f32 %v487, %v551
      %v571 = vmul.f32 %v492, %v551
      %v572 = vmul.f32 %v495, %v551
      %v573 = vmul.f32 %v500, %v551
      %v574 = vmul.f32 %v503, %v551
      %v575 = vmul.f32 %v508, %v551
      %v576 = vmul.f32 %v511, %v551
      %v577 = vmul.f32 %v516, %v551
      %v578 = vmul.f32 %v519, %v551
      %v579 = vmul.f32 %v524, %v551
      %v580 = vmul.f32 %v527, %v551
      %v581 = vmul.f32 %v532, %v551
      %v582 = vmul.f32 %v535, %v551
      %v583 = vmul.f32 %v540, %v551
      %v584 = vmul.f32 %v543, %v551
      %v585 = vld [vmem:[%s3] sm:$0x1]
      %v587 = vlaneseq
      %v588 = vshrl.u32 %v587, 7
      %v589 = vsub.s32 0, %v588
      %v590 = vrot.slane %v585, %v589
      %v592 = vadd.f32 %v553, %v590
      %v593 = vadd.f32 %v554, %v590
      %v594 = vadd.f32 %v555, %v590
      %v595 = vadd.f32 %v556, %v590
      %v596 = vadd.f32 %v557, %v590
      %v597 = vadd.f32 %v558, %v590
      %v598 = vadd.f32 %v559, %v590
      %v599 = vadd.f32 %v560, %v590
      %v600 = vadd.f32 %v561, %v590
      %v601 = vadd.f32 %v562, %v590
      %v602 = vadd.f32 %v563, %v590
      %v603 = vadd.f32 %v564, %v590
      %v604 = vadd.f32 %v565, %v590
      %v605 = vadd.f32 %v566, %v590
      %v606 = vadd.f32 %v567, %v590
      %v607 = vadd.f32 %v568, %v590
      %v608 = vadd.f32 %v569, %v590
      %v609 = vadd.f32 %v570, %v590
      %v610 = vadd.f32 %v571, %v590
      %v611 = vadd.f32 %v572, %v590
      %v612 = vadd.f32 %v573, %v590
      %v613 = vadd.f32 %v574, %v590
      %v614 = vadd.f32 %v575, %v590
      %v615 = vadd.f32 %v576, %v590
      %v616 = vadd.f32 %v577, %v590
      %v617 = vadd.f32 %v578, %v590
      %v618 = vadd.f32 %v579, %v590
      %v619 = vadd.f32 %v580, %v590
      %v620 = vadd.f32 %v581, %v590
      %v621 = vadd.f32 %v582, %v590
      %v622 = vadd.f32 %v583, %v590
      %v623 = vadd.f32 %v584, %v590
      %v624 = vmax.f32 %v592, 0.0
      %v625 = vmax.f32 %v593, 0.0
      %v626 = vmax.f32 %v594, 0.0
      %v627 = vmax.f32 %v595, 0.0
      %v628 = vmax.f32 %v596, 0.0
      %v629 = vmax.f32 %v597, 0.0
      %v630 = vmax.f32 %v598, 0.0
      %v631 = vmax.f32 %v599, 0.0
      %v632 = vmax.f32 %v600, 0.0
      %v633 = vmax.f32 %v601, 0.0
      %v634 = vmax.f32 %v602, 0.0
      %v635 = vmax.f32 %v603, 0.0
      %v636 = vmax.f32 %v604, 0.0
      %v637 = vmax.f32 %v605, 0.0
      %v638 = vmax.f32 %v606, 0.0
      %v639 = vmax.f32 %v607, 0.0
      %v640 = vmax.f32 %v608, 0.0
      %v641 = vmax.f32 %v609, 0.0
      %v642 = vmax.f32 %v610, 0.0
      %v643 = vmax.f32 %v611, 0.0
      %v644 = vmax.f32 %v612, 0.0
      %v645 = vmax.f32 %v613, 0.0
      %v646 = vmax.f32 %v614, 0.0
      %v647 = vmax.f32 %v615, 0.0
      %v648 = vmax.f32 %v616, 0.0
      %v649 = vmax.f32 %v617, 0.0
      %v650 = vmax.f32 %v618, 0.0
      %v651 = vmax.f32 %v619, 0.0
      %v652 = vmax.f32 %v620, 0.0
      %v653 = vmax.f32 %v621, 0.0
      %v654 = vmax.f32 %v622, 0.0
      %v655 = vmax.f32 %v623, 0.0
      %vm656 = vcmask 130048
      %657 = vst.msk [vmem:[%s199] sm:$0xff] %vm656, %v624
      %658 = vst.msk [vmem:[%s199 + $0x8] sm:$0xff] %vm656, %v625
      %659 = vst.msk [vmem:[%s199 + $0x10] sm:$0xff] %vm656, %v626
      %660 = vst.msk [vmem:[%s199 + $0x18] sm:$0xff] %vm656, %v627
      %661 = vst.msk [vmem:[%s199 + $0x20] sm:$0xff] %vm656, %v628
      %662 = vst.msk [vmem:[%s199 + $0x28] sm:$0xff] %vm656, %v629
      %663 = vst.msk [vmem:[%s199 + $0x30] sm:$0xff] %vm656, %v630
      %664 = vst.msk [vmem:[%s199 + $0x38] sm:$0xff] %vm656, %v631
      %665 = vst.msk [vmem:[%s199 + $0x40] sm:$0xff] %vm656, %v632
      %666 = vst.msk [vmem:[%s199 + $0x48] sm:$0xff] %vm656, %v633
      %667 = vst.msk [vmem:[%s199 + $0x50] sm:$0xff] %vm656, %v634
      %668 = vst.msk [vmem:[%s199 + $0x58] sm:$0xff] %vm656, %v635
      %669 = vst.msk [vmem:[%s199 + $0x60] sm:$0xff] %vm656, %v636
      %670 = vst.msk [vmem:[%s199 + $0x68] sm:$0xff] %vm656, %v637
      %671 = vst.msk [vmem:[%s199 + $0x70] sm:$0xff] %vm656, %v638
      %672 = vst.msk [vmem:[%s199 + $0x78] sm:$0xff] %vm656, %v639
      %673 = vst.msk [vmem:[%s199 + $0x80] sm:$0xff] %vm656, %v640
      %674 = vst.msk [vmem:[%s199 + $0x88] sm:$0xff] %vm656, %v641
      %675 = vst.msk [vmem:[%s199 + $0x90] sm:$0xff] %vm656, %v642
      %676 = vst.msk [vmem:[%s199 + $0x98] sm:$0xff] %vm656, %v643
      %677 = vst.msk [vmem:[%s199 + $0xa0] sm:$0xff] %vm656, %v644
      %678 = vst.msk [vmem:[%s199 + $0xa8] sm:$0xff] %vm656, %v645
      %679 = vst.msk [vmem:[%s199 + $0xb0] sm:$0xff] %vm656, %v646
      %680 = vst.msk [vmem:[%s199 + $0xb8] sm:$0xff] %vm656, %v647
      %681 = vst.msk [vmem:[%s199 + $0xc0] sm:$0xff] %vm656, %v648
      %682 = vst.msk [vmem:[%s199 + $0xc8] sm:$0xff] %vm656, %v649
      %683 = vst.msk [vmem:[%s199 + $0xd0] sm:$0xff] %vm656, %v650
      %684 = vst.msk [vmem:[%s199 + $0xd8] sm:$0xff] %vm656, %v651
      %685 = vst.msk [vmem:[%s199 + $0xe0] sm:$0xff] %vm656, %v652
      %686 = vst.msk [vmem:[%s199 + $0xe8] sm:$0xff] %vm656, %v653
      %687 = vst.msk [vmem:[%s199 + $0xf0] sm:$0xff] %vm656, %v654
      %688 = vst.msk [vmem:[%s199 + $0xf8] sm:$0xff] %vm656, %v655
      %s689 = smul.u32 32, %s15
      %p690 = scmp.lt.s32.totalorder %s689, 63
      %s691 = scalar_select %p690, %s689, 63
      %s692 = smul.addr %s691, 8
      %s693 = scalar_lea.vmem %s4, %s692
      // Predicated region
      $region37: #{_lambda_.7} parent=35 // pred_check
        %p694 = pneg %p122
      $region38: #{_lambda_.7} parent=35 // pred_check_branch
        %696 = sbr.rel (%p694) target = $region40
      $region39: #{_lambda_.7} parent=35 // pred_region
        %s697 = smul.u32 32, %s15
      $region40: #{_lambda_.7} parent=35 // pred_fallthru
        _
    $region36: #{_lambda_.7} parent=5 // pred_fallthru
      _
    %p698 = scmp.le.s32.totalorder 2, %s10
    // Predicated region
    $region41: #{_lambda_.7} parent=5 // pred_check
      %p699 = pneg %p698
    $region42: #{_lambda_.7} parent=5 // pred_check_branch
      %701 = sbr.rel (%p699) target = $region44
    $region43: #{_lambda_.7} parent=5 // pred_region
      %s702 = ssub.s32 %s10, 2
      // Predicated region
      $region45: #{_lambda_.7} parent=43 // pred_check
        %p703 = pneg %p128
      $region46: #{_lambda_.7} parent=43 // pred_check_branch
        %705 = sbr.rel (%p703) target = $region48
      $region47: #{_lambda_.7} parent=43 // pred_region
        %s706 = smul.u32 32, %s16
        %p707 = scmp.lt.s32.totalorder %s706, 63
        %s708 = scalar_select %p707, %s706, 63
        %s709 = smul.addr %s708, 8
        %s710 = scalar_lea.vmem %s4, %s709
      $region48: #{_lambda_.7} parent=43 // pred_fallthru
        _
    $region44: #{_lambda_.7} parent=5 // pred_fallthru
      _
  $region6: #{_lambda_.7} parent=0 // loop_footer
    %s14 = sadd.s32 1, %s10
  $region7: #{_lambda_.7} parent=0 // loop_footer_branch
    %9 = sbr.rel target = $region3
  $region8: #{_lambda_.7} parent=0 // loop_exit
    _

// kernel: _lambda_.8
$region0: #{_lambda_.8}
  #allocation0 [shape = 'u32[]', space=smem, size = 0x4, offset = 0x4, fixed_abs, tag = 'smem constant byte address 0x4 - core index']
  #allocation1 [shape = 'u32[144,128]{1,0:T(1,128)}', space=vmem, size = 0x12000, scoped, tag = 'internal scratch']
  %s0 = inlined_call_operand.vmem [shape: bf16[512,144], index: 0, kind: input, shape index: {}]
  %s1 = inlined_call_operand.vmem [shape: bf16[144,16], index: 1, kind: input, shape index: {}]
  %s2 = inlined_call_operand.vmem [shape: f32[1,16], index: 2, kind: input, shape index: {}]
  %s3 = inlined_call_operand.vmem [shape: f32[1,16], index: 3, kind: input, shape index: {}]
  %s4 = inlined_call_operand.vmem [shape: f32[512,16], index: 4, kind: output, shape index: {}]
  %s5 = sld [smem:[#allocation0]]
  $region49: #{_lambda_.8} parent=0
    _
  %s7 = ssub.s32 1, %s5
  %s8 = scalar_select 0, %s7, %s5
  loop: start=0, step=1, limit=4
  $region2: #{_lambda_.8} parent=0 // loop_pre_header
    _
  $region3: #{_lambda_.8} parent=0 // loop_header
    %s10 = sphi 0, %s14
    %p11 = scmp.ge.s32.totalorder %s10, 4
    %s20 = sphi 0, %s22
    %s23 = sphi 0, %s20
    %s24 = sphi 0, %s23
    %s40 = sphi 0, %s24
    %s44 = sphi 0, %s44
    %s46 = sphi 0, %s44
    %s47 = sphi 0, %s46
    %s61 = sphi 0, %s47
    %s65 = sphi 0, %s65
    %s67 = sphi 0, %s65
    %s68 = sphi 0, %s67
    %s82 = sphi 0, %s68
    %s86 = sphi 0, %s86
    %s88 = sphi 0, %s86
    %s89 = sphi 0, %s88
    %s103 = sphi 0, %s89
    %s109 = sphi 0, %s111
    %s112 = sphi 0, %s109
    %s113 = sphi 0, %s112
    %s129 = sphi 0, %s113
  $region4: #{_lambda_.8} parent=0 // loop_header_branch
    %13 = sbr.rel (%p11) target = $region8
  $region5: #{_lambda_.8} parent=0 // loop_body
    %s15 = ssub.s32 %s10, 1
    %s16 = ssub.s32 %s10, 2
    %s17 = sadd.s32 %s10, 1
    %s18 = ssub.s32 %s10, %s17
    %p19 = scmp.eq.s32.totalorder %s18, 0
    %s21 = sadd.s32 %s20, 1
    %s22 = scalar_select %p19, %s20, %s21
    %p25 = pneg %p19
    %p26 = scmp.eq.s32.totalorder %s10, 1
    %p27 = por %p25, %p26
    %p28 = scmp.ne.s32.totalorder %s20, %s23
    %p29 = scmp.eq.s32.totalorder %s10, 0
    %p30 = por %p28, %p29
    %p31 = scmp.ne.s32.totalorder %s20, %s23
    %p32 = scmp.eq.s32.totalorder %s15, 1
    %p33 = por %p31, %p32
    %p34 = scmp.ne.s32.totalorder %s23, %s24
    %p35 = scmp.eq.s32.totalorder %s15, 0
    %p36 = por %p34, %p35
    %p37 = scmp.ne.s32.totalorder %s23, %s24
    %p38 = scmp.eq.s32.totalorder %s16, 1
    %p39 = por %p37, %p38
    %p41 = scmp.ne.s32.totalorder %s24, %s40
    %p42 = scmp.eq.s32.totalorder %s16, 0
    %p43 = por %p41, %p42
    %s45 = sadd.s32 %s44, 1
    %p48 = scmp.eq.s32.totalorder %s10, 1
    %p49 = scmp.ne.s32.totalorder %s44, %s46
    %p50 = scmp.eq.s32.totalorder %s10, 0
    %p51 = por %p49, %p50
    %p52 = scmp.ne.s32.totalorder %s44, %s46
    %p53 = scmp.eq.s32.totalorder %s15, 1
    %p54 = por %p52, %p53
    %p55 = scmp.ne.s32.totalorder %s46, %s47
    %p56 = scmp.eq.s32.totalorder %s15, 0
    %p57 = por %p55, %p56
    %p58 = scmp.ne.s32.totalorder %s46, %s47
    %p59 = scmp.eq.s32.totalorder %s16, 1
    %p60 = por %p58, %p59
    %p62 = scmp.ne.s32.totalorder %s47, %s61
    %p63 = scmp.eq.s32.totalorder %s16, 0
    %p64 = por %p62, %p63
    %s66 = sadd.s32 %s65, 1
    %p69 = scmp.eq.s32.totalorder %s10, 1
    %p70 = scmp.ne.s32.totalorder %s65, %s67
    %p71 = scmp.eq.s32.totalorder %s10, 0
    %p72 = por %p70, %p71
    %p73 = scmp.ne.s32.totalorder %s65, %s67
    %p74 = scmp.eq.s32.totalorder %s15, 1
    %p75 = por %p73, %p74
    %p76 = scmp.ne.s32.totalorder %s67, %s68
    %p77 = scmp.eq.s32.totalorder %s15, 0
    %p78 = por %p76, %p77
    %p79 = scmp.ne.s32.totalorder %s67, %s68
    %p80 = scmp.eq.s32.totalorder %s16, 1
    %p81 = por %p79, %p80
    %p83 = scmp.ne.s32.totalorder %s68, %s82
    %p84 = scmp.eq.s32.totalorder %s16, 0
    %p85 = por %p83, %p84
    %s87 = sadd.s32 %s86, 1
    %p90 = scmp.eq.s32.totalorder %s10, 1
    %p91 = scmp.ne.s32.totalorder %s86, %s88
    %p92 = scmp.eq.s32.totalorder %s10, 0
    %p93 = por %p91, %p92
    %p94 = scmp.ne.s32.totalorder %s86, %s88
    %p95 = scmp.eq.s32.totalorder %s15, 1
    %p96 = por %p94, %p95
    %p97 = scmp.ne.s32.totalorder %s88, %s89
    %p98 = scmp.eq.s32.totalorder %s15, 0
    %p99 = por %p97, %p98
    %p100 = scmp.ne.s32.totalorder %s88, %s89
    %p101 = scmp.eq.s32.totalorder %s16, 1
    %p102 = por %p100, %p101
    %p104 = scmp.ne.s32.totalorder %s89, %s103
    %p105 = scmp.eq.s32.totalorder %s16, 0
    %p106 = por %p104, %p105
    %s107 = ssub.s32 %s10, %s17
    %p108 = scmp.eq.s32.totalorder %s107, 0
    %s110 = sadd.s32 %s109, 1
    %s111 = scalar_select %p108, %s109, %s110
    %p114 = pneg %p108
    %p115 = scmp.eq.s32.totalorder %s10, 1
    %p116 = por %p114, %p115
    %p117 = scmp.ne.s32.totalorder %s109, %s112
    %p118 = scmp.eq.s32.totalorder %s10, 0
    %p119 = por %p117, %p118
    %p120 = scmp.ne.s32.totalorder %s109, %s112
    %p121 = scmp.eq.s32.totalorder %s15, 1
    %p122 = por %p120, %p121
    %p123 = scmp.ne.s32.totalorder %s112, %s113
    %p124 = scmp.eq.s32.totalorder %s15, 0
    %p125 = por %p123, %p124
    %p126 = scmp.ne.s32.totalorder %s112, %s113
    %p127 = scmp.eq.s32.totalorder %s16, 1
    %p128 = por %p126, %p127
    %p130 = scmp.ne.s32.totalorder %s113, %s129
    %p131 = scmp.eq.s32.totalorder %s16, 0
    %p132 = por %p130, %p131
    %p133 = scmp.le.s32.totalorder 1, %s10
    %p134 = scmp.lt.s32.totalorder %s10, 3
    %p135 = pnand %p133, %p134
    %p136 = pneg %p135
    // Predicated region
    $region9: #{_lambda_.8} parent=5 // pred_check
      _
    $region10: #{_lambda_.8} parent=5 // pred_check_branch
      %138 = sbr.rel (%p135) target = $region12
    $region11: #{_lambda_.8} parent=5 // pred_region
      %s139 = ssub.s32 %s10, 1
      // Predicated region
      $region13: #{_lambda_.8} parent=11 // pred_check
        %p140 = pneg %p57
      $region14: #{_lambda_.8} parent=11 // pred_check_branch
        %142 = sbr.rel (%p140) target = $region16
      $region15: #{_lambda_.8} parent=11 // pred_region
        _
      $region16: #{_lambda_.8} parent=11 // pred_fallthru
        _
      // Predicated region
      $region17: #{_lambda_.8} parent=11 // pred_check
        %p143 = pneg %p78
      $region18: #{_lambda_.8} parent=11 // pred_check_branch
        %145 = sbr.rel (%p143) target = $region20
      $region19: #{_lambda_.8} parent=11 // pred_region
        _
      $region20: #{_lambda_.8} parent=11 // pred_fallthru
        _
      // Predicated region
      $region21: #{_lambda_.8} parent=11 // pred_check
        %p146 = pneg %p99
      $region22: #{_lambda_.8} parent=11 // pred_check_branch
        %148 = sbr.rel (%p146) target = $region24
      $region23: #{_lambda_.8} parent=11 // pred_region
        _
      $region24: #{_lambda_.8} parent=11 // pred_fallthru
        _
    $region12: #{_lambda_.8} parent=5 // pred_fallthru
      _
    %p149 = scmp.lt.s32.totalorder %s10, 2
    // Predicated region
    $region25: #{_lambda_.8} parent=5 // pred_check
      %p150 = pneg %p149
    $region26: #{_lambda_.8} parent=5 // pred_check_branch
      %152 = sbr.rel (%p150) target = $region28
    $region27: #{_lambda_.8} parent=5 // pred_region
      // Predicated region
      $region29: #{_lambda_.8} parent=27 // pred_check
        %p153 = pneg %p30
      $region30: #{_lambda_.8} parent=27 // pred_check_branch
        %155 = sbr.rel (%p153) target = $region32
      $region31: #{_lambda_.8} parent=27 // pred_region
        %s156 = smul.u32 32, %s10
        %p157 = scmp.lt.s32.totalorder %s156, 63
        %s158 = scalar_select %p157, %s156, 63
        %s159 = smul.addr %s158, 2
        %s160 = smul.addr %s159, 4
        %s161 = scalar_lea.vmem %s0, %s160
        %s162 = smul.u32 32, %s10
      $region32: #{_lambda_.8} parent=27 // pred_fallthru
        _
    $region28: #{_lambda_.8} parent=5 // pred_fallthru
      _
    %p163 = scmp.le.s32.totalorder 1, %s10
    %p164 = scmp.lt.s32.totalorder %s10, 3
    %p165 = pnand %p163, %p164
    %p166 = pneg %p165
    // Predicated region
    $region33: #{_lambda_.8} parent=5 // pred_check
      _
    $region34: #{_lambda_.8} parent=5 // pred_check_branch
      %168 = sbr.rel (%p165) target = $region36
    $region35: #{_lambda_.8} parent=5 // pred_region
      %s169 = ssub.s32 %s10, 1
      %s170 = smul.u32 32, %s15
      %p171 = scmp.lt.s32.totalorder %s170, 63
      %s172 = scalar_select %p171, %s170, 63
      %s173 = smul.addr %s172, 2
      %s174 = smul.addr %s173, 4
      %s175 = scalar_lea.vmem %s0, %s174
      %p176 = pneg %p36
      %p177 = pneg %p33
      %p178 = pneg %p57
      %p179 = pneg %p54
      %p180 = pneg %p78
      %p181 = pneg %p75
      %p182 = pneg %p99
      %p183 = pneg %p96
      %p184 = pneg %p125
      %p185 = pneg %p122
      %s186 = smul.u32 32, %s15
      %p187 = scmp.lt.s32.totalorder %s186, 63
      %s188 = scalar_select %p187, %s186, 63
      %s189 = smul.addr %s188, 8
      %s190 = scalar_lea.vmem %s4, %s189
      %s191 = smul.u32 32, %s15
      %p192 = scmp.lt.s32.totalorder %s191, 63
      %s193 = scalar_select %p192, %s191, 63
      %s194 = smul.addr %s193, 2
      %s195 = smul.addr %s194, 4
      %s196 = scalar_lea.vmem %s0, %s195
      %s197 = smul.u32 32, %s15
      %s198 = smul.u32 32, %s15
      %p199 = scmp.lt.s32.totalorder %s198, 63
      %s200 = scalar_select %p199, %s198, 63
      %s201 = smul.addr %s200, 8
      %s202 = scalar_lea.vmem %s4, %s201
      %s203 = smul.u32 32, %s15
      %v205 = vld [vmem:[%s196] sm:$0xff]
      %v206 = vld [vmem:[%s196 + $0x8] sm:$0xff]
      %v207 = vld [vmem:[%s196 + $0x10] sm:$0xff]
      %v208 = vld [vmem:[%s196 + $0x18] sm:$0xff]
      %v209 = vld [vmem:[%s196 + $0x20] sm:$0xff]
      %v210 = vld [vmem:[%s196 + $0x28] sm:$0xff]
      %v211 = vld [vmem:[%s196 + $0x30] sm:$0xff]
      %v212 = vld [vmem:[%s196 + $0x38] sm:$0xff]
      %v213 = vld [vmem:[%s196 + $0x40] sm:$0xff]
      %v214 = vld [vmem:[%s196 + $0x48] sm:$0xff]
      %v215 = vld [vmem:[%s196 + $0x50] sm:$0xff]
      %v216 = vld [vmem:[%s196 + $0x58] sm:$0xff]
      %v217 = vld [vmem:[%s196 + $0x60] sm:$0xff]
      %v218 = vld [vmem:[%s196 + $0x68] sm:$0xff]
      %v219 = vld [vmem:[%s196 + $0x70] sm:$0xff]
      %v220 = vld [vmem:[%s196 + $0x78] sm:$0xff]
      %v221 = vld [vmem:[%s196 + $0x80] sm:$0xff]
      %v222 = vld [vmem:[%s196 + $0x88] sm:$0xff]
      %v223 = vld [vmem:[%s196 + $0x90] sm:$0xff]
      %v224 = vld [vmem:[%s196 + $0x98] sm:$0xff]
      %v225 = vld [vmem:[%s196 + $0xa0] sm:$0xff]
      %v226 = vld [vmem:[%s196 + $0xa8] sm:$0xff]
      %v227 = vld [vmem:[%s196 + $0xb0] sm:$0xff]
      %v228 = vld [vmem:[%s196 + $0xb8] sm:$0xff]
      %v229 = vld [vmem:[%s196 + $0xc0] sm:$0xff]
      %v230 = vld [vmem:[%s196 + $0xc8] sm:$0xff]
      %v231 = vld [vmem:[%s196 + $0xd0] sm:$0xff]
      %v232 = vld [vmem:[%s196 + $0xd8] sm:$0xff]
      %v233 = vld [vmem:[%s196 + $0xe0] sm:$0xff]
      %v234 = vld [vmem:[%s196 + $0xe8] sm:$0xff]
      %v235 = vld [vmem:[%s196 + $0xf0] sm:$0xff]
      %v236 = vld [vmem:[%s196 + $0xf8] sm:$0xff]
      %v237 = vld [vmem:[%s1] sm:$0xf]
      %v238 = vld [vmem:[%s1 + $0x4] sm:$0xf]
      %v239 = vld [vmem:[%s1 + $0x8] sm:$0xf]
      %v240 = vld [vmem:[%s1 + $0xc] sm:$0xf]
      %v241 = vld [vmem:[%s1 + $0x10] sm:$0xf]
      %v242 = vld [vmem:[%s1 + $0x14] sm:$0xf]
      %v243 = vld [vmem:[%s1 + $0x18] sm:$0xf]
      %v244 = vld [vmem:[%s1 + $0x1c] sm:$0xf]
      %v245 = vld [vmem:[%s1 + $0x20] sm:$0xf]
      %v246 = vld [vmem:[%s1 + $0x24] sm:$0xf]
      %v247 = vld [vmem:[%s1 + $0x28] sm:$0xf]
      %v248 = vld [vmem:[%s1 + $0x2c] sm:$0xf]
      %v249 = vld [vmem:[%s1 + $0x30] sm:$0xf]
      %v250 = vld [vmem:[%s1 + $0x34] sm:$0xf]
      %v251 = vld [vmem:[%s1 + $0x38] sm:$0xf]
      %v252 = vld [vmem:[%s1 + $0x3c] sm:$0xf]
      %v253 = vld [vmem:[%s1 + $0x40] sm:$0xf]
      %v254 = vld [vmem:[%s1 + $0x44] sm:$0xf]
      %v287 = vunpack.c.l.b16 %v205
      %v288 = vunpack.c.h.b16 %v205
      %v289 = vunpack.c.l.b16 %v206
      %v290 = vunpack.c.h.b16 %v206
      %v291 = vunpack.c.l.b16 %v207
      %v292 = vunpack.c.h.b16 %v207
      %v293 = vunpack.c.l.b16 %v208
      %v294 = vunpack.c.h.b16 %v208
      %v295 = vunpack.c.l.b16 %v209
      %v296 = vunpack.c.h.b16 %v209
      %v297 = vunpack.c.l.b16 %v210
      %v298 = vunpack.c.h.b16 %v210
      %v299 = vunpack.c.l.b16 %v211
      %v300 = vunpack.c.h.b16 %v211
      %v301 = vunpack.c.l.b16 %v212
      %v302 = vunpack.c.h.b16 %v212
      %v303 = vunpack.c.l.b16 %v213
      %v304 = vunpack.c.h.b16 %v213
      %v305 = vunpack.c.l.b16 %v214
      %v306 = vunpack.c.h.b16 %v214
      %v307 = vunpack.c.l.b16 %v215
      %v308 = vunpack.c.h.b16 %v215
      %v309 = vunpack.c.l.b16 %v216
      %v310 = vunpack.c.h.b16 %v216
      %v311 = vunpack.c.l.b16 %v217
      %v312 = vunpack.c.h.b16 %v217
      %v313 = vunpack.c.l.b16 %v218
      %v314 = vunpack.c.h.b16 %v218
      %v315 = vunpack.c.l.b16 %v219
      %v316 = vunpack.c.h.b16 %v219
      %v317 = vunpack.c.l.b16 %v220
      %v318 = vunpack.c.h.b16 %v220
      %v319 = vunpack.c.l.b16 %v221
      %v320 = vunpack.c.h.b16 %v221
      %v321 = vunpack.c.l.b16 %v222
      %v322 = vunpack.c.h.b16 %v222
      %v323 = vunpack.c.l.b16 %v223
      %v324 = vunpack.c.h.b16 %v223
      %v325 = vunpack.c.l.b16 %v224
      %v326 = vunpack.c.h.b16 %v224
      %v327 = vunpack.c.l.b16 %v225
      %v328 = vunpack.c.h.b16 %v225
      %v329 = vunpack.c.l.b16 %v226
      %v330 = vunpack.c.h.b16 %v226
      %v331 = vunpack.c.l.b16 %v227
      %v332 = vunpack.c.h.b16 %v227
      %v333 = vunpack.c.l.b16 %v228
      %v334 = vunpack.c.h.b16 %v228
      %v335 = vunpack.c.l.b16 %v229
      %v336 = vunpack.c.h.b16 %v229
      %v337 = vunpack.c.l.b16 %v230
      %v338 = vunpack.c.h.b16 %v230
      %v339 = vunpack.c.l.b16 %v231
      %v340 = vunpack.c.h.b16 %v231
      %v341 = vunpack.c.l.b16 %v232
      %v342 = vunpack.c.h.b16 %v232
      %v343 = vunpack.c.l.b16 %v233
      %v344 = vunpack.c.h.b16 %v233
      %v345 = vunpack.c.l.b16 %v234
      %v346 = vunpack.c.h.b16 %v234
      %v347 = vunpack.c.l.b16 %v235
      %v348 = vunpack.c.h.b16 %v235
      %v349 = vunpack.c.l.b16 %v236
      %v350 = vunpack.c.h.b16 %v236
      %v351 = vpack.c.b16 %v289, %v287
      %v352 = vpack.c.b16 %v290, %v288
      %v353 = vpack.c.b16 %v293, %v291
      %v354 = vpack.c.b16 %v294, %v292
      %v355 = vpack.c.b16 %v297, %v295
      %v356 = vpack.c.b16 %v298, %v296
      %v357 = vpack.c.b16 %v301, %v299
      %v358 = vpack.c.b16 %v302, %v300
      %v359 = vpack.c.b16 %v305, %v303
      %v360 = vpack.c.b16 %v306, %v304
      %v361 = vpack.c.b16 %v309, %v307
      %v362 = vpack.c.b16 %v310, %v308
      %v363 = vpack.c.b16 %v313, %v311
      %v364 = vpack.c.b16 %v314, %v312
      %v365 = vpack.c.b16 %v317, %v315
      %v366 = vpack.c.b16 %v318, %v316
      %v367 = vpack.c.b16 %v321, %v319
      %v368 = vpack.c.b16 %v322, %v320
      %v369 = vpack.c.b16 %v325, %v323
      %v370 = vpack.c.b16 %v326, %v324
      %v371 = vpack.c.b16 %v329, %v327
      %v372 = vpack.c.b16 %v330, %v328
      %v373 = vpack.c.b16 %v333, %v331
      %v374 = vpack.c.b16 %v334, %v332
      %v375 = vpack.c.b16 %v337, %v335
      %v376 = vpack.c.b16 %v338, %v336
      %v377 = vpack.c.b16 %v341, %v339
      %v378 = vpack.c.b16 %v342, %v340
      %v379 = vpack.c.b16 %v345, %v343
      %v380 = vpack.c.b16 %v346, %v344
      %v381 = vpack.c.b16 %v349, %v347
      %v382 = vpack.c.b16 %v350, %v348
      %v417 = vunpack.c.l.b16 %v237
      %v418 = vunpack.c.l.b16 %v238
      %v419 = vunpack.c.l.b16 %v239
      %v420 = vunpack.c.l.b16 %v240
      %v421 = vunpack.c.l.b16 %v241
      %v422 = vunpack.c.l.b16 %v242
      %v423 = vunpack.c.l.b16 %v243
      %v424 = vunpack.c.l.b16 %v244
      %v425 = vunpack.c.l.b16 %v245
      %v426 = vunpack.c.l.b16 %v246
      %v427 = vunpack.c.l.b16 %v247
      %v428 = vunpack.c.l.b16 %v248
      %v429 = vunpack.c.l.b16 %v249
      %v430 = vunpack.c.l.b16 %v250
      %v431 = vunpack.c.l.b16 %v251
      %v432 = vunpack.c.l.b16 %v252
      %v433 = vunpack.c.l.b16 %v253
      %v434 = vunpack.c.l.b16 %v254
      %v435 = vpack.c.b16 %v418, %v417
      %v436 = vpack.c.b16 %v420, %v419
      %v437 = vpack.c.b16 %v422, %v421
      %v438 = vpack.c.b16 %v424, %v423
      %v439 = vpack.c.b16 %v426, %v425
      %v440 = vpack.c.b16 %v428, %v427
      %v441 = vpack.c.b16 %v430, %v429
      %v442 = vpack.c.b16 %v432, %v431
      %v443 = vpack.c.b16 %v434, %v433
      %vm453 = vcmask 130048
      %v455 = vsel %vm453, %v352, 0
      %v458 = vsel %vm453, %v354, 0
      %v461 = vsel %vm453, %v356, 0
      %v464 = vsel %vm453, %v358, 0
      %v467 = vsel %vm453, %v360, 0
      %v470 = vsel %vm453, %v362, 0
      %v473 = vsel %vm453, %v364, 0
      %v476 = vsel %vm453, %v366, 0
      %v479 = vsel %vm453, %v368, 0
      %v482 = vsel %vm453, %v370, 0
      %v485 = vsel %vm453, %v372, 0
      %v488 = vsel %vm453, %v374, 0
      %v491 = vsel %vm453, %v376, 0
      %v494 = vsel %vm453, %v378, 0
      %v497 = vsel %vm453, %v380, 0
      %v500 = vsel %vm453, %v382, 0
      %502 = vmatprep.subr.bf16.mxu0 0
      %503 = vmatpush1.bf16.msra.mxu0 %v435
      %504 = vmatprep.subr.bf16.mxu0 0
      %505 = vmatpush1.bf16.msra.mxu0 %v436
      %506 = vmatprep.subr.bf16.mxu0 0
      %507 = vmatpush1.bf16.msra.mxu0 %v437
      %508 = vmatprep.subr.bf16.mxu0 0
      %509 = vmatpush1.bf16.msra.mxu0 %v438
      %510 = vmatprep.subr.bf16.mxu0 0
      %511 = vmatpush1.bf16.msra.mxu0 %v439
      %512 = vmatprep.subr.bf16.mxu0 0
      %513 = vmatpush1.bf16.msra.mxu0 %v440
      %514 = vmatprep.subr.bf16.mxu0 0
      %515 = vmatpush1.bf16.msra.mxu0 %v441
      %516 = vmatprep.subr.bf16.mxu0 0
      %517 = vmatpush1.bf16.msra.mxu0 %v442
      %518 = vmatprep.subr.bf16.mxu0 0
      %519 = vmatpush1.bf16.msra.mxu0 %v443
      %520 = vmatprep.subr.bf16.mxu0 0
      %521 = vmatpush1.bf16.msra.mxu0 0
      %522 = vmatprep.subr.bf16.mxu0 0
      %523 = vmatpush1.bf16.msra.mxu0 0
      %524 = vmatprep.subr.bf16.mxu0 0
      %525 = vmatpush1.bf16.msra.mxu0 0
      %526 = vmatprep.subr.bf16.mxu0 0
      %527 = vmatpush1.bf16.msra.mxu0 0
      %528 = vmatprep.subr.bf16.mxu0 0
      %529 = vmatpush1.bf16.msra.mxu0 0
      %530 = vmatprep.subr.bf16.mxu0 0
      %531 = vmatpush1.bf16.msra.mxu0 0
      %532 = vmatprep.subr.bf16.mxu0 0
      %533 = vmatpush1.bf16.msra.mxu0 0
      %534 = vmatprep.mubr.bf16.mxu0 %v455
      %535 = vmatmul.mubr.bf16.gmra.mrb[0].mxu0 %v351
      %v536 = vpop.f32.mrb[0].mxu0
      %v537 = vadd.f32 0.0, %v536
      %v538 = vpop.f32.mrb[0].mxu0
      %v539 = vpop.f32.mrb[0].mxu0
      %v540 = vadd.f32 0.0, %v539
      %v541 = vpop.f32.mrb[0].mxu0
      %542 = vmatprep.mubr.bf16.mxu0 %v458
      %543 = vmatmul.mubr.bf16.gmra.mrb[0].mxu0 %v353
      %v544 = vpop.f32.mrb[0].mxu0
      %v545 = vadd.f32 0.0, %v544
      %v546 = vpop.f32.mrb[0].mxu0
      %v547 = vpop.f32.mrb[0].mxu0
      %v548 = vadd.f32 0.0, %v547
      %v549 = vpop.f32.mrb[0].mxu0
      %550 = vmatprep.mubr.bf16.mxu0 %v461
      %551 = vmatmul.mubr.bf16.gmra.mrb[0].mxu0 %v355
      %v552 = vpop.f32.mrb[0].mxu0
      %v553 = vadd.f32 0.0, %v552
      %v554 = vpop.f32.mrb[0].mxu0
      %v555 = vpop.f32.mrb[0].mxu0
      %v556 = vadd.f32 0.0, %v555
      %v557 = vpop.f32.mrb[0].mxu0
      %558 = vmatprep.mubr.bf16.mxu0 %v464
      %559 = vmatmul.mubr.bf16.gmra.mrb[0].mxu0 %v357
      %v560 = vpop.f32.mrb[0].mxu0
      %v561 = vadd.f32 0.0, %v560
      %v562 = vpop.f32.mrb[0].mxu0
      %v563 = vpop.f32.mrb[0].mxu0
      %v564 = vadd.f32 0.0, %v563
      %v565 = vpop.f32.mrb[0].mxu0
      %566 = vmatprep.mubr.bf16.mxu0 %v467
      %567 = vmatmul.mubr.bf16.gmra.mrb[0].mxu0 %v359
      %v568 = vpop.f32.mrb[0].mxu0
      %v569 = vadd.f32 0.0, %v568
      %v570 = vpop.f32.mrb[0].mxu0
      %v571 = vpop.f32.mrb[0].mxu0
      %v572 = vadd.f32 0.0, %v571
      %v573 = vpop.f32.mrb[0].mxu0
      %574 = vmatprep.mubr.bf16.mxu0 %v470
      %575 = vmatmul.mubr.bf16.gmra.mrb[0].mxu0 %v361
      %v576 = vpop.f32.mrb[0].mxu0
      %v577 = vadd.f32 0.0, %v576
      %v578 = vpop.f32.mrb[0].mxu0
      %v579 = vpop.f32.mrb[0].mxu0
      %v580 = vadd.f32 0.0, %v579
      %v581 = vpop.f32.mrb[0].mxu0
      %582 = vmatprep.mubr.bf16.mxu0 %v473
      %583 = vmatmul.mubr.bf16.gmra.mrb[0].mxu0 %v363
      %v584 = vpop.f32.mrb[0].mxu0
      %v585 = vadd.f32 0.0, %v584
      %v586 = vpop.f32.mrb[0].mxu0
      %v587 = vpop.f32.mrb[0].mxu0
      %v588 = vadd.f32 0.0, %v587
      %v589 = vpop.f32.mrb[0].mxu0
      %590 = vmatprep.mubr.bf16.mxu0 %v476
      %591 = vmatmul.mubr.bf16.gmra.mrb[0].mxu0 %v365
      %v592 = vpop.f32.mrb[0].mxu0
      %v593 = vadd.f32 0.0, %v592
      %v594 = vpop.f32.mrb[0].mxu0
      %v595 = vpop.f32.mrb[0].mxu0
      %v596 = vadd.f32 0.0, %v595
      %v597 = vpop.f32.mrb[0].mxu0
      %598 = vmatprep.mubr.bf16.mxu0 %v479
      %599 = vmatmul.mubr.bf16.gmra.mrb[0].mxu0 %v367
      %v600 = vpop.f32.mrb[0].mxu0
      %v601 = vadd.f32 0.0, %v600
      %v602 = vpop.f32.mrb[0].mxu0
      %v603 = vpop.f32.mrb[0].mxu0
      %v604 = vadd.f32 0.0, %v603
      %v605 = vpop.f32.mrb[0].mxu0
      %606 = vmatprep.mubr.bf16.mxu0 %v482
      %607 = vmatmul.mubr.bf16.gmra.mrb[0].mxu0 %v369
      %v608 = vpop.f32.mrb[0].mxu0
      %v609 = vadd.f32 0.0, %v608
      %v610 = vpop.f32.mrb[0].mxu0
      %v611 = vpop.f32.mrb[0].mxu0
      %v612 = vadd.f32 0.0, %v611
      %v613 = vpop.f32.mrb[0].mxu0
      %614 = vmatprep.mubr.bf16.mxu0 %v485
      %615 = vmatmul.mubr.bf16.gmra.mrb[0].mxu0 %v371
      %v616 = vpop.f32.mrb[0].mxu0
      %v617 = vadd.f32 0.0, %v616
      %v618 = vpop.f32.mrb[0].mxu0
      %v619 = vpop.f32.mrb[0].mxu0
      %v620 = vadd.f32 0.0, %v619
      %v621 = vpop.f32.mrb[0].mxu0
      %622 = vmatprep.mubr.bf16.mxu0 %v488
      %623 = vmatmul.mubr.bf16.gmra.mrb[0].mxu0 %v373
      %v624 = vpop.f32.mrb[0].mxu0
      %v625 = vadd.f32 0.0, %v624
      %v626 = vpop.f32.mrb[0].mxu0
      %v627 = vpop.f32.mrb[0].mxu0
      %v628 = vadd.f32 0.0, %v627
      %v629 = vpop.f32.mrb[0].mxu0
      %630 = vmatprep.mubr.bf16.mxu0 %v491
      %631 = vmatmul.mubr.bf16.gmra.mrb[0].mxu0 %v375
      %v632 = vpop.f32.mrb[0].mxu0
      %v633 = vadd.f32 0.0, %v632
      %v634 = vpop.f32.mrb[0].mxu0
      %v635 = vpop.f32.mrb[0].mxu0
      %v636 = vadd.f32 0.0, %v635
      %v637 = vpop.f32.mrb[0].mxu0
      %638 = vmatprep.mubr.bf16.mxu0 %v494
      %639 = vmatmul.mubr.bf16.gmra.mrb[0].mxu0 %v377
      %v640 = vpop.f32.mrb[0].mxu0
      %v641 = vadd.f32 0.0, %v640
      %v642 = vpop.f32.mrb[0].mxu0
      %v643 = vpop.f32.mrb[0].mxu0
      %v644 = vadd.f32 0.0, %v643
      %v645 = vpop.f32.mrb[0].mxu0
      %646 = vmatprep.mubr.bf16.mxu0 %v497
      %647 = vmatmul.mubr.bf16.gmra.mrb[0].mxu0 %v379
      %v648 = vpop.f32.mrb[0].mxu0
      %v649 = vadd.f32 0.0, %v648
      %v650 = vpop.f32.mrb[0].mxu0
      %v651 = vpop.f32.mrb[0].mxu0
      %v652 = vadd.f32 0.0, %v651
      %v653 = vpop.f32.mrb[0].mxu0
      %654 = vmatprep.mubr.bf16.mxu0 %v500
      %655 = vmatmul.mubr.bf16.gmra.mrb[0].mxu0 %v381
      %v656 = vpop.f32.mrb[0].mxu0
      %v657 = vadd.f32 0.0, %v656
      %v658 = vpop.f32.mrb[0].mxu0
      %v659 = vpop.f32.mrb[0].mxu0
      %v660 = vadd.f32 0.0, %v659
      %v661 = vpop.f32.mrb[0].mxu0
      %662 = vdwg.mxu0
      %v663 = vld [vmem:[%s2] sm:$0x1]
      %v665 = vlaneseq
      %v666 = vshrl.u32 %v665, 7
      %v667 = vsub.s32 0, %v666
      %v668 = vrot.slane %v663, %v667
      %v670 = vmul.f32 %v537, %v668
      %v671 = vmul.f32 %v540, %v668
      %v672 = vmul.f32 %v545, %v668
      %v673 = vmul.f32 %v548, %v668
      %v674 = vmul.f32 %v553, %v668
      %v675 = vmul.f32 %v556, %v668
      %v676 = vmul.f32 %v561, %v668
      %v677 = vmul.f32 %v564, %v668
      %v678 = vmul.f32 %v569, %v668
      %v679 = vmul.f32 %v572, %v668
      %v680 = vmul.f32 %v577, %v668
      %v681 = vmul.f32 %v580, %v668
      %v682 = vmul.f32 %v585, %v668
      %v683 = vmul.f32 %v588, %v668
      %v684 = vmul.f32 %v593, %v668
      %v685 = vmul.f32 %v596, %v668
      %v686 = vmul.f32 %v601, %v668
      %v687 = vmul.f32 %v604, %v668
      %v688 = vmul.f32 %v609, %v668
      %v689 = vmul.f32 %v612, %v668
      %v690 = vmul.f32 %v617, %v668
      %v691 = vmul.f32 %v620, %v668
      %v692 = vmul.f32 %v625, %v668
      %v693 = vmul.f32 %v628, %v668
      %v694 = vmul.f32 %v633, %v668
      %v695 = vmul.f32 %v636, %v668
      %v696 = vmul.f32 %v641, %v668
      %v697 = vmul.f32 %v644, %v668
      %v698 = vmul.f32 %v649, %v668
      %v699 = vmul.f32 %v652, %v668
      %v700 = vmul.f32 %v657, %v668
      %v701 = vmul.f32 %v660, %v668
      %v702 = vld [vmem:[%s3] sm:$0x1]
      %v704 = vlaneseq
      %v705 = vshrl.u32 %v704, 7
      %v706 = vsub.s32 0, %v705
      %v707 = vrot.slane %v702, %v706
      %v709 = vadd.f32 %v670, %v707
      %v710 = vadd.f32 %v671, %v707
      %v711 = vadd.f32 %v672, %v707
      %v712 = vadd.f32 %v673, %v707
      %v713 = vadd.f32 %v674, %v707
      %v714 = vadd.f32 %v675, %v707
      %v715 = vadd.f32 %v676, %v707
      %v716 = vadd.f32 %v677, %v707
      %v717 = vadd.f32 %v678, %v707
      %v718 = vadd.f32 %v679, %v707
      %v719 = vadd.f32 %v680, %v707
      %v720 = vadd.f32 %v681, %v707
      %v721 = vadd.f32 %v682, %v707
      %v722 = vadd.f32 %v683, %v707
      %v723 = vadd.f32 %v684, %v707
      %v724 = vadd.f32 %v685, %v707
      %v725 = vadd.f32 %v686, %v707
      %v726 = vadd.f32 %v687, %v707
      %v727 = vadd.f32 %v688, %v707
      %v728 = vadd.f32 %v689, %v707
      %v729 = vadd.f32 %v690, %v707
      %v730 = vadd.f32 %v691, %v707
      %v731 = vadd.f32 %v692, %v707
      %v732 = vadd.f32 %v693, %v707
      %v733 = vadd.f32 %v694, %v707
      %v734 = vadd.f32 %v695, %v707
      %v735 = vadd.f32 %v696, %v707
      %v736 = vadd.f32 %v697, %v707
      %v737 = vadd.f32 %v698, %v707
      %v738 = vadd.f32 %v699, %v707
      %v739 = vadd.f32 %v700, %v707
      %v740 = vadd.f32 %v701, %v707
      %v741 = vmax.f32 %v709, 0.0
      %v742 = vmax.f32 %v710, 0.0
      %v743 = vmax.f32 %v711, 0.0
      %v744 = vmax.f32 %v712, 0.0
      %v745 = vmax.f32 %v713, 0.0
      %v746 = vmax.f32 %v714, 0.0
      %v747 = vmax.f32 %v715, 0.0
      %v748 = vmax.f32 %v716, 0.0
      %v749 = vmax.f32 %v717, 0.0
      %v750 = vmax.f32 %v718, 0.0
      %v751 = vmax.f32 %v719, 0.0
      %v752 = vmax.f32 %v720, 0.0
      %v753 = vmax.f32 %v721, 0.0
      %v754 = vmax.f32 %v722, 0.0
      %v755 = vmax.f32 %v723, 0.0
      %v756 = vmax.f32 %v724, 0.0
      %v757 = vmax.f32 %v725, 0.0
      %v758 = vmax.f32 %v726, 0.0
      %v759 = vmax.f32 %v727, 0.0
      %v760 = vmax.f32 %v728, 0.0
      %v761 = vmax.f32 %v729, 0.0
      %v762 = vmax.f32 %v730, 0.0
      %v763 = vmax.f32 %v731, 0.0
      %v764 = vmax.f32 %v732, 0.0
      %v765 = vmax.f32 %v733, 0.0
      %v766 = vmax.f32 %v734, 0.0
      %v767 = vmax.f32 %v735, 0.0
      %v768 = vmax.f32 %v736, 0.0
      %v769 = vmax.f32 %v737, 0.0
      %v770 = vmax.f32 %v738, 0.0
      %v771 = vmax.f32 %v739, 0.0
      %v772 = vmax.f32 %v740, 0.0
      %773 = vst.msk [vmem:[%s202] sm:$0xff] %vm453, %v741
      %774 = vst.msk [vmem:[%s202 + $0x8] sm:$0xff] %vm453, %v742
      %775 = vst.msk [vmem:[%s202 + $0x10] sm:$0xff] %vm453, %v743
      %776 = vst.msk [vmem:[%s202 + $0x18] sm:$0xff] %vm453, %v744
      %777 = vst.msk [vmem:[%s202 + $0x20] sm:$0xff] %vm453, %v745
      %778 = vst.msk [vmem:[%s202 + $0x28] sm:$0xff] %vm453, %v746
      %779 = vst.msk [vmem:[%s202 + $0x30] sm:$0xff] %vm453, %v747
      %780 = vst.msk [vmem:[%s202 + $0x38] sm:$0xff] %vm453, %v748
      %781 = vst.msk [vmem:[%s202 + $0x40] sm:$0xff] %vm453, %v749
      %782 = vst.msk [vmem:[%s202 + $0x48] sm:$0xff] %vm453, %v750
      %783 = vst.msk [vmem:[%s202 + $0x50] sm:$0xff] %vm453, %v751
      %784 = vst.msk [vmem:[%s202 + $0x58] sm:$0xff] %vm453, %v752
      %785 = vst.msk [vmem:[%s202 + $0x60] sm:$0xff] %vm453, %v753
      %786 = vst.msk [vmem:[%s202 + $0x68] sm:$0xff] %vm453, %v754
      %787 = vst.msk [vmem:[%s202 + $0x70] sm:$0xff] %vm453, %v755
      %788 = vst.msk [vmem:[%s202 + $0x78] sm:$0xff] %vm453, %v756
      %789 = vst.msk [vmem:[%s202 + $0x80] sm:$0xff] %vm453, %v757
      %790 = vst.msk [vmem:[%s202 + $0x88] sm:$0xff] %vm453, %v758
      %791 = vst.msk [vmem:[%s202 + $0x90] sm:$0xff] %vm453, %v759
      %792 = vst.msk [vmem:[%s202 + $0x98] sm:$0xff] %vm453, %v760
      %793 = vst.msk [vmem:[%s202 + $0xa0] sm:$0xff] %vm453, %v761
      %794 = vst.msk [vmem:[%s202 + $0xa8] sm:$0xff] %vm453, %v762
      %795 = vst.msk [vmem:[%s202 + $0xb0] sm:$0xff] %vm453, %v763
      %796 = vst.msk [vmem:[%s202 + $0xb8] sm:$0xff] %vm453, %v764
      %797 = vst.msk [vmem:[%s202 + $0xc0] sm:$0xff] %vm453, %v765
      %798 = vst.msk [vmem:[%s202 + $0xc8] sm:$0xff] %vm453, %v766
      %799 = vst.msk [vmem:[%s202 + $0xd0] sm:$0xff] %vm453, %v767
      %800 = vst.msk [vmem:[%s202 + $0xd8] sm:$0xff] %vm453, %v768
      %801 = vst.msk [vmem:[%s202 + $0xe0] sm:$0xff] %vm453, %v769
      %802 = vst.msk [vmem:[%s202 + $0xe8] sm:$0xff] %vm453, %v770
      %803 = vst.msk [vmem:[%s202 + $0xf0] sm:$0xff] %vm453, %v771
      %804 = vst.msk [vmem:[%s202 + $0xf8] sm:$0xff] %vm453, %v772
      %s805 = smul.u32 32, %s15
      %p806 = scmp.lt.s32.totalorder %s805, 63
      %s807 = scalar_select %p806, %s805, 63
      %s808 = smul.addr %s807, 8
      %s809 = scalar_lea.vmem %s4, %s808
      // Predicated region
      $region37: #{_lambda_.8} parent=35 // pred_check
        %p810 = pneg %p122
      $region38: #{_lambda_.8} parent=35 // pred_check_branch
        %812 = sbr.rel (%p810) target = $region40
      $region39: #{_lambda_.8} parent=35 // pred_region
        %s813 = smul.u32 32, %s15
      $region40: #{_lambda_.8} parent=35 // pred_fallthru
        _
    $region36: #{_lambda_.8} parent=5 // pred_fallthru
      _
    %p814 = scmp.le.s32.totalorder 2, %s10
    // Predicated region
    $region41: #{_lambda_.8} parent=5 // pred_check
      %p815 = pneg %p814
    $region42: #{_lambda_.8} parent=5 // pred_check_branch
      %817 = sbr.rel (%p815) target = $region44
    $region43: #{_lambda_.8} parent=5 // pred_region
      %s818 = ssub.s32 %s10, 2
      // Predicated region
      $region45: #{_lambda_.8} parent=43 // pred_check
        %p819 = pneg %p128
      $region46: #{_lambda_.8} parent=43 // pred_check_branch
        %821 = sbr.rel (%p819) target = $region48
      $region47: #{_lambda_.8} parent=43 // pred_region
        %s822 = smul.u32 32, %s16
        %p823 = scmp.lt.s32.totalorder %s822, 63
        %s824 = scalar_select %p823, %s822, 63
        %s825 = smul.addr %s824, 8
        %s826 = scalar_lea.vmem %s4, %s825
      $region48: #{_lambda_.8} parent=43 // pred_fallthru
        _
    $region44: #{_lambda_.8} parent=5 // pred_fallthru
      _
  $region6: #{_lambda_.8} parent=0 // loop_footer
    %s14 = sadd.s32 1, %s10
  $region7: #{_lambda_.8} parent=0 // loop_footer_branch
    %9 = sbr.rel target = $region3
  $region8: #{_lambda_.8} parent=0 // loop_exit
    _

// kernel: _lambda_.9
$region0: #{_lambda_.9}
  #allocation0 [shape = 'u32[]', space=smem, size = 0x4, offset = 0x4, fixed_abs, tag = 'smem constant byte address 0x4 - core index']
  #allocation1 [shape = 'u32[144,128]{1,0:T(1,128)}', space=vmem, size = 0x12000, scoped, tag = 'internal scratch']
  %s0 = inlined_call_operand.vmem [shape: bf16[512,144], index: 0, kind: input, shape index: {}]
  %s1 = inlined_call_operand.vmem [shape: bf16[144,16], index: 1, kind: input, shape index: {}]
  %s2 = inlined_call_operand.vmem [shape: f32[1,16], index: 2, kind: input, shape index: {}]
  %s3 = inlined_call_operand.vmem [shape: f32[1,16], index: 3, kind: input, shape index: {}]
  %s4 = inlined_call_operand.vmem [shape: f32[512,16], index: 4, kind: input, shape index: {}]
  %s5 = inlined_call_operand.vmem [shape: f32[512,16], index: 5, kind: output, shape index: {}]
  %s6 = sld [smem:[#allocation0]]
  $region53: #{_lambda_.9} parent=0
    _
  %s8 = ssub.s32 1, %s6
  %s9 = scalar_select 0, %s8, %s6
  loop: start=0, step=1, limit=4
  $region2: #{_lambda_.9} parent=0 // loop_pre_header
    _
  $region3: #{_lambda_.9} parent=0 // loop_header
    %s11 = sphi 0, %s15
    %p12 = scmp.ge.s32.totalorder %s11, 4
    %s21 = sphi 0, %s23
    %s24 = sphi 0, %s21
    %s25 = sphi 0, %s24
    %s41 = sphi 0, %s25
    %s45 = sphi 0, %s45
    %s47 = sphi 0, %s45
    %s48 = sphi 0, %s47
    %s62 = sphi 0, %s48
    %s66 = sphi 0, %s66
    %s68 = sphi 0, %s66
    %s69 = sphi 0, %s68
    %s83 = sphi 0, %s69
    %s87 = sphi 0, %s87
    %s89 = sphi 0, %s87
    %s90 = sphi 0, %s89
    %s104 = sphi 0, %s90
    %s110 = sphi 0, %s112
    %s113 = sphi 0, %s110
    %s114 = sphi 0, %s113
    %s130 = sphi 0, %s114
    %s136 = sphi 0, %s138
    %s139 = sphi 0, %s136
    %s140 = sphi 0, %s139
    %s156 = sphi 0, %s140
  $region4: #{_lambda_.9} parent=0 // loop_header_branch
    %14 = sbr.rel (%p12) target = $region8
  $region5: #{_lambda_.9} parent=0 // loop_body
    %s16 = ssub.s32 %s11, 1
    %s17 = ssub.s32 %s11, 2
    %s18 = sadd.s32 %s11, 1
    %s19 = ssub.s32 %s11, %s18
    %p20 = scmp.eq.s32.totalorder %s19, 0
    %s22 = sadd.s32 %s21, 1
    %s23 = scalar_select %p20, %s21, %s22
    %p26 = pneg %p20
    %p27 = scmp.eq.s32.totalorder %s11, 1
    %p28 = por %p26, %p27
    %p29 = scmp.ne.s32.totalorder %s21, %s24
    %p30 = scmp.eq.s32.totalorder %s11, 0
    %p31 = por %p29, %p30
    %p32 = scmp.ne.s32.totalorder %s21, %s24
    %p33 = scmp.eq.s32.totalorder %s16, 1
    %p34 = por %p32, %p33
    %p35 = scmp.ne.s32.totalorder %s24, %s25
    %p36 = scmp.eq.s32.totalorder %s16, 0
    %p37 = por %p35, %p36
    %p38 = scmp.ne.s32.totalorder %s24, %s25
    %p39 = scmp.eq.s32.totalorder %s17, 1
    %p40 = por %p38, %p39
    %p42 = scmp.ne.s32.totalorder %s25, %s41
    %p43 = scmp.eq.s32.totalorder %s17, 0
    %p44 = por %p42, %p43
    %s46 = sadd.s32 %s45, 1
    %p49 = scmp.eq.s32.totalorder %s11, 1
    %p50 = scmp.ne.s32.totalorder %s45, %s47
    %p51 = scmp.eq.s32.totalorder %s11, 0
    %p52 = por %p50, %p51
    %p53 = scmp.ne.s32.totalorder %s45, %s47
    %p54 = scmp.eq.s32.totalorder %s16, 1
    %p55 = por %p53, %p54
    %p56 = scmp.ne.s32.totalorder %s47, %s48
    %p57 = scmp.eq.s32.totalorder %s16, 0
    %p58 = por %p56, %p57
    %p59 = scmp.ne.s32.totalorder %s47, %s48
    %p60 = scmp.eq.s32.totalorder %s17, 1
    %p61 = por %p59, %p60
    %p63 = scmp.ne.s32.totalorder %s48, %s62
    %p64 = scmp.eq.s32.totalorder %s17, 0
    %p65 = por %p63, %p64
    %s67 = sadd.s32 %s66, 1
    %p70 = scmp.eq.s32.totalorder %s11, 1
    %p71 = scmp.ne.s32.totalorder %s66, %s68
    %p72 = scmp.eq.s32.totalorder %s11, 0
    %p73 = por %p71, %p72
    %p74 = scmp.ne.s32.totalorder %s66, %s68
    %p75 = scmp.eq.s32.totalorder %s16, 1
    %p76 = por %p74, %p75
    %p77 = scmp.ne.s32.totalorder %s68, %s69
    %p78 = scmp.eq.s32.totalorder %s16, 0
    %p79 = por %p77, %p78
    %p80 = scmp.ne.s32.totalorder %s68, %s69
    %p81 = scmp.eq.s32.totalorder %s17, 1
    %p82 = por %p80, %p81
    %p84 = scmp.ne.s32.totalorder %s69, %s83
    %p85 = scmp.eq.s32.totalorder %s17, 0
    %p86 = por %p84, %p85
    %s88 = sadd.s32 %s87, 1
    %p91 = scmp.eq.s32.totalorder %s11, 1
    %p92 = scmp.ne.s32.totalorder %s87, %s89
    %p93 = scmp.eq.s32.totalorder %s11, 0
    %p94 = por %p92, %p93
    %p95 = scmp.ne.s32.totalorder %s87, %s89
    %p96 = scmp.eq.s32.totalorder %s16, 1
    %p97 = por %p95, %p96
    %p98 = scmp.ne.s32.totalorder %s89, %s90
    %p99 = scmp.eq.s32.totalorder %s16, 0
    %p100 = por %p98, %p99
    %p101 = scmp.ne.s32.totalorder %s89, %s90
    %p102 = scmp.eq.s32.totalorder %s17, 1
    %p103 = por %p101, %p102
    %p105 = scmp.ne.s32.totalorder %s90, %s104
    %p106 = scmp.eq.s32.totalorder %s17, 0
    %p107 = por %p105, %p106
    %s108 = ssub.s32 %s11, %s18
    %p109 = scmp.eq.s32.totalorder %s108, 0
    %s111 = sadd.s32 %s110, 1
    %s112 = scalar_select %p109, %s110, %s111
    %p115 = pneg %p109
    %p116 = scmp.eq.s32.totalorder %s11, 1
    %p117 = por %p115, %p116
    %p118 = scmp.ne.s32.totalorder %s110, %s113
    %p119 = scmp.eq.s32.totalorder %s11, 0
    %p120 = por %p118, %p119
    %p121 = scmp.ne.s32.totalorder %s110, %s113
    %p122 = scmp.eq.s32.totalorder %s16, 1
    %p123 = por %p121, %p122
    %p124 = scmp.ne.s32.totalorder %s113, %s114
    %p125 = scmp.eq.s32.totalorder %s16, 0
    %p126 = por %p124, %p125
    %p127 = scmp.ne.s32.totalorder %s113, %s114
    %p128 = scmp.eq.s32.totalorder %s17, 1
    %p129 = por %p127, %p128
    %p131 = scmp.ne.s32.totalorder %s114, %s130
    %p132 = scmp.eq.s32.totalorder %s17, 0
    %p133 = por %p131, %p132
    %s134 = ssub.s32 %s11, %s18
    %p135 = scmp.eq.s32.totalorder %s134, 0
    %s137 = sadd.s32 %s136, 1
    %s138 = scalar_select %p135, %s136, %s137
    %p141 = pneg %p135
    %p142 = scmp.eq.s32.totalorder %s11, 1
    %p143 = por %p141, %p142
    %p144 = scmp.ne.s32.totalorder %s136, %s139
    %p145 = scmp.eq.s32.totalorder %s11, 0
    %p146 = por %p144, %p145
    %p147 = scmp.ne.s32.totalorder %s136, %s139
    %p148 = scmp.eq.s32.totalorder %s16, 1
    %p149 = por %p147, %p148
    %p150 = scmp.ne.s32.totalorder %s139, %s140
    %p151 = scmp.eq.s32.totalorder %s16, 0
    %p152 = por %p150, %p151
    %p153 = scmp.ne.s32.totalorder %s139, %s140
    %p154 = scmp.eq.s32.totalorder %s17, 1
    %p155 = por %p153, %p154
    %p157 = scmp.ne.s32.totalorder %s140, %s156
    %p158 = scmp.eq.s32.totalorder %s17, 0
    %p159 = por %p157, %p158
    %p160 = scmp.le.s32.totalorder 1, %s11
    %p161 = scmp.lt.s32.totalorder %s11, 3
    %p162 = pnand %p160, %p161
    %p163 = pneg %p162
    // Predicated region
    $region9: #{_lambda_.9} parent=5 // pred_check
      _
    $region10: #{_lambda_.9} parent=5 // pred_check_branch
      %165 = sbr.rel (%p162) target = $region12
    $region11: #{_lambda_.9} parent=5 // pred_region
      %s166 = ssub.s32 %s11, 1
      // Predicated region
      $region13: #{_lambda_.9} parent=11 // pred_check
        %p167 = pneg %p58
      $region14: #{_lambda_.9} parent=11 // pred_check_branch
        %169 = sbr.rel (%p167) target = $region16
      $region15: #{_lambda_.9} parent=11 // pred_region
        _
      $region16: #{_lambda_.9} parent=11 // pred_fallthru
        _
      // Predicated region
      $region17: #{_lambda_.9} parent=11 // pred_check
        %p170 = pneg %p79
      $region18: #{_lambda_.9} parent=11 // pred_check_branch
        %172 = sbr.rel (%p170) target = $region20
      $region19: #{_lambda_.9} parent=11 // pred_region
        _
      $region20: #{_lambda_.9} parent=11 // pred_fallthru
        _
      // Predicated region
      $region21: #{_lambda_.9} parent=11 // pred_check
        %p173 = pneg %p100
      $region22: #{_lambda_.9} parent=11 // pred_check_branch
        %175 = sbr.rel (%p173) target = $region24
      $region23: #{_lambda_.9} parent=11 // pred_region
        _
      $region24: #{_lambda_.9} parent=11 // pred_fallthru
        _
    $region12: #{_lambda_.9} parent=5 // pred_fallthru
      _
    %p176 = scmp.lt.s32.totalorder %s11, 2
    // Predicated region
    $region25: #{_lambda_.9} parent=5 // pred_check
      %p177 = pneg %p176
    $region26: #{_lambda_.9} parent=5 // pred_check_branch
      %179 = sbr.rel (%p177) target = $region28
    $region27: #{_lambda_.9} parent=5 // pred_region
      // Predicated region
      $region29: #{_lambda_.9} parent=27 // pred_check
        %p180 = pneg %p31
      $region30: #{_lambda_.9} parent=27 // pred_check_branch
        %182 = sbr.rel (%p180) target = $region32
      $region31: #{_lambda_.9} parent=27 // pred_region
        %s183 = smul.u32 32, %s11
        %p184 = scmp.lt.s32.totalorder %s183, 63
        %s185 = scalar_select %p184, %s183, 63
        %s186 = smul.addr %s185, 2
        %s187 = smul.addr %s186, 4
        %s188 = scalar_lea.vmem %s0, %s187
        %s189 = smul.u32 32, %s11
      $region32: #{_lambda_.9} parent=27 // pred_fallthru
        _
      // Predicated region
      $region33: #{_lambda_.9} parent=27 // pred_check
        %p190 = pneg %p120
      $region34: #{_lambda_.9} parent=27 // pred_check_branch
        %192 = sbr.rel (%p190) target = $region36
      $region35: #{_lambda_.9} parent=27 // pred_region
        %s193 = smul.u32 32, %s11
        %p194 = scmp.lt.s32.totalorder %s193, 63
        %s195 = scalar_select %p194, %s193, 63
        %s196 = smul.addr %s195, 8
        %s197 = scalar_lea.vmem %s4, %s196
        %s198 = smul.u32 32, %s11
      $region36: #{_lambda_.9} parent=27 // pred_fallthru
        _
    $region28: #{_lambda_.9} parent=5 // pred_fallthru
      _
    %p199 = scmp.le.s32.totalorder 1, %s11
    %p200 = scmp.lt.s32.totalorder %s11, 3
    %p201 = pnand %p199, %p200
    %p202 = pneg %p201
    // Predicated region
    $region37: #{_lambda_.9} parent=5 // pred_check
      _
    $region38: #{_lambda_.9} parent=5 // pred_check_branch
      %204 = sbr.rel (%p201) target = $region40
    $region39: #{_lambda_.9} parent=5 // pred_region
      %s205 = ssub.s32 %s11, 1
      %s206 = smul.u32 32, %s16
      %p207 = scmp.lt.s32.totalorder %s206, 63
      %s208 = scalar_select %p207, %s206, 63
      %s209 = smul.addr %s208, 2
      %s210 = smul.addr %s209, 4
      %s211 = scalar_lea.vmem %s0, %s210
      %p212 = pneg %p37
      %p213 = pneg %p34
      %p214 = pneg %p58
      %p215 = pneg %p55
      %p216 = pneg %p79
      %p217 = pneg %p76
      %p218 = pneg %p100
      %p219 = pneg %p97
      %s220 = smul.u32 32, %s16
      %p221 = scmp.lt.s32.totalorder %s220, 63
      %s222 = scalar_select %p221, %s220, 63
      %s223 = smul.addr %s222, 8
      %s224 = scalar_lea.vmem %s4, %s223
      %p225 = pneg %p126
      %p226 = pneg %p123
      %p227 = pneg %p152
      %p228 = pneg %p149
      %s229 = smul.u32 32, %s16
      %p230 = scmp.lt.s32.totalorder %s229, 63
      %s231 = scalar_select %p230, %s229, 63
      %s232 = smul.addr %s231, 8
      %s233 = scalar_lea.vmem %s5, %s232
      %s234 = smul.u32 32, %s16
      %p235 = scmp.lt.s32.totalorder %s234, 63
      %s236 = scalar_select %p235, %s234, 63
      %s237 = smul.addr %s236, 2
      %s238 = smul.addr %s237, 4
      %s239 = scalar_lea.vmem %s0, %s238
      %s240 = smul.u32 32, %s16
      %s241 = smul.u32 32, %s16
      %p242 = scmp.lt.s32.totalorder %s241, 63
      %s243 = scalar_select %p242, %s241, 63
      %s244 = smul.addr %s243, 8
      %s245 = scalar_lea.vmem %s4, %s244
      %s246 = smul.u32 32, %s16
      %s247 = smul.u32 32, %s16
      %p248 = scmp.lt.s32.totalorder %s247, 63
      %s249 = scalar_select %p248, %s247, 63
      %s250 = smul.addr %s249, 8
      %s251 = scalar_lea.vmem %s5, %s250
      %s252 = smul.u32 32, %s16
      %v254 = vld [vmem:[%s239] sm:$0xff]
      %v255 = vld [vmem:[%s239 + $0x8] sm:$0xff]
      %v256 = vld [vmem:[%s239 + $0x10] sm:$0xff]
      %v257 = vld [vmem:[%s239 + $0x18] sm:$0xff]
      %v258 = vld [vmem:[%s239 + $0x20] sm:$0xff]
      %v259 = vld [vmem:[%s239 + $0x28] sm:$0xff]
      %v260 = vld [vmem:[%s239 + $0x30] sm:$0xff]
      %v261 = vld [vmem:[%s239 + $0x38] sm:$0xff]
      %v262 = vld [vmem:[%s239 + $0x40] sm:$0xff]
      %v263 = vld [vmem:[%s239 + $0x48] sm:$0xff]
      %v264 = vld [vmem:[%s239 + $0x50] sm:$0xff]
      %v265 = vld [vmem:[%s239 + $0x58] sm:$0xff]
      %v266 = vld [vmem:[%s239 + $0x60] sm:$0xff]
      %v267 = vld [vmem:[%s239 + $0x68] sm:$0xff]
      %v268 = vld [vmem:[%s239 + $0x70] sm:$0xff]
      %v269 = vld [vmem:[%s239 + $0x78] sm:$0xff]
      %v270 = vld [vmem:[%s239 + $0x80] sm:$0xff]
      %v271 = vld [vmem:[%s239 + $0x88] sm:$0xff]
      %v272 = vld [vmem:[%s239 + $0x90] sm:$0xff]
      %v273 = vld [vmem:[%s239 + $0x98] sm:$0xff]
      %v274 = vld [vmem:[%s239 + $0xa0] sm:$0xff]
      %v275 = vld [vmem:[%s239 + $0xa8] sm:$0xff]
      %v276 = vld [vmem:[%s239 + $0xb0] sm:$0xff]
      %v277 = vld [vmem:[%s239 + $0xb8] sm:$0xff]
      %v278 = vld [vmem:[%s239 + $0xc0] sm:$0xff]
      %v279 = vld [vmem:[%s239 + $0xc8] sm:$0xff]
      %v280 = vld [vmem:[%s239 + $0xd0] sm:$0xff]
      %v281 = vld [vmem:[%s239 + $0xd8] sm:$0xff]
      %v282 = vld [vmem:[%s239 + $0xe0] sm:$0xff]
      %v283 = vld [vmem:[%s239 + $0xe8] sm:$0xff]
      %v284 = vld [vmem:[%s239 + $0xf0] sm:$0xff]
      %v285 = vld [vmem:[%s239 + $0xf8] sm:$0xff]
      %v286 = vld [vmem:[%s1] sm:$0xf]
      %v287 = vld [vmem:[%s1 + $0x4] sm:$0xf]
      %v288 = vld [vmem:[%s1 + $0x8] sm:$0xf]
      %v289 = vld [vmem:[%s1 + $0xc] sm:$0xf]
      %v290 = vld [vmem:[%s1 + $0x10] sm:$0xf]
      %v291 = vld [vmem:[%s1 + $0x14] sm:$0xf]
      %v292 = vld [vmem:[%s1 + $0x18] sm:$0xf]
      %v293 = vld [vmem:[%s1 + $0x1c] sm:$0xf]
      %v294 = vld [vmem:[%s1 + $0x20] sm:$0xf]
      %v295 = vld [vmem:[%s1 + $0x24] sm:$0xf]
      %v296 = vld [vmem:[%s1 + $0x28] sm:$0xf]
      %v297 = vld [vmem:[%s1 + $0x2c] sm:$0xf]
      %v298 = vld [vmem:[%s1 + $0x30] sm:$0xf]
      %v299 = vld [vmem:[%s1 + $0x34] sm:$0xf]
      %v300 = vld [vmem:[%s1 + $0x38] sm:$0xf]
      %v301 = vld [vmem:[%s1 + $0x3c] sm:$0xf]
      %v302 = vld [vmem:[%s1 + $0x40] sm:$0xf]
      %v303 = vld [vmem:[%s1 + $0x44] sm:$0xf]
      %v336 = vunpack.c.l.b16 %v254
      %v337 = vunpack.c.h.b16 %v254
      %v338 = vunpack.c.l.b16 %v255
      %v339 = vunpack.c.h.b16 %v255
      %v340 = vunpack.c.l.b16 %v256
      %v341 = vunpack.c.h.b16 %v256
      %v342 = vunpack.c.l.b16 %v257
      %v343 = vunpack.c.h.b16 %v257
      %v344 = vunpack.c.l.b16 %v258
      %v345 = vunpack.c.h.b16 %v258
      %v346 = vunpack.c.l.b16 %v259
      %v347 = vunpack.c.h.b16 %v259
      %v348 = vunpack.c.l.b16 %v260
      %v349 = vunpack.c.h.b16 %v260
      %v350 = vunpack.c.l.b16 %v261
      %v351 = vunpack.c.h.b16 %v261
      %v352 = vunpack.c.l.b16 %v262
      %v353 = vunpack.c.h.b16 %v262
      %v354 = vunpack.c.l.b16 %v263
      %v355 = vunpack.c.h.b16 %v263
      %v356 = vunpack.c.l.b16 %v264
      %v357 = vunpack.c.h.b16 %v264
      %v358 = vunpack.c.l.b16 %v265
      %v359 = vunpack.c.h.b16 %v265
      %v360 = vunpack.c.l.b16 %v266
      %v361 = vunpack.c.h.b16 %v266
      %v362 = vunpack.c.l.b16 %v267
      %v363 = vunpack.c.h.b16 %v267
      %v364 = vunpack.c.l.b16 %v268
      %v365 = vunpack.c.h.b16 %v268
      %v366 = vunpack.c.l.b16 %v269
      %v367 = vunpack.c.h.b16 %v269
      %v368 = vunpack.c.l.b16 %v270
      %v369 = vunpack.c.h.b16 %v270
      %v370 = vunpack.c.l.b16 %v271
      %v371 = vunpack.c.h.b16 %v271
      %v372 = vunpack.c.l.b16 %v272
      %v373 = vunpack.c.h.b16 %v272
      %v374 = vunpack.c.l.b16 %v273
      %v375 = vunpack.c.h.b16 %v273
      %v376 = vunpack.c.l.b16 %v274
      %v377 = vunpack.c.h.b16 %v274
      %v378 = vunpack.c.l.b16 %v275
      %v379 = vunpack.c.h.b16 %v275
      %v380 = vunpack.c.l.b16 %v276
      %v381 = vunpack.c.h.b16 %v276
      %v382 = vunpack.c.l.b16 %v277
      %v383 = vunpack.c.h.b16 %v277
      %v384 = vunpack.c.l.b16 %v278
      %v385 = vunpack.c.h.b16 %v278
      %v386 = vunpack.c.l.b16 %v279
      %v387 = vunpack.c.h.b16 %v279
      %v388 = vunpack.c.l.b16 %v280
      %v389 = vunpack.c.h.b16 %v280
      %v390 = vunpack.c.l.b16 %v281
      %v391 = vunpack.c.h.b16 %v281
      %v392 = vunpack.c.l.b16 %v282
      %v393 = vunpack.c.h.b16 %v282
      %v394 = vunpack.c.l.b16 %v283
      %v395 = vunpack.c.h.b16 %v283
      %v396 = vunpack.c.l.b16 %v284
      %v397 = vunpack.c.h.b16 %v284
      %v398 = vunpack.c.l.b16 %v285
      %v399 = vunpack.c.h.b16 %v285
      %v400 = vpack.c.b16 %v338, %v336
      %v401 = vpack.c.b16 %v339, %v337
      %v402 = vpack.c.b16 %v342, %v340
      %v403 = vpack.c.b16 %v343, %v341
      %v404 = vpack.c.b16 %v346, %v344
      %v405 = vpack.c.b16 %v347, %v345
      %v406 = vpack.c.b16 %v350, %v348
      %v407 = vpack.c.b16 %v351, %v349
      %v408 = vpack.c.b16 %v354, %v352
      %v409 = vpack.c.b16 %v355, %v353
      %v410 = vpack.c.b16 %v358, %v356
      %v411 = vpack.c.b16 %v359, %v357
      %v412 = vpack.c.b16 %v362, %v360
      %v413 = vpack.c.b16 %v363, %v361
      %v414 = vpack.c.b16 %v366, %v364
      %v415 = vpack.c.b16 %v367, %v365
      %v416 = vpack.c.b16 %v370, %v368
      %v417 = vpack.c.b16 %v371, %v369
      %v418 = vpack.c.b16 %v374, %v372
      %v419 = vpack.c.b16 %v375, %v373
      %v420 = vpack.c.b16 %v378, %v376
      %v421 = vpack.c.b16 %v379, %v377
      %v422 = vpack.c.b16 %v382, %v380
      %v423 = vpack.c.b16 %v383, %v381
      %v424 = vpack.c.b16 %v386, %v384
      %v425 = vpack.c.b16 %v387, %v385
      %v426 = vpack.c.b16 %v390, %v388
      %v427 = vpack.c.b16 %v391, %v389
      %v428 = vpack.c.b16 %v394, %v392
      %v429 = vpack.c.b16 %v395, %v393
      %v430 = vpack.c.b16 %v398, %v396
      %v431 = vpack.c.b16 %v399, %v397
      %v466 = vunpack.c.l.b16 %v286
      %v467 = vunpack.c.l.b16 %v287
      %v468 = vunpack.c.l.b16 %v288
      %v469 = vunpack.c.l.b16 %v289
      %v470 = vunpack.c.l.b16 %v290
      %v471 = vunpack.c.l.b16 %v291
      %v472 = vunpack.c.l.b16 %v292
      %v473 = vunpack.c.l.b16 %v293
      %v474 = vunpack.c.l.b16 %v294
      %v475 = vunpack.c.l.b16 %v295
      %v476 = vunpack.c.l.b16 %v296
      %v477 = vunpack.c.l.b16 %v297
      %v478 = vunpack.c.l.b16 %v298
      %v479 = vunpack.c.l.b16 %v299
      %v480 = vunpack.c.l.b16 %v300
      %v481 = vunpack.c.l.b16 %v301
      %v482 = vunpack.c.l.b16 %v302
      %v483 = vunpack.c.l.b16 %v303
      %v484 = vpack.c.b16 %v467, %v466
      %v485 = vpack.c.b16 %v469, %v468
      %v486 = vpack.c.b16 %v471, %v470
      %v487 = vpack.c.b16 %v473, %v472
      %v488 = vpack.c.b16 %v475, %v474
      %v489 = vpack.c.b16 %v477, %v476
      %v490 = vpack.c.b16 %v479, %v478
      %v491 = vpack.c.b16 %v481, %v480
      %v492 = vpack.c.b16 %v483, %v482
      %vm502 = vcmask 130048
      %v504 = vsel %vm502, %v401, 0
      %v507 = vsel %vm502, %v403, 0
      %v510 = vsel %vm502, %v405, 0
      %v513 = vsel %vm502, %v407, 0
      %v516 = vsel %vm502, %v409, 0
      %v519 = vsel %vm502, %v411, 0
      %v522 = vsel %vm502, %v413, 0
      %v525 = vsel %vm502, %v415, 0
      %v528 = vsel %vm502, %v417, 0
      %v531 = vsel %vm502, %v419, 0
      %v534 = vsel %vm502, %v421, 0
      %v537 = vsel %vm502, %v423, 0
      %v540 = vsel %vm502, %v425, 0
      %v543 = vsel %vm502, %v427, 0
      %v546 = vsel %vm502, %v429, 0
      %v549 = vsel %vm502, %v431, 0
      %551 = vmatprep.subr.bf16.mxu0 0
      %552 = vmatpush1.bf16.msra.mxu0 %v484
      %553 = vmatprep.subr.bf16.mxu0 0
      %554 = vmatpush1.bf16.msra.mxu0 %v485
      %555 = vmatprep.subr.bf16.mxu0 0
      %556 = vmatpush1.bf16.msra.mxu0 %v486
      %557 = vmatprep.subr.bf16.mxu0 0
      %558 = vmatpush1.bf16.msra.mxu0 %v487
      %559 = vmatprep.subr.bf16.mxu0 0
      %560 = vmatpush1.bf16.msra.mxu0 %v488
      %561 = vmatprep.subr.bf16.mxu0 0
      %562 = vmatpush1.bf16.msra.mxu0 %v489
      %563 = vmatprep.subr.bf16.mxu0 0
      %564 = vmatpush1.bf16.msra.mxu0 %v490
      %565 = vmatprep.subr.bf16.mxu0 0
      %566 = vmatpush1.bf16.msra.mxu0 %v491
      %567 = vmatprep.subr.bf16.mxu0 0
      %568 = vmatpush1.bf16.msra.mxu0 %v492
      %569 = vmatprep.subr.bf16.mxu0 0
      %570 = vmatpush1.bf16.msra.mxu0 0
      %571 = vmatprep.subr.bf16.mxu0 0
      %572 = vmatpush1.bf16.msra.mxu0 0
      %573 = vmatprep.subr.bf16.mxu0 0
      %574 = vmatpush1.bf16.msra.mxu0 0
      %575 = vmatprep.subr.bf16.mxu0 0
      %576 = vmatpush1.bf16.msra.mxu0 0
      %577 = vmatprep.subr.bf16.mxu0 0
      %578 = vmatpush1.bf16.msra.mxu0 0
      %579 = vmatprep.subr.bf16.mxu0 0
      %580 = vmatpush1.bf16.msra.mxu0 0
      %581 = vmatprep.subr.bf16.mxu0 0
      %582 = vmatpush1.bf16.msra.mxu0 0
      %583 = vmatprep.mubr.bf16.mxu0 %v504
      %584 = vmatmul.mubr.bf16.gmra.mrb[0].mxu0 %v400
      %v585 = vpop.f32.mrb[0].mxu0
      %v586 = vadd.f32 0.0, %v585
      %v587 = vpop.f32.mrb[0].mxu0
      %v588 = vpop.f32.mrb[0].mxu0
      %v589 = vadd.f32 0.0, %v588
      %v590 = vpop.f32.mrb[0].mxu0
      %591 = vmatprep.mubr.bf16.mxu0 %v507
      %592 = vmatmul.mubr.bf16.gmra.mrb[0].mxu0 %v402
      %v593 = vpop.f32.mrb[0].mxu0
      %v594 = vadd.f32 0.0, %v593
      %v595 = vpop.f32.mrb[0].mxu0
      %v596 = vpop.f32.mrb[0].mxu0
      %v597 = vadd.f32 0.0, %v596
      %v598 = vpop.f32.mrb[0].mxu0
      %599 = vmatprep.mubr.bf16.mxu0 %v510
      %600 = vmatmul.mubr.bf16.gmra.mrb[0].mxu0 %v404
      %v601 = vpop.f32.mrb[0].mxu0
      %v602 = vadd.f32 0.0, %v601
      %v603 = vpop.f32.mrb[0].mxu0
      %v604 = vpop.f32.mrb[0].mxu0
      %v605 = vadd.f32 0.0, %v604
      %v606 = vpop.f32.mrb[0].mxu0
      %607 = vmatprep.mubr.bf16.mxu0 %v513
      %608 = vmatmul.mubr.bf16.gmra.mrb[0].mxu0 %v406
      %v609 = vpop.f32.mrb[0].mxu0
      %v610 = vadd.f32 0.0, %v609
      %v611 = vpop.f32.mrb[0].mxu0
      %v612 = vpop.f32.mrb[0].mxu0
      %v613 = vadd.f32 0.0, %v612
      %v614 = vpop.f32.mrb[0].mxu0
      %615 = vmatprep.mubr.bf16.mxu0 %v516
      %616 = vmatmul.mubr.bf16.gmra.mrb[0].mxu0 %v408
      %v617 = vpop.f32.mrb[0].mxu0
      %v618 = vadd.f32 0.0, %v617
      %v619 = vpop.f32.mrb[0].mxu0
      %v620 = vpop.f32.mrb[0].mxu0
      %v621 = vadd.f32 0.0, %v620
      %v622 = vpop.f32.mrb[0].mxu0
      %623 = vmatprep.mubr.bf16.mxu0 %v519
      %624 = vmatmul.mubr.bf16.gmra.mrb[0].mxu0 %v410
      %v625 = vpop.f32.mrb[0].mxu0
      %v626 = vadd.f32 0.0, %v625
      %v627 = vpop.f32.mrb[0].mxu0
      %v628 = vpop.f32.mrb[0].mxu0
      %v629 = vadd.f32 0.0, %v628
      %v630 = vpop.f32.mrb[0].mxu0
      %631 = vmatprep.mubr.bf16.mxu0 %v522
      %632 = vmatmul.mubr.bf16.gmra.mrb[0].mxu0 %v412
      %v633 = vpop.f32.mrb[0].mxu0
      %v634 = vadd.f32 0.0, %v633
      %v635 = vpop.f32.mrb[0].mxu0
      %v636 = vpop.f32.mrb[0].mxu0
      %v637 = vadd.f32 0.0, %v636
      %v638 = vpop.f32.mrb[0].mxu0
      %639 = vmatprep.mubr.bf16.mxu0 %v525
      %640 = vmatmul.mubr.bf16.gmra.mrb[0].mxu0 %v414
      %v641 = vpop.f32.mrb[0].mxu0
      %v642 = vadd.f32 0.0, %v641
      %v643 = vpop.f32.mrb[0].mxu0
      %v644 = vpop.f32.mrb[0].mxu0
      %v645 = vadd.f32 0.0, %v644
      %v646 = vpop.f32.mrb[0].mxu0
      %647 = vmatprep.mubr.bf16.mxu0 %v528
      %648 = vmatmul.mubr.bf16.gmra.mrb[0].mxu0 %v416
      %v649 = vpop.f32.mrb[0].mxu0
      %v650 = vadd.f32 0.0, %v649
      %v651 = vpop.f32.mrb[0].mxu0
      %v652 = vpop.f32.mrb[0].mxu0
      %v653 = vadd.f32 0.0, %v652
      %v654 = vpop.f32.mrb[0].mxu0
      %655 = vmatprep.mubr.bf16.mxu0 %v531
      %656 = vmatmul.mubr.bf16.gmra.mrb[0].mxu0 %v418
      %v657 = vpop.f32.mrb[0].mxu0
      %v658 = vadd.f32 0.0, %v657
      %v659 = vpop.f32.mrb[0].mxu0
      %v660 = vpop.f32.mrb[0].mxu0
      %v661 = vadd.f32 0.0, %v660
      %v662 = vpop.f32.mrb[0].mxu0
      %663 = vmatprep.mubr.bf16.mxu0 %v534
      %664 = vmatmul.mubr.bf16.gmra.mrb[0].mxu0 %v420
      %v665 = vpop.f32.mrb[0].mxu0
      %v666 = vadd.f32 0.0, %v665
      %v667 = vpop.f32.mrb[0].mxu0
      %v668 = vpop.f32.mrb[0].mxu0
      %v669 = vadd.f32 0.0, %v668
      %v670 = vpop.f32.mrb[0].mxu0
      %671 = vmatprep.mubr.bf16.mxu0 %v537
      %672 = vmatmul.mubr.bf16.gmra.mrb[0].mxu0 %v422
      %v673 = vpop.f32.mrb[0].mxu0
      %v674 = vadd.f32 0.0, %v673
      %v675 = vpop.f32.mrb[0].mxu0
      %v676 = vpop.f32.mrb[0].mxu0
      %v677 = vadd.f32 0.0, %v676
      %v678 = vpop.f32.mrb[0].mxu0
      %679 = vmatprep.mubr.bf16.mxu0 %v540
      %680 = vmatmul.mubr.bf16.gmra.mrb[0].mxu0 %v424
      %v681 = vpop.f32.mrb[0].mxu0
      %v682 = vadd.f32 0.0, %v681
      %v683 = vpop.f32.mrb[0].mxu0
      %v684 = vpop.f32.mrb[0].mxu0
      %v685 = vadd.f32 0.0, %v684
      %v686 = vpop.f32.mrb[0].mxu0
      %687 = vmatprep.mubr.bf16.mxu0 %v543
      %688 = vmatmul.mubr.bf16.gmra.mrb[0].mxu0 %v426
      %v689 = vpop.f32.mrb[0].mxu0
      %v690 = vadd.f32 0.0, %v689
      %v691 = vpop.f32.mrb[0].mxu0
      %v692 = vpop.f32.mrb[0].mxu0
      %v693 = vadd.f32 0.0, %v692
      %v694 = vpop.f32.mrb[0].mxu0
      %695 = vmatprep.mubr.bf16.mxu0 %v546
      %696 = vmatmul.mubr.bf16.gmra.mrb[0].mxu0 %v428
      %v697 = vpop.f32.mrb[0].mxu0
      %v698 = vadd.f32 0.0, %v697
      %v699 = vpop.f32.mrb[0].mxu0
      %v700 = vpop.f32.mrb[0].mxu0
      %v701 = vadd.f32 0.0, %v700
      %v702 = vpop.f32.mrb[0].mxu0
      %703 = vmatprep.mubr.bf16.mxu0 %v549
      %704 = vmatmul.mubr.bf16.gmra.mrb[0].mxu0 %v430
      %v705 = vpop.f32.mrb[0].mxu0
      %v706 = vadd.f32 0.0, %v705
      %v707 = vpop.f32.mrb[0].mxu0
      %v708 = vpop.f32.mrb[0].mxu0
      %v709 = vadd.f32 0.0, %v708
      %v710 = vpop.f32.mrb[0].mxu0
      %711 = vdwg.mxu0
      %v712 = vld [vmem:[%s2] sm:$0x1]
      %v714 = vlaneseq
      %v715 = vshrl.u32 %v714, 7
      %v716 = vsub.s32 0, %v715
      %v717 = vrot.slane %v712, %v716
      %v719 = vmul.f32 %v586, %v717
      %v720 = vmul.f32 %v589, %v717
      %v721 = vmul.f32 %v594, %v717
      %v722 = vmul.f32 %v597, %v717
      %v723 = vmul.f32 %v602, %v717
      %v724 = vmul.f32 %v605, %v717
      %v725 = vmul.f32 %v610, %v717
      %v726 = vmul.f32 %v613, %v717
      %v727 = vmul.f32 %v618, %v717
      %v728 = vmul.f32 %v621, %v717
      %v729 = vmul.f32 %v626, %v717
      %v730 = vmul.f32 %v629, %v717
      %v731 = vmul.f32 %v634, %v717
      %v732 = vmul.f32 %v637, %v717
      %v733 = vmul.f32 %v642, %v717
      %v734 = vmul.f32 %v645, %v717
      %v735 = vmul.f32 %v650, %v717
      %v736 = vmul.f32 %v653, %v717
      %v737 = vmul.f32 %v658, %v717
      %v738 = vmul.f32 %v661, %v717
      %v739 = vmul.f32 %v666, %v717
      %v740 = vmul.f32 %v669, %v717
      %v741 = vmul.f32 %v674, %v717
      %v742 = vmul.f32 %v677, %v717
      %v743 = vmul.f32 %v682, %v717
      %v744 = vmul.f32 %v685, %v717
      %v745 = vmul.f32 %v690, %v717
      %v746 = vmul.f32 %v693, %v717
      %v747 = vmul.f32 %v698, %v717
      %v748 = vmul.f32 %v701, %v717
      %v749 = vmul.f32 %v706, %v717
      %v750 = vmul.f32 %v709, %v717
      %v751 = vld [vmem:[%s3] sm:$0x1]
      %v753 = vlaneseq
      %v754 = vshrl.u32 %v753, 7
      %v755 = vsub.s32 0, %v754
      %v756 = vrot.slane %v751, %v755
      %v758 = vadd.f32 %v719, %v756
      %v759 = vadd.f32 %v720, %v756
      %v760 = vadd.f32 %v721, %v756
      %v761 = vadd.f32 %v722, %v756
      %v762 = vadd.f32 %v723, %v756
      %v763 = vadd.f32 %v724, %v756
      %v764 = vadd.f32 %v725, %v756
      %v765 = vadd.f32 %v726, %v756
      %v766 = vadd.f32 %v727, %v756
      %v767 = vadd.f32 %v728, %v756
      %v768 = vadd.f32 %v729, %v756
      %v769 = vadd.f32 %v730, %v756
      %v770 = vadd.f32 %v731, %v756
      %v771 = vadd.f32 %v732, %v756
      %v772 = vadd.f32 %v733, %v756
      %v773 = vadd.f32 %v734, %v756
      %v774 = vadd.f32 %v735, %v756
      %v775 = vadd.f32 %v736, %v756
      %v776 = vadd.f32 %v737, %v756
      %v777 = vadd.f32 %v738, %v756
      %v778 = vadd.f32 %v739, %v756
      %v779 = vadd.f32 %v740, %v756
      %v780 = vadd.f32 %v741, %v756
      %v781 = vadd.f32 %v742, %v756
      %v782 = vadd.f32 %v743, %v756
      %v783 = vadd.f32 %v744, %v756
      %v784 = vadd.f32 %v745, %v756
      %v785 = vadd.f32 %v746, %v756
      %v786 = vadd.f32 %v747, %v756
      %v787 = vadd.f32 %v748, %v756
      %v788 = vadd.f32 %v749, %v756
      %v789 = vadd.f32 %v750, %v756
      %v790 = vld [vmem:[%s245] sm:$0xff]
      %v791 = vld [vmem:[%s245 + $0x8] sm:$0xff]
      %v792 = vld [vmem:[%s245 + $0x10] sm:$0xff]
      %v793 = vld [vmem:[%s245 + $0x18] sm:$0xff]
      %v794 = vld [vmem:[%s245 + $0x20] sm:$0xff]
      %v795 = vld [vmem:[%s245 + $0x28] sm:$0xff]
      %v796 = vld [vmem:[%s245 + $0x30] sm:$0xff]
      %v797 = vld [vmem:[%s245 + $0x38] sm:$0xff]
      %v798 = vld [vmem:[%s245 + $0x40] sm:$0xff]
      %v799 = vld [vmem:[%s245 + $0x48] sm:$0xff]
      %v800 = vld [vmem:[%s245 + $0x50] sm:$0xff]
      %v801 = vld [vmem:[%s245 + $0x58] sm:$0xff]
      %v802 = vld [vmem:[%s245 + $0x60] sm:$0xff]
      %v803 = vld [vmem:[%s245 + $0x68] sm:$0xff]
      %v804 = vld [vmem:[%s245 + $0x70] sm:$0xff]
      %v805 = vld [vmem:[%s245 + $0x78] sm:$0xff]
      %v806 = vld [vmem:[%s245 + $0x80] sm:$0xff]
      %v807 = vld [vmem:[%s245 + $0x88] sm:$0xff]
      %v808 = vld [vmem:[%s245 + $0x90] sm:$0xff]
      %v809 = vld [vmem:[%s245 + $0x98] sm:$0xff]
      %v810 = vld [vmem:[%s245 + $0xa0] sm:$0xff]
      %v811 = vld [vmem:[%s245 + $0xa8] sm:$0xff]
      %v812 = vld [vmem:[%s245 + $0xb0] sm:$0xff]
      %v813 = vld [vmem:[%s245 + $0xb8] sm:$0xff]
      %v814 = vld [vmem:[%s245 + $0xc0] sm:$0xff]
      %v815 = vld [vmem:[%s245 + $0xc8] sm:$0xff]
      %v816 = vld [vmem:[%s245 + $0xd0] sm:$0xff]
      %v817 = vld [vmem:[%s245 + $0xd8] sm:$0xff]
      %v818 = vld [vmem:[%s245 + $0xe0] sm:$0xff]
      %v819 = vld [vmem:[%s245 + $0xe8] sm:$0xff]
      %v820 = vld [vmem:[%s245 + $0xf0] sm:$0xff]
      %v821 = vld [vmem:[%s245 + $0xf8] sm:$0xff]
      %v822 = vadd.f32 %v758, %v790
      %v823 = vadd.f32 %v759, %v791
      %v824 = vadd.f32 %v760, %v792
      %v825 = vadd.f32 %v761, %v793
      %v826 = vadd.f32 %v762, %v794
      %v827 = vadd.f32 %v763, %v795
      %v828 = vadd.f32 %v764, %v796
      %v829 = vadd.f32 %v765, %v797
      %v830 = vadd.f32 %v766, %v798
      %v831 = vadd.f32 %v767, %v799
      %v832 = vadd.f32 %v768, %v800
      %v833 = vadd.f32 %v769, %v801
      %v834 = vadd.f32 %v770, %v802
      %v835 = vadd.f32 %v771, %v803
      %v836 = vadd.f32 %v772, %v804
      %v837 = vadd.f32 %v773, %v805
      %v838 = vadd.f32 %v774, %v806
      %v839 = vadd.f32 %v775, %v807
      %v840 = vadd.f32 %v776, %v808
      %v841 = vadd.f32 %v777, %v809
      %v842 = vadd.f32 %v778, %v810
      %v843 = vadd.f32 %v779, %v811
      %v844 = vadd.f32 %v780, %v812
      %v845 = vadd.f32 %v781, %v813
      %v846 = vadd.f32 %v782, %v814
      %v847 = vadd.f32 %v783, %v815
      %v848 = vadd.f32 %v784, %v816
      %v849 = vadd.f32 %v785, %v817
      %v850 = vadd.f32 %v786, %v818
      %v851 = vadd.f32 %v787, %v819
      %v852 = vadd.f32 %v788, %v820
      %v853 = vadd.f32 %v789, %v821
      %v854 = vmax.f32 %v822, 0.0
      %v855 = vmax.f32 %v823, 0.0
      %v856 = vmax.f32 %v824, 0.0
      %v857 = vmax.f32 %v825, 0.0
      %v858 = vmax.f32 %v826, 0.0
      %v859 = vmax.f32 %v827, 0.0
      %v860 = vmax.f32 %v828, 0.0
      %v861 = vmax.f32 %v829, 0.0
      %v862 = vmax.f32 %v830, 0.0
      %v863 = vmax.f32 %v831, 0.0
      %v864 = vmax.f32 %v832, 0.0
      %v865 = vmax.f32 %v833, 0.0
      %v866 = vmax.f32 %v834, 0.0
      %v867 = vmax.f32 %v835, 0.0
      %v868 = vmax.f32 %v836, 0.0
      %v869 = vmax.f32 %v837, 0.0
      %v870 = vmax.f32 %v838, 0.0
      %v871 = vmax.f32 %v839, 0.0
      %v872 = vmax.f32 %v840, 0.0
      %v873 = vmax.f32 %v841, 0.0
      %v874 = vmax.f32 %v842, 0.0
      %v875 = vmax.f32 %v843, 0.0
      %v876 = vmax.f32 %v844, 0.0
      %v877 = vmax.f32 %v845, 0.0
      %v878 = vmax.f32 %v846, 0.0
      %v879 = vmax.f32 %v847, 0.0
      %v880 = vmax.f32 %v848, 0.0
      %v881 = vmax.f32 %v849, 0.0
      %v882 = vmax.f32 %v850, 0.0
      %v883 = vmax.f32 %v851, 0.0
      %v884 = vmax.f32 %v852, 0.0
      %v885 = vmax.f32 %v853, 0.0
      %886 = vst.msk [vmem:[%s251] sm:$0xff] %vm502, %v854
      %887 = vst.msk [vmem:[%s251 + $0x8] sm:$0xff] %vm502, %v855
      %888 = vst.msk [vmem:[%s251 + $0x10] sm:$0xff] %vm502, %v856
      %889 = vst.msk [vmem:[%s251 + $0x18] sm:$0xff] %vm502, %v857
      %890 = vst.msk [vmem:[%s251 + $0x20] sm:$0xff] %vm502, %v858
      %891 = vst.msk [vmem:[%s251 + $0x28] sm:$0xff] %vm502, %v859
      %892 = vst.msk [vmem:[%s251 + $0x30] sm:$0xff] %vm502, %v860
      %893 = vst.msk [vmem:[%s251 + $0x38] sm:$0xff] %vm502, %v861
      %894 = vst.msk [vmem:[%s251 + $0x40] sm:$0xff] %vm502, %v862
      %895 = vst.msk [vmem:[%s251 + $0x48] sm:$0xff] %vm502, %v863
      %896 = vst.msk [vmem:[%s251 + $0x50] sm:$0xff] %vm502, %v864
      %897 = vst.msk [vmem:[%s251 + $0x58] sm:$0xff] %vm502, %v865
      %898 = vst.msk [vmem:[%s251 + $0x60] sm:$0xff] %vm502, %v866
      %899 = vst.msk [vmem:[%s251 + $0x68] sm:$0xff] %vm502, %v867
      %900 = vst.msk [vmem:[%s251 + $0x70] sm:$0xff] %vm502, %v868
      %901 = vst.msk [vmem:[%s251 + $0x78] sm:$0xff] %vm502, %v869
      %902 = vst.msk [vmem:[%s251 + $0x80] sm:$0xff] %vm502, %v870
      %903 = vst.msk [vmem:[%s251 + $0x88] sm:$0xff] %vm502, %v871
      %904 = vst.msk [vmem:[%s251 + $0x90] sm:$0xff] %vm502, %v872
      %905 = vst.msk [vmem:[%s251 + $0x98] sm:$0xff] %vm502, %v873
      %906 = vst.msk [vmem:[%s251 + $0xa0] sm:$0xff] %vm502, %v874
      %907 = vst.msk [vmem:[%s251 + $0xa8] sm:$0xff] %vm502, %v875
      %908 = vst.msk [vmem:[%s251 + $0xb0] sm:$0xff] %vm502, %v876
      %909 = vst.msk [vmem:[%s251 + $0xb8] sm:$0xff] %vm502, %v877
      %910 = vst.msk [vmem:[%s251 + $0xc0] sm:$0xff] %vm502, %v878
      %911 = vst.msk [vmem:[%s251 + $0xc8] sm:$0xff] %vm502, %v879
      %912 = vst.msk [vmem:[%s251 + $0xd0] sm:$0xff] %vm502, %v880
      %913 = vst.msk [vmem:[%s251 + $0xd8] sm:$0xff] %vm502, %v881
      %914 = vst.msk [vmem:[%s251 + $0xe0] sm:$0xff] %vm502, %v882
      %915 = vst.msk [vmem:[%s251 + $0xe8] sm:$0xff] %vm502, %v883
      %916 = vst.msk [vmem:[%s251 + $0xf0] sm:$0xff] %vm502, %v884
      %917 = vst.msk [vmem:[%s251 + $0xf8] sm:$0xff] %vm502, %v885
      %s918 = smul.u32 32, %s16
      %p919 = scmp.lt.s32.totalorder %s918, 63
      %s920 = scalar_select %p919, %s918, 63
      %s921 = smul.addr %s920, 8
      %s922 = scalar_lea.vmem %s5, %s921
      // Predicated region
      $region41: #{_lambda_.9} parent=39 // pred_check
        %p923 = pneg %p149
      $region42: #{_lambda_.9} parent=39 // pred_check_branch
        %925 = sbr.rel (%p923) target = $region44
      $region43: #{_lambda_.9} parent=39 // pred_region
        %s926 = smul.u32 32, %s16
      $region44: #{_lambda_.9} parent=39 // pred_fallthru
        _
    $region40: #{_lambda_.9} parent=5 // pred_fallthru
      _
    %p927 = scmp.le.s32.totalorder 2, %s11
    // Predicated region
    $region45: #{_lambda_.9} parent=5 // pred_check
      %p928 = pneg %p927
    $region46: #{_lambda_.9} parent=5 // pred_check_branch
      %930 = sbr.rel (%p928) target = $region48
    $region47: #{_lambda_.9} parent=5 // pred_region
      %s931 = ssub.s32 %s11, 2
      // Predicated region
      $region49: #{_lambda_.9} parent=47 // pred_check
        %p932 = pneg %p155
      $region50: #{_lambda_.9} parent=47 // pred_check_branch
        %934 = sbr.rel (%p932) target = $region52
      $region51: #{_lambda_.9} parent=47 // pred_region
        %s935 = smul.u32 32, %s17
        %p936 = scmp.lt.s32.totalorder %s935, 63
        %s937 = scalar_select %p936, %s935, 63
        %s938 = smul.addr %s937, 8
        %s939 = scalar_lea.vmem %s5, %s938
      $region52: #{_lambda_.9} parent=47 // pred_fallthru
        _
    $region48: #{_lambda_.9} parent=5 // pred_fallthru
      _
  $region6: #{_lambda_.9} parent=0 // loop_footer
    %s15 = sadd.s32 1, %s11
  $region7: #{_lambda_.9} parent=0 // loop_footer_branch
    %10 = sbr.rel target = $region3
  $region8: #{_lambda_.9} parent=0 // loop_exit
    _

// kernel: _lambda_.10
$region0: #{_lambda_.10}
  #allocation0 [shape = 'u32[]', space=smem, size = 0x4, offset = 0x4, fixed_abs, tag = 'smem constant byte address 0x4 - core index']
  #allocation1 [shape = 'u32[144,128]{1,0:T(1,128)}', space=vmem, size = 0x12000, scoped, tag = 'internal scratch']
  %s0 = inlined_call_operand.vmem [shape: bf16[128,16], index: 0, kind: input, shape index: {}]
  %s1 = inlined_call_operand.vmem [shape: bf16[16,32], index: 1, kind: input, shape index: {}]
  %s2 = inlined_call_operand.vmem [shape: f32[1,32], index: 2, kind: input, shape index: {}]
  %s3 = inlined_call_operand.vmem [shape: f32[1,32], index: 3, kind: input, shape index: {}]
  %s4 = inlined_call_operand.vmem [shape: f32[128,32], index: 4, kind: output, shape index: {}]
  %s5 = sld [smem:[#allocation0]]
  $region26: #{_lambda_.10} parent=0
    _
  %s7 = ssub.s32 1, %s5
  %s8 = scalar_select 0, %s7, %s5
  // Predicated region
  $region2: #{_lambda_.10} parent=0 // pred_check
    _
  $region3: #{_lambda_.10} parent=0 // pred_check_branch
    %10 = sbr.rel (0) target = $region5
  $region4: #{_lambda_.10} parent=0 // pred_region
    _
  $region5: #{_lambda_.10} parent=0 // pred_fallthru
    _
  // Predicated region
  $region6: #{_lambda_.10} parent=0 // pred_check
    _
  $region7: #{_lambda_.10} parent=0 // pred_check_branch
    %12 = sbr.rel (0) target = $region9
  $region8: #{_lambda_.10} parent=0 // pred_region
    _
  $region9: #{_lambda_.10} parent=0 // pred_fallthru
    _
  // Predicated region
  $region10: #{_lambda_.10} parent=0 // pred_check
    _
  $region11: #{_lambda_.10} parent=0 // pred_check_branch
    %14 = sbr.rel (0) target = $region13
  $region12: #{_lambda_.10} parent=0 // pred_region
    _
  $region13: #{_lambda_.10} parent=0 // pred_fallthru
    _
  // Predicated region
  $region14: #{_lambda_.10} parent=0 // pred_check
    _
  $region15: #{_lambda_.10} parent=0 // pred_check_branch
    %16 = sbr.rel (0) target = $region17
  $region16: #{_lambda_.10} parent=0 // pred_region
    _
  $region17: #{_lambda_.10} parent=0 // pred_fallthru
    _
  %v18 = vld [vmem:[%s0] sm:$0xf]
  %v19 = vld [vmem:[%s0 + $0x4] sm:$0xf]
  %v20 = vld [vmem:[%s0 + $0x8] sm:$0xf]
  %v21 = vld [vmem:[%s0 + $0xc] sm:$0xf]
  %v22 = vld [vmem:[%s0 + $0x10] sm:$0xf]
  %v23 = vld [vmem:[%s0 + $0x14] sm:$0xf]
  %v24 = vld [vmem:[%s0 + $0x18] sm:$0xf]
  %v25 = vld [vmem:[%s0 + $0x1c] sm:$0xf]
  %v26 = vld [vmem:[%s0 + $0x20] sm:$0xf]
  %v27 = vld [vmem:[%s0 + $0x24] sm:$0xf]
  %v28 = vld [vmem:[%s0 + $0x28] sm:$0xf]
  %v29 = vld [vmem:[%s0 + $0x2c] sm:$0xf]
  %v30 = vld [vmem:[%s0 + $0x30] sm:$0xf]
  %v31 = vld [vmem:[%s0 + $0x34] sm:$0xf]
  %v32 = vld [vmem:[%s0 + $0x38] sm:$0xf]
  %v33 = vld [vmem:[%s0 + $0x3c] sm:$0xf]
  %v34 = vld [vmem:[%s1] sm:$0xf]
  %v35 = vld [vmem:[%s1 + $0x4] sm:$0xf]
  %v52 = vunpack.c.l.b16 %v18
  %v53 = vunpack.c.l.b16 %v19
  %v54 = vunpack.c.l.b16 %v20
  %v55 = vunpack.c.l.b16 %v21
  %v56 = vunpack.c.l.b16 %v22
  %v57 = vunpack.c.l.b16 %v23
  %v58 = vunpack.c.l.b16 %v24
  %v59 = vunpack.c.l.b16 %v25
  %v60 = vunpack.c.l.b16 %v26
  %v61 = vunpack.c.l.b16 %v27
  %v62 = vunpack.c.l.b16 %v28
  %v63 = vunpack.c.l.b16 %v29
  %v64 = vunpack.c.l.b16 %v30
  %v65 = vunpack.c.l.b16 %v31
  %v66 = vunpack.c.l.b16 %v32
  %v67 = vunpack.c.l.b16 %v33
  %v68 = vpack.c.b16 %v53, %v52
  %v69 = vpack.c.b16 %v55, %v54
  %v70 = vpack.c.b16 %v57, %v56
  %v71 = vpack.c.b16 %v59, %v58
  %v72 = vpack.c.b16 %v61, %v60
  %v73 = vpack.c.b16 %v63, %v62
  %v74 = vpack.c.b16 %v65, %v64
  %v75 = vpack.c.b16 %v67, %v66
  %v78 = vunpack.c.l.b16 %v34
  %v79 = vunpack.c.l.b16 %v35
  %v80 = vpack.c.b16 %v79, %v78
  %vm82 = vcmask 130048
  %v84 = vsel %vm82, %v68, 0
  %v87 = vsel %vm82, %v69, 0
  %v90 = vsel %vm82, %v70, 0
  %v93 = vsel %vm82, %v71, 0
  %v96 = vsel %vm82, %v72, 0
  %v99 = vsel %vm82, %v73, 0
  %v102 = vsel %vm82, %v74, 0
  %v105 = vsel %vm82, %v75, 0
  %107 = vmatprep.subr.bf16.mxu0 0
  %108 = vmatpush1.bf16.msra.mxu0 %v80
  %109 = vmatprep.subr.bf16.mxu0 0
  %110 = vmatpush1.bf16.msra.mxu0 0
  %111 = vmatprep.subr.bf16.mxu0 0
  %112 = vmatpush1.bf16.msra.mxu0 0
  %113 = vmatprep.subr.bf16.mxu0 0
  %114 = vmatpush1.bf16.msra.mxu0 0
  %115 = vmatprep.subr.bf16.mxu0 0
  %116 = vmatpush1.bf16.msra.mxu0 0
  %117 = vmatprep.subr.bf16.mxu0 0
  %118 = vmatpush1.bf16.msra.mxu0 0
  %119 = vmatprep.subr.bf16.mxu0 0
  %120 = vmatpush1.bf16.msra.mxu0 0
  %121 = vmatprep.subr.bf16.mxu0 0
  %122 = vmatpush1.bf16.msra.mxu0 0
  %123 = vmatprep.subr.bf16.mxu0 0
  %124 = vmatpush1.bf16.msra.mxu0 0
  %125 = vmatprep.subr.bf16.mxu0 0
  %126 = vmatpush1.bf16.msra.mxu0 0
  %127 = vmatprep.subr.bf16.mxu0 0
  %128 = vmatpush1.bf16.msra.mxu0 0
  %129 = vmatprep.subr.bf16.mxu0 0
  %130 = vmatpush1.bf16.msra.mxu0 0
  %131 = vmatprep.subr.bf16.mxu0 0
  %132 = vmatpush1.bf16.msra.mxu0 0
  %133 = vmatprep.subr.bf16.mxu0 0
  %134 = vmatpush1.bf16.msra.mxu0 0
  %135 = vmatprep.subr.bf16.mxu0 0
  %136 = vmatpush1.bf16.msra.mxu0 0
  %137 = vmatprep.subr.bf16.mxu0 0
  %138 = vmatpush1.bf16.msra.mxu0 0
  %139 = vmatprep.mubr.bf16.mxu0 0
  %140 = vmatmul.mubr.bf16.gmra.mrb[0].mxu0 %v84
  %v141 = vpop.f32.mrb[0].mxu0
  %v142 = vadd.f32 0.0, %v141
  %v143 = vpop.f32.mrb[0].mxu0
  %v144 = vpop.f32.mrb[0].mxu0
  %v145 = vadd.f32 0.0, %v144
  %v146 = vpop.f32.mrb[0].mxu0
  %147 = vmatprep.mubr.bf16.mxu0 0
  %148 = vmatmul.mubr.bf16.gmra.mrb[0].mxu0 %v87
  %v149 = vpop.f32.mrb[0].mxu0
  %v150 = vadd.f32 0.0, %v149
  %v151 = vpop.f32.mrb[0].mxu0
  %v152 = vpop.f32.mrb[0].mxu0
  %v153 = vadd.f32 0.0, %v152
  %v154 = vpop.f32.mrb[0].mxu0
  %155 = vmatprep.mubr.bf16.mxu0 0
  %156 = vmatmul.mubr.bf16.gmra.mrb[0].mxu0 %v90
  %v157 = vpop.f32.mrb[0].mxu0
  %v158 = vadd.f32 0.0, %v157
  %v159 = vpop.f32.mrb[0].mxu0
  %v160 = vpop.f32.mrb[0].mxu0
  %v161 = vadd.f32 0.0, %v160
  %v162 = vpop.f32.mrb[0].mxu0
  %163 = vmatprep.mubr.bf16.mxu0 0
  %164 = vmatmul.mubr.bf16.gmra.mrb[0].mxu0 %v93
  %v165 = vpop.f32.mrb[0].mxu0
  %v166 = vadd.f32 0.0, %v165
  %v167 = vpop.f32.mrb[0].mxu0
  %v168 = vpop.f32.mrb[0].mxu0
  %v169 = vadd.f32 0.0, %v168
  %v170 = vpop.f32.mrb[0].mxu0
  %171 = vmatprep.mubr.bf16.mxu0 0
  %172 = vmatmul.mubr.bf16.gmra.mrb[0].mxu0 %v96
  %v173 = vpop.f32.mrb[0].mxu0
  %v174 = vadd.f32 0.0, %v173
  %v175 = vpop.f32.mrb[0].mxu0
  %v176 = vpop.f32.mrb[0].mxu0
  %v177 = vadd.f32 0.0, %v176
  %v178 = vpop.f32.mrb[0].mxu0
  %179 = vmatprep.mubr.bf16.mxu0 0
  %180 = vmatmul.mubr.bf16.gmra.mrb[0].mxu0 %v99
  %v181 = vpop.f32.mrb[0].mxu0
  %v182 = vadd.f32 0.0, %v181
  %v183 = vpop.f32.mrb[0].mxu0
  %v184 = vpop.f32.mrb[0].mxu0
  %v185 = vadd.f32 0.0, %v184
  %v186 = vpop.f32.mrb[0].mxu0
  %187 = vmatprep.mubr.bf16.mxu0 0
  %188 = vmatmul.mubr.bf16.gmra.mrb[0].mxu0 %v102
  %v189 = vpop.f32.mrb[0].mxu0
  %v190 = vadd.f32 0.0, %v189
  %v191 = vpop.f32.mrb[0].mxu0
  %v192 = vpop.f32.mrb[0].mxu0
  %v193 = vadd.f32 0.0, %v192
  %v194 = vpop.f32.mrb[0].mxu0
  %195 = vmatprep.mubr.bf16.mxu0 0
  %196 = vmatmul.mubr.bf16.gmra.mrb[0].mxu0 %v105
  %v197 = vpop.f32.mrb[0].mxu0
  %v198 = vadd.f32 0.0, %v197
  %v199 = vpop.f32.mrb[0].mxu0
  %v200 = vpop.f32.mrb[0].mxu0
  %v201 = vadd.f32 0.0, %v200
  %v202 = vpop.f32.mrb[0].mxu0
  %203 = vdwg.mxu0
  %v204 = vld [vmem:[%s2] sm:$0x1]
  %v206 = vlaneseq
  %v207 = vshrl.u32 %v206, 7
  %v208 = vsub.s32 0, %v207
  %v209 = vrot.slane %v204, %v208
  %v211 = vmul.f32 %v142, %v209
  %v212 = vmul.f32 %v145, %v209
  %v213 = vmul.f32 %v150, %v209
  %v214 = vmul.f32 %v153, %v209
  %v215 = vmul.f32 %v158, %v209
  %v216 = vmul.f32 %v161, %v209
  %v217 = vmul.f32 %v166, %v209
  %v218 = vmul.f32 %v169, %v209
  %v219 = vmul.f32 %v174, %v209
  %v220 = vmul.f32 %v177, %v209
  %v221 = vmul.f32 %v182, %v209
  %v222 = vmul.f32 %v185, %v209
  %v223 = vmul.f32 %v190, %v209
  %v224 = vmul.f32 %v193, %v209
  %v225 = vmul.f32 %v198, %v209
  %v226 = vmul.f32 %v201, %v209
  %v227 = vld [vmem:[%s3] sm:$0x1]
  %v229 = vlaneseq
  %v230 = vshrl.u32 %v229, 7
  %v231 = vsub.s32 0, %v230
  %v232 = vrot.slane %v227, %v231
  %v234 = vadd.f32 %v211, %v232
  %v235 = vadd.f32 %v212, %v232
  %v236 = vadd.f32 %v213, %v232
  %v237 = vadd.f32 %v214, %v232
  %v238 = vadd.f32 %v215, %v232
  %v239 = vadd.f32 %v216, %v232
  %v240 = vadd.f32 %v217, %v232
  %v241 = vadd.f32 %v218, %v232
  %v242 = vadd.f32 %v219, %v232
  %v243 = vadd.f32 %v220, %v232
  %v244 = vadd.f32 %v221, %v232
  %v245 = vadd.f32 %v222, %v232
  %v246 = vadd.f32 %v223, %v232
  %v247 = vadd.f32 %v224, %v232
  %v248 = vadd.f32 %v225, %v232
  %v249 = vadd.f32 %v226, %v232
  %vm250 = vcmask 261120
  %251 = vst.msk [vmem:[%s4] sm:$0xff] %vm250, %v234
  %252 = vst.msk [vmem:[%s4 + $0x8] sm:$0xff] %vm250, %v235
  %253 = vst.msk [vmem:[%s4 + $0x10] sm:$0xff] %vm250, %v236
  %254 = vst.msk [vmem:[%s4 + $0x18] sm:$0xff] %vm250, %v237
  %255 = vst.msk [vmem:[%s4 + $0x20] sm:$0xff] %vm250, %v238
  %256 = vst.msk [vmem:[%s4 + $0x28] sm:$0xff] %vm250, %v239
  %257 = vst.msk [vmem:[%s4 + $0x30] sm:$0xff] %vm250, %v240
  %258 = vst.msk [vmem:[%s4 + $0x38] sm:$0xff] %vm250, %v241
  %259 = vst.msk [vmem:[%s4 + $0x40] sm:$0xff] %vm250, %v242
  %260 = vst.msk [vmem:[%s4 + $0x48] sm:$0xff] %vm250, %v243
  %261 = vst.msk [vmem:[%s4 + $0x50] sm:$0xff] %vm250, %v244
  %262 = vst.msk [vmem:[%s4 + $0x58] sm:$0xff] %vm250, %v245
  %263 = vst.msk [vmem:[%s4 + $0x60] sm:$0xff] %vm250, %v246
  %264 = vst.msk [vmem:[%s4 + $0x68] sm:$0xff] %vm250, %v247
  %265 = vst.msk [vmem:[%s4 + $0x70] sm:$0xff] %vm250, %v248
  %266 = vst.msk [vmem:[%s4 + $0x78] sm:$0xff] %vm250, %v249
  // Predicated region
  $region18: #{_lambda_.10} parent=0 // pred_check
    _
  $region19: #{_lambda_.10} parent=0 // pred_check_branch
    %268 = sbr.rel (0) target = $region21
  $region20: #{_lambda_.10} parent=0 // pred_region
    _
  $region21: #{_lambda_.10} parent=0 // pred_fallthru
    _
  // Predicated region
  $region22: #{_lambda_.10} parent=0 // pred_check
    _
  $region23: #{_lambda_.10} parent=0 // pred_check_branch
    %270 = sbr.rel (0) target = $region25
  $region24: #{_lambda_.10} parent=0 // pred_region
    _
  $region25: #{_lambda_.10} parent=0 // pred_fallthru
    _

// kernel: _lambda_.11
$region0: #{_lambda_.11}
  #allocation0 [shape = 'u32[]', space=smem, size = 0x4, offset = 0x4, fixed_abs, tag = 'smem constant byte address 0x4 - core index']
  #allocation1 [shape = 'u32[144,128]{1,0:T(1,128)}', space=vmem, size = 0x12000, scoped, tag = 'internal scratch']
  %s0 = inlined_call_operand.vmem [shape: bf16[128,144], index: 0, kind: input, shape index: {}]
  %s1 = inlined_call_operand.vmem [shape: bf16[144,32], index: 1, kind: input, shape index: {}]
  %s2 = inlined_call_operand.vmem [shape: f32[1,32], index: 2, kind: input, shape index: {}]
  %s3 = inlined_call_operand.vmem [shape: f32[1,32], index: 3, kind: input, shape index: {}]
  %s4 = inlined_call_operand.vmem [shape: f32[128,32], index: 4, kind: output, shape index: {}]
  %s5 = sld [smem:[#allocation0]]
  $region26: #{_lambda_.11} parent=0
    _
  %s7 = ssub.s32 1, %s5
  %s8 = scalar_select 0, %s7, %s5
  // Predicated region
  $region2: #{_lambda_.11} parent=0 // pred_check
    _
  $region3: #{_lambda_.11} parent=0 // pred_check_branch
    %10 = sbr.rel (0) target = $region5
  $region4: #{_lambda_.11} parent=0 // pred_region
    _
  $region5: #{_lambda_.11} parent=0 // pred_fallthru
    _
  // Predicated region
  $region6: #{_lambda_.11} parent=0 // pred_check
    _
  $region7: #{_lambda_.11} parent=0 // pred_check_branch
    %12 = sbr.rel (0) target = $region9
  $region8: #{_lambda_.11} parent=0 // pred_region
    _
  $region9: #{_lambda_.11} parent=0 // pred_fallthru
    _
  // Predicated region
  $region10: #{_lambda_.11} parent=0 // pred_check
    _
  $region11: #{_lambda_.11} parent=0 // pred_check_branch
    %14 = sbr.rel (0) target = $region13
  $region12: #{_lambda_.11} parent=0 // pred_region
    _
  $region13: #{_lambda_.11} parent=0 // pred_fallthru
    _
  // Predicated region
  $region14: #{_lambda_.11} parent=0 // pred_check
    _
  $region15: #{_lambda_.11} parent=0 // pred_check_branch
    %16 = sbr.rel (0) target = $region17
  $region16: #{_lambda_.11} parent=0 // pred_region
    _
  $region17: #{_lambda_.11} parent=0 // pred_fallthru
    _
  %v18 = vld [vmem:[%s0] sm:$0xff]
  %v19 = vld [vmem:[%s0 + $0x8] sm:$0xff]
  %v20 = vld [vmem:[%s0 + $0x10] sm:$0xff]
  %v21 = vld [vmem:[%s0 + $0x18] sm:$0xff]
  %v22 = vld [vmem:[%s0 + $0x20] sm:$0xff]
  %v23 = vld [vmem:[%s0 + $0x28] sm:$0xff]
  %v24 = vld [vmem:[%s0 + $0x30] sm:$0xff]
  %v25 = vld [vmem:[%s0 + $0x38] sm:$0xff]
  %v26 = vld [vmem:[%s0 + $0x40] sm:$0xff]
  %v27 = vld [vmem:[%s0 + $0x48] sm:$0xff]
  %v28 = vld [vmem:[%s0 + $0x50] sm:$0xff]
  %v29 = vld [vmem:[%s0 + $0x58] sm:$0xff]
  %v30 = vld [vmem:[%s0 + $0x60] sm:$0xff]
  %v31 = vld [vmem:[%s0 + $0x68] sm:$0xff]
  %v32 = vld [vmem:[%s0 + $0x70] sm:$0xff]
  %v33 = vld [vmem:[%s0 + $0x78] sm:$0xff]
  %v34 = vld [vmem:[%s1] sm:$0xf]
  %v35 = vld [vmem:[%s1 + $0x4] sm:$0xf]
  %v36 = vld [vmem:[%s1 + $0x8] sm:$0xf]
  %v37 = vld [vmem:[%s1 + $0xc] sm:$0xf]
  %v38 = vld [vmem:[%s1 + $0x10] sm:$0xf]
  %v39 = vld [vmem:[%s1 + $0x14] sm:$0xf]
  %v40 = vld [vmem:[%s1 + $0x18] sm:$0xf]
  %v41 = vld [vmem:[%s1 + $0x1c] sm:$0xf]
  %v42 = vld [vmem:[%s1 + $0x20] sm:$0xf]
  %v43 = vld [vmem:[%s1 + $0x24] sm:$0xf]
  %v44 = vld [vmem:[%s1 + $0x28] sm:$0xf]
  %v45 = vld [vmem:[%s1 + $0x2c] sm:$0xf]
  %v46 = vld [vmem:[%s1 + $0x30] sm:$0xf]
  %v47 = vld [vmem:[%s1 + $0x34] sm:$0xf]
  %v48 = vld [vmem:[%s1 + $0x38] sm:$0xf]
  %v49 = vld [vmem:[%s1 + $0x3c] sm:$0xf]
  %v50 = vld [vmem:[%s1 + $0x40] sm:$0xf]
  %v51 = vld [vmem:[%s1 + $0x44] sm:$0xf]
  %v68 = vunpack.c.l.b16 %v18
  %v69 = vunpack.c.h.b16 %v18
  %v70 = vunpack.c.l.b16 %v19
  %v71 = vunpack.c.h.b16 %v19
  %v72 = vunpack.c.l.b16 %v20
  %v73 = vunpack.c.h.b16 %v20
  %v74 = vunpack.c.l.b16 %v21
  %v75 = vunpack.c.h.b16 %v21
  %v76 = vunpack.c.l.b16 %v22
  %v77 = vunpack.c.h.b16 %v22
  %v78 = vunpack.c.l.b16 %v23
  %v79 = vunpack.c.h.b16 %v23
  %v80 = vunpack.c.l.b16 %v24
  %v81 = vunpack.c.h.b16 %v24
  %v82 = vunpack.c.l.b16 %v25
  %v83 = vunpack.c.h.b16 %v25
  %v84 = vunpack.c.l.b16 %v26
  %v85 = vunpack.c.h.b16 %v26
  %v86 = vunpack.c.l.b16 %v27
  %v87 = vunpack.c.h.b16 %v27
  %v88 = vunpack.c.l.b16 %v28
  %v89 = vunpack.c.h.b16 %v28
  %v90 = vunpack.c.l.b16 %v29
  %v91 = vunpack.c.h.b16 %v29
  %v92 = vunpack.c.l.b16 %v30
  %v93 = vunpack.c.h.b16 %v30
  %v94 = vunpack.c.l.b16 %v31
  %v95 = vunpack.c.h.b16 %v31
  %v96 = vunpack.c.l.b16 %v32
  %v97 = vunpack.c.h.b16 %v32
  %v98 = vunpack.c.l.b16 %v33
  %v99 = vunpack.c.h.b16 %v33
  %v100 = vpack.c.b16 %v70, %v68
  %v101 = vpack.c.b16 %v71, %v69
  %v102 = vpack.c.b16 %v74, %v72
  %v103 = vpack.c.b16 %v75, %v73
  %v104 = vpack.c.b16 %v78, %v76
  %v105 = vpack.c.b16 %v79, %v77
  %v106 = vpack.c.b16 %v82, %v80
  %v107 = vpack.c.b16 %v83, %v81
  %v108 = vpack.c.b16 %v86, %v84
  %v109 = vpack.c.b16 %v87, %v85
  %v110 = vpack.c.b16 %v90, %v88
  %v111 = vpack.c.b16 %v91, %v89
  %v112 = vpack.c.b16 %v94, %v92
  %v113 = vpack.c.b16 %v95, %v93
  %v114 = vpack.c.b16 %v98, %v96
  %v115 = vpack.c.b16 %v99, %v97
  %v142 = vunpack.c.l.b16 %v34
  %v143 = vunpack.c.l.b16 %v35
  %v144 = vunpack.c.l.b16 %v36
  %v145 = vunpack.c.l.b16 %v37
  %v146 = vunpack.c.l.b16 %v38
  %v147 = vunpack.c.l.b16 %v39
  %v148 = vunpack.c.l.b16 %v40
  %v149 = vunpack.c.l.b16 %v41
  %v150 = vunpack.c.l.b16 %v42
  %v151 = vunpack.c.l.b16 %v43
  %v152 = vunpack.c.l.b16 %v44
  %v153 = vunpack.c.l.b16 %v45
  %v154 = vunpack.c.l.b16 %v46
  %v155 = vunpack.c.l.b16 %v47
  %v156 = vunpack.c.l.b16 %v48
  %v157 = vunpack.c.l.b16 %v49
  %v158 = vunpack.c.l.b16 %v50
  %v159 = vunpack.c.l.b16 %v51
  %v160 = vpack.c.b16 %v143, %v142
  %v161 = vpack.c.b16 %v145, %v144
  %v162 = vpack.c.b16 %v147, %v146
  %v163 = vpack.c.b16 %v149, %v148
  %v164 = vpack.c.b16 %v151, %v150
  %v165 = vpack.c.b16 %v153, %v152
  %v166 = vpack.c.b16 %v155, %v154
  %v167 = vpack.c.b16 %v157, %v156
  %v168 = vpack.c.b16 %v159, %v158
  %vm178 = vcmask 130048
  %v180 = vsel %vm178, %v101, 0
  %v183 = vsel %vm178, %v103, 0
  %v186 = vsel %vm178, %v105, 0
  %v189 = vsel %vm178, %v107, 0
  %v192 = vsel %vm178, %v109, 0
  %v195 = vsel %vm178, %v111, 0
  %v198 = vsel %vm178, %v113, 0
  %v201 = vsel %vm178, %v115, 0
  %203 = vmatprep.subr.bf16.mxu0 0
  %204 = vmatpush1.bf16.msra.mxu0 %v160
  %205 = vmatprep.subr.bf16.mxu0 0
  %206 = vmatpush1.bf16.msra.mxu0 %v161
  %207 = vmatprep.subr.bf16.mxu0 0
  %208 = vmatpush1.bf16.msra.mxu0 %v162
  %209 = vmatprep.subr.bf16.mxu0 0
  %210 = vmatpush1.bf16.msra.mxu0 %v163
  %211 = vmatprep.subr.bf16.mxu0 0
  %212 = vmatpush1.bf16.msra.mxu0 %v164
  %213 = vmatprep.subr.bf16.mxu0 0
  %214 = vmatpush1.bf16.msra.mxu0 %v165
  %215 = vmatprep.subr.bf16.mxu0 0
  %216 = vmatpush1.bf16.msra.mxu0 %v166
  %217 = vmatprep.subr.bf16.mxu0 0
  %218 = vmatpush1.bf16.msra.mxu0 %v167
  %219 = vmatprep.subr.bf16.mxu0 0
  %220 = vmatpush1.bf16.msra.mxu0 %v168
  %221 = vmatprep.subr.bf16.mxu0 0
  %222 = vmatpush1.bf16.msra.mxu0 0
  %223 = vmatprep.subr.bf16.mxu0 0
  %224 = vmatpush1.bf16.msra.mxu0 0
  %225 = vmatprep.subr.bf16.mxu0 0
  %226 = vmatpush1.bf16.msra.mxu0 0
  %227 = vmatprep.subr.bf16.mxu0 0
  %228 = vmatpush1.bf16.msra.mxu0 0
  %229 = vmatprep.subr.bf16.mxu0 0
  %230 = vmatpush1.bf16.msra.mxu0 0
  %231 = vmatprep.subr.bf16.mxu0 0
  %232 = vmatpush1.bf16.msra.mxu0 0
  %233 = vmatprep.subr.bf16.mxu0 0
  %234 = vmatpush1.bf16.msra.mxu0 0
  %235 = vmatprep.mubr.bf16.mxu0 %v180
  %236 = vmatmul.mubr.bf16.gmra.mrb[0].mxu0 %v100
  %v237 = vpop.f32.mrb[0].mxu0
  %v238 = vadd.f32 0.0, %v237
  %v239 = vpop.f32.mrb[0].mxu0
  %v240 = vpop.f32.mrb[0].mxu0
  %v241 = vadd.f32 0.0, %v240
  %v242 = vpop.f32.mrb[0].mxu0
  %243 = vmatprep.mubr.bf16.mxu0 %v183
  %244 = vmatmul.mubr.bf16.gmra.mrb[0].mxu0 %v102
  %v245 = vpop.f32.mrb[0].mxu0
  %v246 = vadd.f32 0.0, %v245
  %v247 = vpop.f32.mrb[0].mxu0
  %v248 = vpop.f32.mrb[0].mxu0
  %v249 = vadd.f32 0.0, %v248
  %v250 = vpop.f32.mrb[0].mxu0
  %251 = vmatprep.mubr.bf16.mxu0 %v186
  %252 = vmatmul.mubr.bf16.gmra.mrb[0].mxu0 %v104
  %v253 = vpop.f32.mrb[0].mxu0
  %v254 = vadd.f32 0.0, %v253
  %v255 = vpop.f32.mrb[0].mxu0
  %v256 = vpop.f32.mrb[0].mxu0
  %v257 = vadd.f32 0.0, %v256
  %v258 = vpop.f32.mrb[0].mxu0
  %259 = vmatprep.mubr.bf16.mxu0 %v189
  %260 = vmatmul.mubr.bf16.gmra.mrb[0].mxu0 %v106
  %v261 = vpop.f32.mrb[0].mxu0
  %v262 = vadd.f32 0.0, %v261
  %v263 = vpop.f32.mrb[0].mxu0
  %v264 = vpop.f32.mrb[0].mxu0
  %v265 = vadd.f32 0.0, %v264
  %v266 = vpop.f32.mrb[0].mxu0
  %267 = vmatprep.mubr.bf16.mxu0 %v192
  %268 = vmatmul.mubr.bf16.gmra.mrb[0].mxu0 %v108
  %v269 = vpop.f32.mrb[0].mxu0
  %v270 = vadd.f32 0.0, %v269
  %v271 = vpop.f32.mrb[0].mxu0
  %v272 = vpop.f32.mrb[0].mxu0
  %v273 = vadd.f32 0.0, %v272
  %v274 = vpop.f32.mrb[0].mxu0
  %275 = vmatprep.mubr.bf16.mxu0 %v195
  %276 = vmatmul.mubr.bf16.gmra.mrb[0].mxu0 %v110
  %v277 = vpop.f32.mrb[0].mxu0
  %v278 = vadd.f32 0.0, %v277
  %v279 = vpop.f32.mrb[0].mxu0
  %v280 = vpop.f32.mrb[0].mxu0
  %v281 = vadd.f32 0.0, %v280
  %v282 = vpop.f32.mrb[0].mxu0
  %283 = vmatprep.mubr.bf16.mxu0 %v198
  %284 = vmatmul.mubr.bf16.gmra.mrb[0].mxu0 %v112
  %v285 = vpop.f32.mrb[0].mxu0
  %v286 = vadd.f32 0.0, %v285
  %v287 = vpop.f32.mrb[0].mxu0
  %v288 = vpop.f32.mrb[0].mxu0
  %v289 = vadd.f32 0.0, %v288
  %v290 = vpop.f32.mrb[0].mxu0
  %291 = vmatprep.mubr.bf16.mxu0 %v201
  %292 = vmatmul.mubr.bf16.gmra.mrb[0].mxu0 %v114
  %v293 = vpop.f32.mrb[0].mxu0
  %v294 = vadd.f32 0.0, %v293
  %v295 = vpop.f32.mrb[0].mxu0
  %v296 = vpop.f32.mrb[0].mxu0
  %v297 = vadd.f32 0.0, %v296
  %v298 = vpop.f32.mrb[0].mxu0
  %299 = vdwg.mxu0
  %v300 = vld [vmem:[%s2] sm:$0x1]
  %v302 = vlaneseq
  %v303 = vshrl.u32 %v302, 7
  %v304 = vsub.s32 0, %v303
  %v305 = vrot.slane %v300, %v304
  %v307 = vmul.f32 %v238, %v305
  %v308 = vmul.f32 %v241, %v305
  %v309 = vmul.f32 %v246, %v305
  %v310 = vmul.f32 %v249, %v305
  %v311 = vmul.f32 %v254, %v305
  %v312 = vmul.f32 %v257, %v305
  %v313 = vmul.f32 %v262, %v305
  %v314 = vmul.f32 %v265, %v305
  %v315 = vmul.f32 %v270, %v305
  %v316 = vmul.f32 %v273, %v305
  %v317 = vmul.f32 %v278, %v305
  %v318 = vmul.f32 %v281, %v305
  %v319 = vmul.f32 %v286, %v305
  %v320 = vmul.f32 %v289, %v305
  %v321 = vmul.f32 %v294, %v305
  %v322 = vmul.f32 %v297, %v305
  %v323 = vld [vmem:[%s3] sm:$0x1]
  %v325 = vlaneseq
  %v326 = vshrl.u32 %v325, 7
  %v327 = vsub.s32 0, %v326
  %v328 = vrot.slane %v323, %v327
  %v330 = vadd.f32 %v307, %v328
  %v331 = vadd.f32 %v308, %v328
  %v332 = vadd.f32 %v309, %v328
  %v333 = vadd.f32 %v310, %v328
  %v334 = vadd.f32 %v311, %v328
  %v335 = vadd.f32 %v312, %v328
  %v336 = vadd.f32 %v313, %v328
  %v337 = vadd.f32 %v314, %v328
  %v338 = vadd.f32 %v315, %v328
  %v339 = vadd.f32 %v316, %v328
  %v340 = vadd.f32 %v317, %v328
  %v341 = vadd.f32 %v318, %v328
  %v342 = vadd.f32 %v319, %v328
  %v343 = vadd.f32 %v320, %v328
  %v344 = vadd.f32 %v321, %v328
  %v345 = vadd.f32 %v322, %v328
  %v346 = vmax.f32 %v330, 0.0
  %v347 = vmax.f32 %v331, 0.0
  %v348 = vmax.f32 %v332, 0.0
  %v349 = vmax.f32 %v333, 0.0
  %v350 = vmax.f32 %v334, 0.0
  %v351 = vmax.f32 %v335, 0.0
  %v352 = vmax.f32 %v336, 0.0
  %v353 = vmax.f32 %v337, 0.0
  %v354 = vmax.f32 %v338, 0.0
  %v355 = vmax.f32 %v339, 0.0
  %v356 = vmax.f32 %v340, 0.0
  %v357 = vmax.f32 %v341, 0.0
  %v358 = vmax.f32 %v342, 0.0
  %v359 = vmax.f32 %v343, 0.0
  %v360 = vmax.f32 %v344, 0.0
  %v361 = vmax.f32 %v345, 0.0
  %vm362 = vcmask 261120
  %363 = vst.msk [vmem:[%s4] sm:$0xff] %vm362, %v346
  %364 = vst.msk [vmem:[%s4 + $0x8] sm:$0xff] %vm362, %v347
  %365 = vst.msk [vmem:[%s4 + $0x10] sm:$0xff] %vm362, %v348
  %366 = vst.msk [vmem:[%s4 + $0x18] sm:$0xff] %vm362, %v349
  %367 = vst.msk [vmem:[%s4 + $0x20] sm:$0xff] %vm362, %v350
  %368 = vst.msk [vmem:[%s4 + $0x28] sm:$0xff] %vm362, %v351
  %369 = vst.msk [vmem:[%s4 + $0x30] sm:$0xff] %vm362, %v352
  %370 = vst.msk [vmem:[%s4 + $0x38] sm:$0xff] %vm362, %v353
  %371 = vst.msk [vmem:[%s4 + $0x40] sm:$0xff] %vm362, %v354
  %372 = vst.msk [vmem:[%s4 + $0x48] sm:$0xff] %vm362, %v355
  %373 = vst.msk [vmem:[%s4 + $0x50] sm:$0xff] %vm362, %v356
  %374 = vst.msk [vmem:[%s4 + $0x58] sm:$0xff] %vm362, %v357
  %375 = vst.msk [vmem:[%s4 + $0x60] sm:$0xff] %vm362, %v358
  %376 = vst.msk [vmem:[%s4 + $0x68] sm:$0xff] %vm362, %v359
  %377 = vst.msk [vmem:[%s4 + $0x70] sm:$0xff] %vm362, %v360
  %378 = vst.msk [vmem:[%s4 + $0x78] sm:$0xff] %vm362, %v361
  // Predicated region
  $region18: #{_lambda_.11} parent=0 // pred_check
    _
  $region19: #{_lambda_.11} parent=0 // pred_check_branch
    %380 = sbr.rel (0) target = $region21
  $region20: #{_lambda_.11} parent=0 // pred_region
    _
  $region21: #{_lambda_.11} parent=0 // pred_fallthru
    _
  // Predicated region
  $region22: #{_lambda_.11} parent=0 // pred_check
    _
  $region23: #{_lambda_.11} parent=0 // pred_check_branch
    %382 = sbr.rel (0) target = $region25
  $region24: #{_lambda_.11} parent=0 // pred_region
    _
  $region25: #{_lambda_.11} parent=0 // pred_fallthru
    _

// kernel: _lambda_.12
$region0: #{_lambda_.12}
  #allocation0 [shape = 'u32[]', space=smem, size = 0x4, offset = 0x4, fixed_abs, tag = 'smem constant byte address 0x4 - core index']
  #allocation1 [shape = 'u32[144,128]{1,0:T(1,128)}', space=vmem, size = 0x12000, scoped, tag = 'internal scratch']
  %s0 = inlined_call_operand.vmem [shape: bf16[128,288], index: 0, kind: input, shape index: {}]
  %s1 = inlined_call_operand.vmem [shape: bf16[288,32], index: 1, kind: input, shape index: {}]
  %s2 = inlined_call_operand.vmem [shape: f32[1,32], index: 2, kind: input, shape index: {}]
  %s3 = inlined_call_operand.vmem [shape: f32[1,32], index: 3, kind: input, shape index: {}]
  %s4 = inlined_call_operand.vmem [shape: f32[128,32], index: 4, kind: input, shape index: {}]
  %s5 = inlined_call_operand.vmem [shape: f32[128,32], index: 5, kind: output, shape index: {}]
  %s6 = sld [smem:[#allocation0]]
  $region30: #{_lambda_.12} parent=0
    _
  %s8 = ssub.s32 1, %s6
  %s9 = scalar_select 0, %s8, %s6
  // Predicated region
  $region2: #{_lambda_.12} parent=0 // pred_check
    _
  $region3: #{_lambda_.12} parent=0 // pred_check_branch
    %11 = sbr.rel (0) target = $region5
  $region4: #{_lambda_.12} parent=0 // pred_region
    _
  $region5: #{_lambda_.12} parent=0 // pred_fallthru
    _
  // Predicated region
  $region6: #{_lambda_.12} parent=0 // pred_check
    _
  $region7: #{_lambda_.12} parent=0 // pred_check_branch
    %13 = sbr.rel (0) target = $region9
  $region8: #{_lambda_.12} parent=0 // pred_region
    _
  $region9: #{_lambda_.12} parent=0 // pred_fallthru
    _
  // Predicated region
  $region10: #{_lambda_.12} parent=0 // pred_check
    _
  $region11: #{_lambda_.12} parent=0 // pred_check_branch
    %15 = sbr.rel (0) target = $region13
  $region12: #{_lambda_.12} parent=0 // pred_region
    _
  $region13: #{_lambda_.12} parent=0 // pred_fallthru
    _
  // Predicated region
  $region14: #{_lambda_.12} parent=0 // pred_check
    _
  $region15: #{_lambda_.12} parent=0 // pred_check_branch
    %17 = sbr.rel (0) target = $region17
  $region16: #{_lambda_.12} parent=0 // pred_region
    _
  $region17: #{_lambda_.12} parent=0 // pred_fallthru
    _
  // Predicated region
  $region18: #{_lambda_.12} parent=0 // pred_check
    _
  $region19: #{_lambda_.12} parent=0 // pred_check_branch
    %19 = sbr.rel (0) target = $region21
  $region20: #{_lambda_.12} parent=0 // pred_region
    _
  $region21: #{_lambda_.12} parent=0 // pred_fallthru
    _
  %v21 = vld [vmem:[%s0] sm:$0xff]
  %v22 = vld [vmem:[%s0 + $0x8] sm:$0xf]
  %v23 = vld [vmem:[%s0 + $0xc] sm:$0xff]
  %v24 = vld [vmem:[%s0 + $0x14] sm:$0xf]
  %v25 = vld [vmem:[%s0 + $0x18] sm:$0xff]
  %v26 = vld [vmem:[%s0 + $0x20] sm:$0xf]
  %v27 = vld [vmem:[%s0 + $0x24] sm:$0xff]
  %v28 = vld [vmem:[%s0 + $0x2c] sm:$0xf]
  %v29 = vld [vmem:[%s0 + $0x30] sm:$0xff]
  %v30 = vld [vmem:[%s0 + $0x38] sm:$0xf]
  %v31 = vld [vmem:[%s0 + $0x3c] sm:$0xff]
  %v32 = vld [vmem:[%s0 + $0x44] sm:$0xf]
  %v33 = vld [vmem:[%s0 + $0x48] sm:$0xff]
  %v34 = vld [vmem:[%s0 + $0x50] sm:$0xf]
  %v35 = vld [vmem:[%s0 + $0x54] sm:$0xff]
  %v36 = vld [vmem:[%s0 + $0x5c] sm:$0xf]
  %v37 = vld [vmem:[%s0 + $0x60] sm:$0xff]
  %v38 = vld [vmem:[%s0 + $0x68] sm:$0xf]
  %v39 = vld [vmem:[%s0 + $0x6c] sm:$0xff]
  %v40 = vld [vmem:[%s0 + $0x74] sm:$0xf]
  %v41 = vld [vmem:[%s0 + $0x78] sm:$0xff]
  %v42 = vld [vmem:[%s0 + $0x80] sm:$0xf]
  %v43 = vld [vmem:[%s0 + $0x84] sm:$0xff]
  %v44 = vld [vmem:[%s0 + $0x8c] sm:$0xf]
  %v45 = vld [vmem:[%s0 + $0x90] sm:$0xff]
  %v46 = vld [vmem:[%s0 + $0x98] sm:$0xf]
  %v47 = vld [vmem:[%s0 + $0x9c] sm:$0xff]
  %v48 = vld [vmem:[%s0 + $0xa4] sm:$0xf]
  %v49 = vld [vmem:[%s0 + $0xa8] sm:$0xff]
  %v50 = vld [vmem:[%s0 + $0xb0] sm:$0xf]
  %v51 = vld [vmem:[%s0 + $0xb4] sm:$0xff]
  %v52 = vld [vmem:[%s0 + $0xbc] sm:$0xf]
  %v53 = vld [vmem:[%s1] sm:$0xf]
  %v54 = vld [vmem:[%s1 + $0x4] sm:$0xf]
  %v55 = vld [vmem:[%s1 + $0x8] sm:$0xf]
  %v56 = vld [vmem:[%s1 + $0xc] sm:$0xf]
  %v57 = vld [vmem:[%s1 + $0x10] sm:$0xf]
  %v58 = vld [vmem:[%s1 + $0x14] sm:$0xf]
  %v59 = vld [vmem:[%s1 + $0x18] sm:$0xf]
  %v60 = vld [vmem:[%s1 + $0x1c] sm:$0xf]
  %v61 = vld [vmem:[%s1 + $0x20] sm:$0xf]
  %v62 = vld [vmem:[%s1 + $0x24] sm:$0xf]
  %v63 = vld [vmem:[%s1 + $0x28] sm:$0xf]
  %v64 = vld [vmem:[%s1 + $0x2c] sm:$0xf]
  %v65 = vld [vmem:[%s1 + $0x30] sm:$0xf]
  %v66 = vld [vmem:[%s1 + $0x34] sm:$0xf]
  %v67 = vld [vmem:[%s1 + $0x38] sm:$0xf]
  %v68 = vld [vmem:[%s1 + $0x3c] sm:$0xf]
  %v69 = vld [vmem:[%s1 + $0x40] sm:$0xf]
  %v70 = vld [vmem:[%s1 + $0x44] sm:$0xf]
  %v71 = vld [vmem:[%s1 + $0x48] sm:$0xf]
  %v72 = vld [vmem:[%s1 + $0x4c] sm:$0xf]
  %v73 = vld [vmem:[%s1 + $0x50] sm:$0xf]
  %v74 = vld [vmem:[%s1 + $0x54] sm:$0xf]
  %v75 = vld [vmem:[%s1 + $0x58] sm:$0xf]
  %v76 = vld [vmem:[%s1 + $0x5c] sm:$0xf]
  %v77 = vld [vmem:[%s1 + $0x60] sm:$0xf]
  %v78 = vld [vmem:[%s1 + $0x64] sm:$0xf]
  %v79 = vld [vmem:[%s1 + $0x68] sm:$0xf]
  %v80 = vld [vmem:[%s1 + $0x6c] sm:$0xf]
  %v81 = vld [vmem:[%s1 + $0x70] sm:$0xf]
  %v82 = vld [vmem:[%s1 + $0x74] sm:$0xf]
  %v83 = vld [vmem:[%s1 + $0x78] sm:$0xf]
  %v84 = vld [vmem:[%s1 + $0x7c] sm:$0xf]
  %v85 = vld [vmem:[%s1 + $0x80] sm:$0xf]
  %v86 = vld [vmem:[%s1 + $0x84] sm:$0xf]
  %v87 = vld [vmem:[%s1 + $0x88] sm:$0xf]
  %v88 = vld [vmem:[%s1 + $0x8c] sm:$0xf]
  %v121 = vunpack.c.l.b16 %v21
  %v122 = vunpack.c.h.b16 %v21
  %v123 = vunpack.c.l.b16 %v22
  %v124 = vunpack.c.l.b16 %v23
  %v125 = vunpack.c.h.b16 %v23
  %v126 = vunpack.c.l.b16 %v24
  %v127 = vunpack.c.l.b16 %v25
  %v128 = vunpack.c.h.b16 %v25
  %v129 = vunpack.c.l.b16 %v26
  %v130 = vunpack.c.l.b16 %v27
  %v131 = vunpack.c.h.b16 %v27
  %v132 = vunpack.c.l.b16 %v28
  %v133 = vunpack.c.l.b16 %v29
  %v134 = vunpack.c.h.b16 %v29
  %v135 = vunpack.c.l.b16 %v30
  %v136 = vunpack.c.l.b16 %v31
  %v137 = vunpack.c.h.b16 %v31
  %v138 = vunpack.c.l.b16 %v32
  %v139 = vunpack.c.l.b16 %v33
  %v140 = vunpack.c.h.b16 %v33
  %v141 = vunpack.c.l.b16 %v34
  %v142 = vunpack.c.l.b16 %v35
  %v143 = vunpack.c.h.b16 %v35
  %v144 = vunpack.c.l.b16 %v36
  %v145 = vunpack.c.l.b16 %v37
  %v146 = vunpack.c.h.b16 %v37
  %v147 = vunpack.c.l.b16 %v38
  %v148 = vunpack.c.l.b16 %v39
  %v149 = vunpack.c.h.b16 %v39
  %v150 = vunpack.c.l.b16 %v40
  %v151 = vunpack.c.l.b16 %v41
  %v152 = vunpack.c.h.b16 %v41
  %v153 = vunpack.c.l.b16 %v42
  %v154 = vunpack.c.l.b16 %v43
  %v155 = vunpack.c.h.b16 %v43
  %v156 = vunpack.c.l.b16 %v44
  %v157 = vunpack.c.l.b16 %v45
  %v158 = vunpack.c.h.b16 %v45
  %v159 = vunpack.c.l.b16 %v46
  %v160 = vunpack.c.l.b16 %v47
  %v161 = vunpack.c.h.b16 %v47
  %v162 = vunpack.c.l.b16 %v48
  %v163 = vunpack.c.l.b16 %v49
  %v164 = vunpack.c.h.b16 %v49
  %v165 = vunpack.c.l.b16 %v50
  %v166 = vunpack.c.l.b16 %v51
  %v167 = vunpack.c.h.b16 %v51
  %v168 = vunpack.c.l.b16 %v52
  %v169 = vpack.c.b16 %v124, %v121
  %v170 = vpack.c.b16 %v125, %v122
  %v171 = vpack.c.b16 %v126, %v123
  %v172 = vpack.c.b16 %v130, %v127
  %v173 = vpack.c.b16 %v131, %v128
  %v174 = vpack.c.b16 %v132, %v129
  %v175 = vpack.c.b16 %v136, %v133
  %v176 = vpack.c.b16 %v137, %v134
  %v177 = vpack.c.b16 %v138, %v135
  %v178 = vpack.c.b16 %v142, %v139
  %v179 = vpack.c.b16 %v143, %v140
  %v180 = vpack.c.b16 %v144, %v141
  %v181 = vpack.c.b16 %v148, %v145
  %v182 = vpack.c.b16 %v149, %v146
  %v183 = vpack.c.b16 %v150, %v147
  %v184 = vpack.c.b16 %v154, %v151
  %v185 = vpack.c.b16 %v155, %v152
  %v186 = vpack.c.b16 %v156, %v153
  %v187 = vpack.c.b16 %v160, %v157
  %v188 = vpack.c.b16 %v161, %v158
  %v189 = vpack.c.b16 %v162, %v159
  %v190 = vpack.c.b16 %v166, %v163
  %v191 = vpack.c.b16 %v167, %v164
  %v192 = vpack.c.b16 %v168, %v165
  %v245 = vunpack.c.l.b16 %v53
  %v246 = vunpack.c.l.b16 %v54
  %v247 = vunpack.c.l.b16 %v55
  %v248 = vunpack.c.l.b16 %v56
  %v249 = vunpack.c.l.b16 %v57
  %v250 = vunpack.c.l.b16 %v58
  %v251 = vunpack.c.l.b16 %v59
  %v252 = vunpack.c.l.b16 %v60
  %v253 = vunpack.c.l.b16 %v61
  %v254 = vunpack.c.l.b16 %v62
  %v255 = vunpack.c.l.b16 %v63
  %v256 = vunpack.c.l.b16 %v64
  %v257 = vunpack.c.l.b16 %v65
  %v258 = vunpack.c.l.b16 %v66
  %v259 = vunpack.c.l.b16 %v67
  %v260 = vunpack.c.l.b16 %v68
  %v261 = vunpack.c.l.b16 %v69
  %v262 = vunpack.c.l.b16 %v70
  %v263 = vunpack.c.l.b16 %v71
  %v264 = vunpack.c.l.b16 %v72
  %v265 = vunpack.c.l.b16 %v73
  %v266 = vunpack.c.l.b16 %v74
  %v267 = vunpack.c.l.b16 %v75
  %v268 = vunpack.c.l.b16 %v76
  %v269 = vunpack.c.l.b16 %v77
  %v270 = vunpack.c.l.b16 %v78
  %v271 = vunpack.c.l.b16 %v79
  %v272 = vunpack.c.l.b16 %v80
  %v273 = vunpack.c.l.b16 %v81
  %v274 = vunpack.c.l.b16 %v82
  %v275 = vunpack.c.l.b16 %v83
  %v276 = vunpack.c.l.b16 %v84
  %v277 = vunpack.c.l.b16 %v85
  %v278 = vunpack.c.l.b16 %v86
  %v279 = vunpack.c.l.b16 %v87
  %v280 = vunpack.c.l.b16 %v88
  %v281 = vpack.c.b16 %v246, %v245
  %v282 = vpack.c.b16 %v248, %v247
  %v283 = vpack.c.b16 %v250, %v249
  %v284 = vpack.c.b16 %v252, %v251
  %v285 = vpack.c.b16 %v254, %v253
  %v286 = vpack.c.b16 %v256, %v255
  %v287 = vpack.c.b16 %v258, %v257
  %v288 = vpack.c.b16 %v260, %v259
  %v289 = vpack.c.b16 %v262, %v261
  %v290 = vpack.c.b16 %v264, %v263
  %v291 = vpack.c.b16 %v266, %v265
  %v292 = vpack.c.b16 %v268, %v267
  %v293 = vpack.c.b16 %v270, %v269
  %v294 = vpack.c.b16 %v272, %v271
  %v295 = vpack.c.b16 %v274, %v273
  %v296 = vpack.c.b16 %v276, %v275
  %v297 = vpack.c.b16 %v278, %v277
  %v298 = vpack.c.b16 %v280, %v279
  %vm317 = vcmask 261120
  %v319 = vsel %vm317, %v171, 0
  %v322 = vsel %vm317, %v174, 0
  %v325 = vsel %vm317, %v177, 0
  %v328 = vsel %vm317, %v180, 0
  %v331 = vsel %vm317, %v183, 0
  %v334 = vsel %vm317, %v186, 0
  %v337 = vsel %vm317, %v189, 0
  %v340 = vsel %vm317, %v192, 0
  %342 = vmatprep.subr.bf16.mxu0 0
  %343 = vmatpush1.bf16.msra.mxu0 %v281
  %344 = vmatprep.subr.bf16.mxu0 0
  %345 = vmatpush1.bf16.msra.mxu0 %v282
  %346 = vmatprep.subr.bf16.mxu0 0
  %347 = vmatpush1.bf16.msra.mxu0 %v283
  %348 = vmatprep.subr.bf16.mxu0 0
  %349 = vmatpush1.bf16.msra.mxu0 %v284
  %350 = vmatprep.subr.bf16.mxu0 0
  %351 = vmatpush1.bf16.msra.mxu0 %v285
  %352 = vmatprep.subr.bf16.mxu0 0
  %353 = vmatpush1.bf16.msra.mxu0 %v286
  %354 = vmatprep.subr.bf16.mxu0 0
  %355 = vmatpush1.bf16.msra.mxu0 %v287
  %356 = vmatprep.subr.bf16.mxu0 0
  %357 = vmatpush1.bf16.msra.mxu0 %v288
  %358 = vmatprep.subr.bf16.mxu0 0
  %359 = vmatpush1.bf16.msra.mxu0 %v289
  %360 = vmatprep.subr.bf16.mxu0 0
  %361 = vmatpush1.bf16.msra.mxu0 %v290
  %362 = vmatprep.subr.bf16.mxu0 0
  %363 = vmatpush1.bf16.msra.mxu0 %v291
  %364 = vmatprep.subr.bf16.mxu0 0
  %365 = vmatpush1.bf16.msra.mxu0 %v292
  %366 = vmatprep.subr.bf16.mxu0 0
  %367 = vmatpush1.bf16.msra.mxu0 %v293
  %368 = vmatprep.subr.bf16.mxu0 0
  %369 = vmatpush1.bf16.msra.mxu0 %v294
  %370 = vmatprep.subr.bf16.mxu0 0
  %371 = vmatpush1.bf16.msra.mxu0 %v295
  %372 = vmatprep.subr.bf16.mxu0 0
  %373 = vmatpush1.bf16.msra.mxu0 %v296
  %374 = vmatprep.mubr.bf16.mxu0 %v170
  %375 = vmatmul.mubr.bf16.gmra.mrb[0].mxu0 %v169
  %v376 = vpop.f32.mrb[0].mxu0
  %v377 = vadd.f32 0.0, %v376
  %v378 = vpop.f32.mrb[0].mxu0
  %v379 = vpop.f32.mrb[0].mxu0
  %v380 = vadd.f32 0.0, %v379
  %v381 = vpop.f32.mrb[0].mxu0
  %382 = vmatprep.mubr.bf16.mxu0 %v173
  %383 = vmatmul.mubr.bf16.gmra.mrb[0].mxu0 %v172
  %v384 = vpop.f32.mrb[0].mxu0
  %v385 = vadd.f32 0.0, %v384
  %v386 = vpop.f32.mrb[0].mxu0
  %v387 = vpop.f32.mrb[0].mxu0
  %v388 = vadd.f32 0.0, %v387
  %v389 = vpop.f32.mrb[0].mxu0
  %390 = vmatprep.mubr.bf16.mxu0 %v176
  %391 = vmatmul.mubr.bf16.gmra.mrb[0].mxu0 %v175
  %v392 = vpop.f32.mrb[0].mxu0
  %v393 = vadd.f32 0.0, %v392
  %v394 = vpop.f32.mrb[0].mxu0
  %v395 = vpop.f32.mrb[0].mxu0
  %v396 = vadd.f32 0.0, %v395
  %v397 = vpop.f32.mrb[0].mxu0
  %398 = vmatprep.mubr.bf16.mxu0 %v179
  %399 = vmatmul.mubr.bf16.gmra.mrb[0].mxu0 %v178
  %v400 = vpop.f32.mrb[0].mxu0
  %v401 = vadd.f32 0.0, %v400
  %v402 = vpop.f32.mrb[0].mxu0
  %v403 = vpop.f32.mrb[0].mxu0
  %v404 = vadd.f32 0.0, %v403
  %v405 = vpop.f32.mrb[0].mxu0
  %406 = vmatprep.mubr.bf16.mxu0 %v182
  %407 = vmatmul.mubr.bf16.gmra.mrb[0].mxu0 %v181
  %v408 = vpop.f32.mrb[0].mxu0
  %v409 = vadd.f32 0.0, %v408
  %v410 = vpop.f32.mrb[0].mxu0
  %v411 = vpop.f32.mrb[0].mxu0
  %v412 = vadd.f32 0.0, %v411
  %v413 = vpop.f32.mrb[0].mxu0
  %414 = vmatprep.mubr.bf16.mxu0 %v185
  %415 = vmatmul.mubr.bf16.gmra.mrb[0].mxu0 %v184
  %v416 = vpop.f32.mrb[0].mxu0
  %v417 = vadd.f32 0.0, %v416
  %v418 = vpop.f32.mrb[0].mxu0
  %v419 = vpop.f32.mrb[0].mxu0
  %v420 = vadd.f32 0.0, %v419
  %v421 = vpop.f32.mrb[0].mxu0
  %422 = vmatprep.mubr.bf16.mxu0 %v188
  %423 = vmatmul.mubr.bf16.gmra.mrb[0].mxu0 %v187
  %v424 = vpop.f32.mrb[0].mxu0
  %v425 = vadd.f32 0.0, %v424
  %v426 = vpop.f32.mrb[0].mxu0
  %v427 = vpop.f32.mrb[0].mxu0
  %v428 = vadd.f32 0.0, %v427
  %v429 = vpop.f32.mrb[0].mxu0
  %430 = vmatprep.mubr.bf16.mxu0 %v191
  %431 = vmatmul.mubr.bf16.gmra.mrb[0].mxu0 %v190
  %v432 = vpop.f32.mrb[0].mxu0
  %v433 = vadd.f32 0.0, %v432
  %v434 = vpop.f32.mrb[0].mxu0
  %v435 = vpop.f32.mrb[0].mxu0
  %v436 = vadd.f32 0.0, %v435
  %v437 = vpop.f32.mrb[0].mxu0
  %438 = vdwg.mxu0
  %439 = vmatprep.subr.bf16.mxu0 0
  %440 = vmatpush1.bf16.msra.mxu0 %v297
  %441 = vmatprep.subr.bf16.mxu0 0
  %442 = vmatpush1.bf16.msra.mxu0 %v298
  %443 = vmatprep.subr.bf16.mxu0 0
  %444 = vmatpush1.bf16.msra.mxu0 0
  %445 = vmatprep.subr.bf16.mxu0 0
  %446 = vmatpush1.bf16.msra.mxu0 0
  %447 = vmatprep.subr.bf16.mxu0 0
  %448 = vmatpush1.bf16.msra.mxu0 0
  %449 = vmatprep.subr.bf16.mxu0 0
  %450 = vmatpush1.bf16.msra.mxu0 0
  %451 = vmatprep.subr.bf16.mxu0 0
  %452 = vmatpush1.bf16.msra.mxu0 0
  %453 = vmatprep.subr.bf16.mxu0 0
  %454 = vmatpush1.bf16.msra.mxu0 0
  %455 = vmatprep.subr.bf16.mxu0 0
  %456 = vmatpush1.bf16.msra.mxu0 0
  %457 = vmatprep.subr.bf16.mxu0 0
  %458 = vmatpush1.bf16.msra.mxu0 0
  %459 = vmatprep.subr.bf16.mxu0 0
  %460 = vmatpush1.bf16.msra.mxu0 0
  %461 = vmatprep.subr.bf16.mxu0 0
  %462 = vmatpush1.bf16.msra.mxu0 0
  %463 = vmatprep.subr.bf16.mxu0 0
  %464 = vmatpush1.bf16.msra.mxu0 0
  %465 = vmatprep.subr.bf16.mxu0 0
  %466 = vmatpush1.bf16.msra.mxu0 0
  %467 = vmatprep.subr.bf16.mxu0 0
  %468 = vmatpush1.bf16.msra.mxu0 0
  %469 = vmatprep.subr.bf16.mxu0 0
  %470 = vmatpush1.bf16.msra.mxu0 0
  %471 = vmatprep.mubr.bf16.mxu0 0
  %472 = vmatmul.mubr.bf16.gmra.mrb[0].mxu0 %v319
  %v473 = vpop.f32.mrb[0].mxu0
  %v474 = vadd.f32 %v377, %v473
  %v475 = vpop.f32.mrb[0].mxu0
  %v476 = vpop.f32.mrb[0].mxu0
  %v477 = vadd.f32 %v380, %v476
  %v478 = vpop.f32.mrb[0].mxu0
  %479 = vmatprep.mubr.bf16.mxu0 0
  %480 = vmatmul.mubr.bf16.gmra.mrb[0].mxu0 %v322
  %v481 = vpop.f32.mrb[0].mxu0
  %v482 = vadd.f32 %v385, %v481
  %v483 = vpop.f32.mrb[0].mxu0
  %v484 = vpop.f32.mrb[0].mxu0
  %v485 = vadd.f32 %v388, %v484
  %v486 = vpop.f32.mrb[0].mxu0
  %487 = vmatprep.mubr.bf16.mxu0 0
  %488 = vmatmul.mubr.bf16.gmra.mrb[0].mxu0 %v325
  %v489 = vpop.f32.mrb[0].mxu0
  %v490 = vadd.f32 %v393, %v489
  %v491 = vpop.f32.mrb[0].mxu0
  %v492 = vpop.f32.mrb[0].mxu0
  %v493 = vadd.f32 %v396, %v492
  %v494 = vpop.f32.mrb[0].mxu0
  %495 = vmatprep.mubr.bf16.mxu0 0
  %496 = vmatmul.mubr.bf16.gmra.mrb[0].mxu0 %v328
  %v497 = vpop.f32.mrb[0].mxu0
  %v498 = vadd.f32 %v401, %v497
  %v499 = vpop.f32.mrb[0].mxu0
  %v500 = vpop.f32.mrb[0].mxu0
  %v501 = vadd.f32 %v404, %v500
  %v502 = vpop.f32.mrb[0].mxu0
  %503 = vmatprep.mubr.bf16.mxu0 0
  %504 = vmatmul.mubr.bf16.gmra.mrb[0].mxu0 %v331
  %v505 = vpop.f32.mrb[0].mxu0
  %v506 = vadd.f32 %v409, %v505
  %v507 = vpop.f32.mrb[0].mxu0
  %v508 = vpop.f32.mrb[0].mxu0
  %v509 = vadd.f32 %v412, %v508
  %v510 = vpop.f32.mrb[0].mxu0
  %511 = vmatprep.mubr.bf16.mxu0 0
  %512 = vmatmul.mubr.bf16.gmra.mrb[0].mxu0 %v334
  %v513 = vpop.f32.mrb[0].mxu0
  %v514 = vadd.f32 %v417, %v513
  %v515 = vpop.f32.mrb[0].mxu0
  %v516 = vpop.f32.mrb[0].mxu0
  %v517 = vadd.f32 %v420, %v516
  %v518 = vpop.f32.mrb[0].mxu0
  %519 = vmatprep.mubr.bf16.mxu0 0
  %520 = vmatmul.mubr.bf16.gmra.mrb[0].mxu0 %v337
  %v521 = vpop.f32.mrb[0].mxu0
  %v522 = vadd.f32 %v425, %v521
  %v523 = vpop.f32.mrb[0].mxu0
  %v524 = vpop.f32.mrb[0].mxu0
  %v525 = vadd.f32 %v428, %v524
  %v526 = vpop.f32.mrb[0].mxu0
  %527 = vmatprep.mubr.bf16.mxu0 0
  %528 = vmatmul.mubr.bf16.gmra.mrb[0].mxu0 %v340
  %v529 = vpop.f32.mrb[0].mxu0
  %v530 = vadd.f32 %v433, %v529
  %v531 = vpop.f32.mrb[0].mxu0
  %v532 = vpop.f32.mrb[0].mxu0
  %v533 = vadd.f32 %v436, %v532
  %v534 = vpop.f32.mrb[0].mxu0
  %535 = vdwg.mxu0
  %v536 = vld [vmem:[%s2] sm:$0x1]
  %v538 = vlaneseq
  %v539 = vshrl.u32 %v538, 7
  %v540 = vsub.s32 0, %v539
  %v541 = vrot.slane %v536, %v540
  %v543 = vmul.f32 %v474, %v541
  %v544 = vmul.f32 %v477, %v541
  %v545 = vmul.f32 %v482, %v541
  %v546 = vmul.f32 %v485, %v541
  %v547 = vmul.f32 %v490, %v541
  %v548 = vmul.f32 %v493, %v541
  %v549 = vmul.f32 %v498, %v541
  %v550 = vmul.f32 %v501, %v541
  %v551 = vmul.f32 %v506, %v541
  %v552 = vmul.f32 %v509, %v541
  %v553 = vmul.f32 %v514, %v541
  %v554 = vmul.f32 %v517, %v541
  %v555 = vmul.f32 %v522, %v541
  %v556 = vmul.f32 %v525, %v541
  %v557 = vmul.f32 %v530, %v541
  %v558 = vmul.f32 %v533, %v541
  %v559 = vld [vmem:[%s3] sm:$0x1]
  %v561 = vlaneseq
  %v562 = vshrl.u32 %v561, 7
  %v563 = vsub.s32 0, %v562
  %v564 = vrot.slane %v559, %v563
  %v566 = vadd.f32 %v543, %v564
  %v567 = vadd.f32 %v544, %v564
  %v568 = vadd.f32 %v545, %v564
  %v569 = vadd.f32 %v546, %v564
  %v570 = vadd.f32 %v547, %v564
  %v571 = vadd.f32 %v548, %v564
  %v572 = vadd.f32 %v549, %v564
  %v573 = vadd.f32 %v550, %v564
  %v574 = vadd.f32 %v551, %v564
  %v575 = vadd.f32 %v552, %v564
  %v576 = vadd.f32 %v553, %v564
  %v577 = vadd.f32 %v554, %v564
  %v578 = vadd.f32 %v555, %v564
  %v579 = vadd.f32 %v556, %v564
  %v580 = vadd.f32 %v557, %v564
  %v581 = vadd.f32 %v558, %v564
  %v582 = vld [vmem:[%s4] sm:$0xff]
  %v583 = vld [vmem:[%s4 + $0x8] sm:$0xff]
  %v584 = vld [vmem:[%s4 + $0x10] sm:$0xff]
  %v585 = vld [vmem:[%s4 + $0x18] sm:$0xff]
  %v586 = vld [vmem:[%s4 + $0x20] sm:$0xff]
  %v587 = vld [vmem:[%s4 + $0x28] sm:$0xff]
  %v588 = vld [vmem:[%s4 + $0x30] sm:$0xff]
  %v589 = vld [vmem:[%s4 + $0x38] sm:$0xff]
  %v590 = vld [vmem:[%s4 + $0x40] sm:$0xff]
  %v591 = vld [vmem:[%s4 + $0x48] sm:$0xff]
  %v592 = vld [vmem:[%s4 + $0x50] sm:$0xff]
  %v593 = vld [vmem:[%s4 + $0x58] sm:$0xff]
  %v594 = vld [vmem:[%s4 + $0x60] sm:$0xff]
  %v595 = vld [vmem:[%s4 + $0x68] sm:$0xff]
  %v596 = vld [vmem:[%s4 + $0x70] sm:$0xff]
  %v597 = vld [vmem:[%s4 + $0x78] sm:$0xff]
  %v598 = vadd.f32 %v566, %v582
  %v599 = vadd.f32 %v567, %v583
  %v600 = vadd.f32 %v568, %v584
  %v601 = vadd.f32 %v569, %v585
  %v602 = vadd.f32 %v570, %v586
  %v603 = vadd.f32 %v571, %v587
  %v604 = vadd.f32 %v572, %v588
  %v605 = vadd.f32 %v573, %v589
  %v606 = vadd.f32 %v574, %v590
  %v607 = vadd.f32 %v575, %v591
  %v608 = vadd.f32 %v576, %v592
  %v609 = vadd.f32 %v577, %v593
  %v610 = vadd.f32 %v578, %v594
  %v611 = vadd.f32 %v579, %v595
  %v612 = vadd.f32 %v580, %v596
  %v613 = vadd.f32 %v581, %v597
  %v614 = vmax.f32 %v598, 0.0
  %v615 = vmax.f32 %v599, 0.0
  %v616 = vmax.f32 %v600, 0.0
  %v617 = vmax.f32 %v601, 0.0
  %v618 = vmax.f32 %v602, 0.0
  %v619 = vmax.f32 %v603, 0.0
  %v620 = vmax.f32 %v604, 0.0
  %v621 = vmax.f32 %v605, 0.0
  %v622 = vmax.f32 %v606, 0.0
  %v623 = vmax.f32 %v607, 0.0
  %v624 = vmax.f32 %v608, 0.0
  %v625 = vmax.f32 %v609, 0.0
  %v626 = vmax.f32 %v610, 0.0
  %v627 = vmax.f32 %v611, 0.0
  %v628 = vmax.f32 %v612, 0.0
  %v629 = vmax.f32 %v613, 0.0
  %630 = vst.msk [vmem:[%s5] sm:$0xff] %vm317, %v614
  %631 = vst.msk [vmem:[%s5 + $0x8] sm:$0xff] %vm317, %v615
  %632 = vst.msk [vmem:[%s5 + $0x10] sm:$0xff] %vm317, %v616
  %633 = vst.msk [vmem:[%s5 + $0x18] sm:$0xff] %vm317, %v617
  %634 = vst.msk [vmem:[%s5 + $0x20] sm:$0xff] %vm317, %v618
  %635 = vst.msk [vmem:[%s5 + $0x28] sm:$0xff] %vm317, %v619
  %636 = vst.msk [vmem:[%s5 + $0x30] sm:$0xff] %vm317, %v620
  %637 = vst.msk [vmem:[%s5 + $0x38] sm:$0xff] %vm317, %v621
  %638 = vst.msk [vmem:[%s5 + $0x40] sm:$0xff] %vm317, %v622
  %639 = vst.msk [vmem:[%s5 + $0x48] sm:$0xff] %vm317, %v623
  %640 = vst.msk [vmem:[%s5 + $0x50] sm:$0xff] %vm317, %v624
  %641 = vst.msk [vmem:[%s5 + $0x58] sm:$0xff] %vm317, %v625
  %642 = vst.msk [vmem:[%s5 + $0x60] sm:$0xff] %vm317, %v626
  %643 = vst.msk [vmem:[%s5 + $0x68] sm:$0xff] %vm317, %v627
  %644 = vst.msk [vmem:[%s5 + $0x70] sm:$0xff] %vm317, %v628
  %645 = vst.msk [vmem:[%s5 + $0x78] sm:$0xff] %vm317, %v629
  // Predicated region
  $region22: #{_lambda_.12} parent=0 // pred_check
    _
  $region23: #{_lambda_.12} parent=0 // pred_check_branch
    %647 = sbr.rel (0) target = $region25
  $region24: #{_lambda_.12} parent=0 // pred_region
    _
  $region25: #{_lambda_.12} parent=0 // pred_fallthru
    _
  // Predicated region
  $region26: #{_lambda_.12} parent=0 // pred_check
    _
  $region27: #{_lambda_.12} parent=0 // pred_check_branch
    %649 = sbr.rel (0) target = $region29
  $region28: #{_lambda_.12} parent=0 // pred_region
    _
  $region29: #{_lambda_.12} parent=0 // pred_fallthru
    _

// kernel: _lambda_.13
$region0: #{_lambda_.13}
  #allocation0 [shape = 'u32[]', space=smem, size = 0x4, offset = 0x4, fixed_abs, tag = 'smem constant byte address 0x4 - core index']
  #allocation1 [shape = 'u32[144,128]{1,0:T(1,128)}', space=vmem, size = 0x12000, scoped, tag = 'internal scratch']
  %s0 = inlined_call_operand.vmem [shape: f32[2,64,32], index: 0, kind: input, shape index: {}]
  %s1 = inlined_call_operand.vmem [shape: f32[32,5], index: 1, kind: input, shape index: {}]
  %s2 = inlined_call_operand.vmem [shape: f32[1,5], index: 2, kind: input, shape index: {}]
  %s3 = inlined_call_operand.hbm [shape: f32[2,5], index: 3, kind: output, shape index: {}]
  %s4 = sld [smem:[#allocation0]]
  $region22: #{_lambda_.13} parent=0
    _
  %s6 = ssub.s32 1, %s4
  %s7 = scalar_select 0, %s6, %s4
  $region1: #{_lambda_.13} parent=0
    #allocation2 [shape = 'u8[1024]{0}', space=vmem, size = 0x400, scoped, tag = 'output window, operand 0, single buffered']
    #allocation3 [shape = 's32[1]{0}', space=sflag, size = 0x4, scoped, tag = 'scoped memory for _lambda_.13']
    %8 = vsyncpa [#allocation3], 0
    // Predicated region
    $region2: #{_lambda_.13} parent=1 // pred_check
      _
    $region3: #{_lambda_.13} parent=1 // pred_check_branch
      %10 = sbr.rel (0) target = $region5
    $region4: #{_lambda_.13} parent=1 // pred_region
      _
    $region5: #{_lambda_.13} parent=1 // pred_fallthru
      _
    // Predicated region
    $region6: #{_lambda_.13} parent=1 // pred_check
      _
    $region7: #{_lambda_.13} parent=1 // pred_check_branch
      %12 = sbr.rel (0) target = $region9
    $region8: #{_lambda_.13} parent=1 // pred_region
      _
    $region9: #{_lambda_.13} parent=1 // pred_fallthru
      _
    // Predicated region
    $region10: #{_lambda_.13} parent=1 // pred_check
      _
    $region11: #{_lambda_.13} parent=1 // pred_check_branch
      %14 = sbr.rel (0) target = $region13
    $region12: #{_lambda_.13} parent=1 // pred_region
      _
    $region13: #{_lambda_.13} parent=1 // pred_fallthru
      _
    %v15 = vld [vmem:[%s0] sm:$0xff]
    %v16 = vld [vmem:[%s0 + $0x8] sm:$0xff]
    %v17 = vld [vmem:[%s0 + $0x10] sm:$0xff]
    %v18 = vld [vmem:[%s0 + $0x18] sm:$0xff]
    %v19 = vld [vmem:[%s0 + $0x20] sm:$0xff]
    %v20 = vld [vmem:[%s0 + $0x28] sm:$0xff]
    %v21 = vld [vmem:[%s0 + $0x30] sm:$0xff]
    %v22 = vld [vmem:[%s0 + $0x38] sm:$0xff]
    %v23 = vld [vmem:[%s0 + $0x40] sm:$0xff]
    %v24 = vld [vmem:[%s0 + $0x48] sm:$0xff]
    %v25 = vld [vmem:[%s0 + $0x50] sm:$0xff]
    %v26 = vld [vmem:[%s0 + $0x58] sm:$0xff]
    %v27 = vld [vmem:[%s0 + $0x60] sm:$0xff]
    %v28 = vld [vmem:[%s0 + $0x68] sm:$0xff]
    %v29 = vld [vmem:[%s0 + $0x70] sm:$0xff]
    %v30 = vld [vmem:[%s0 + $0x78] sm:$0xff]
    %vm31 = vcmask 261120
    %v32 = vsel %vm31, %v15, 0.0
    %v33 = vsel %vm31, %v16, 0.0
    %v34 = vadd.f32 %v32, %v33
    %v35 = vsel %vm31, %v17, 0.0
    %v36 = vadd.f32 %v34, %v35
    %v37 = vsel %vm31, %v18, 0.0
    %v38 = vadd.f32 %v36, %v37
    %v39 = vsel %vm31, %v19, 0.0
    %v40 = vadd.f32 %v38, %v39
    %v41 = vsel %vm31, %v20, 0.0
    %v42 = vadd.f32 %v40, %v41
    %v43 = vsel %vm31, %v21, 0.0
    %v44 = vadd.f32 %v42, %v43
    %v45 = vsel %vm31, %v22, 0.0
    %v46 = vadd.f32 %v44, %v45
    %v47 = vrot.slane %v46, 4
    %v48 = vadd.f32 %v46, %v47
    %v49 = vrot.slane %v48, 2
    %v50 = vadd.f32 %v48, %v49
    %v51 = vrot.slane %v50, 1
    %v52 = vadd.f32 %v50, %v51
    %v53 = vsel %vm31, %v23, 0.0
    %v54 = vsel %vm31, %v24, 0.0
    %v55 = vadd.f32 %v53, %v54
    %v56 = vsel %vm31, %v25, 0.0
    %v57 = vadd.f32 %v55, %v56
    %v58 = vsel %vm31, %v26, 0.0
    %v59 = vadd.f32 %v57, %v58
    %v60 = vsel %vm31, %v27, 0.0
    %v61 = vadd.f32 %v59, %v60
    %v62 = vsel %vm31, %v28, 0.0
    %v63 = vadd.f32 %v61, %v62
    %v64 = vsel %vm31, %v29, 0.0
    %v65 = vadd.f32 %v63, %v64
    %v66 = vsel %vm31, %v30, 0.0
    %v67 = vadd.f32 %v65, %v66
    %v68 = vrot.slane %v67, 4
    %v69 = vadd.f32 %v67, %v68
    %v70 = vrot.slane %v69, 2
    %v71 = vadd.f32 %v69, %v70
    %v72 = vrot.slane %v71, 1
    %v73 = vadd.f32 %v71, %v72
    %v74 = vrcp.pop 64.0
    %v75 = vmul.f32 %v52, %v74
    %v76 = vmul.f32 %v73, %v74
    %v77 = vld [vmem:[%s1] sm:$0xff]
    %v78 = vld [vmem:[%s1 + $0x8] sm:$0xff]
    %v79 = vld [vmem:[%s1 + $0x10] sm:$0xff]
    %v80 = vld [vmem:[%s1 + $0x18] sm:$0xff]
    %v81 = vld [vmem:[%s2] sm:$0x1]
    %v83 = vlaneseq
    %v84 = vshrl.u32 %v83, 7
    %v85 = vsub.s32 0, %v84
    %v86 = vrot.slane %v81, %v85
    %vm90 = vcmask 1041409
    %v91 = vsel %vm90, %v76, %v75
    %v92 = vsel %vm31, %v91, 0
    %94 = vmatprep.subr.mxu0 0.0
    %95 = vmatpush1.msra.mxu0 %v77
    %96 = vmatprep.subr.mxu0 0.0
    %97 = vmatpush1.msra.mxu0 %v78
    %98 = vmatprep.subr.mxu0 0.0
    %99 = vmatpush1.msra.mxu0 %v79
    %100 = vmatprep.subr.mxu0 0.0
    %101 = vmatpush1.msra.mxu0 %v80
    %102 = vmatprep.subr.mxu0 0.0
    %103 = vmatpush1.msra.mxu0 0.0
    %104 = vmatprep.subr.mxu0 0.0
    %105 = vmatpush1.msra.mxu0 0.0
    %106 = vmatprep.subr.mxu0 0.0
    %107 = vmatpush1.msra.mxu0 0.0
    %108 = vmatprep.subr.mxu0 0.0
    %109 = vmatpush1.msra.mxu0 0.0
    %110 = vmatprep.subr.mxu0 0.0
    %111 = vmatpush1.msra.mxu0 0.0
    %112 = vmatprep.subr.mxu0 0.0
    %113 = vmatpush1.msra.mxu0 0.0
    %114 = vmatprep.subr.mxu0 0.0
    %115 = vmatpush1.msra.mxu0 0.0
    %116 = vmatprep.subr.mxu0 0.0
    %117 = vmatpush1.msra.mxu0 0.0
    %118 = vmatprep.subr.mxu0 0.0
    %119 = vmatpush1.msra.mxu0 0.0
    %120 = vmatprep.subr.mxu0 0.0
    %121 = vmatpush1.msra.mxu0 0.0
    %122 = vmatprep.subr.mxu0 0.0
    %123 = vmatpush1.msra.mxu0 0.0
    %124 = vmatprep.subr.mxu0 0.0
    %125 = vmatpush1.msra.mxu0 0.0
    %126 = vmatprep.subr.mxu0 0.0
    %127 = vmatpush1.msra.mxu0 0.0
    %128 = vmatprep.subr.mxu0 0.0
    %129 = vmatpush1.msra.mxu0 0.0
    %130 = vmatprep.subr.mxu0 0.0
    %131 = vmatpush1.msra.mxu0 0.0
    %132 = vmatprep.subr.mxu0 0.0
    %133 = vmatpush1.msra.mxu0 0.0
    %134 = vmatprep.subr.mxu0 0.0
    %135 = vmatpush1.msra.mxu0 0.0
    %136 = vmatprep.subr.mxu0 0.0
    %137 = vmatpush1.msra.mxu0 0.0
    %138 = vmatprep.subr.mxu0 0.0
    %139 = vmatpush1.msra.mxu0 0.0
    %140 = vmatprep.subr.mxu0 0.0
    %141 = vmatpush1.msra.mxu0 0.0
    %142 = vmatprep.subr.mxu0 0.0
    %143 = vmatpush1.msra.mxu0 0.0
    %144 = vmatprep.subr.mxu0 0.0
    %145 = vmatpush1.msra.mxu0 0.0
    %146 = vmatprep.subr.mxu0 0.0
    %147 = vmatpush1.msra.mxu0 0.0
    %148 = vmatprep.subr.mxu0 0.0
    %149 = vmatpush1.msra.mxu0 0.0
    %150 = vmatprep.subr.mxu0 0.0
    %151 = vmatpush1.msra.mxu0 0.0
    %152 = vmatprep.subr.mxu0 0.0
    %153 = vmatpush1.msra.mxu0 0.0
    %154 = vmatprep.subr.mxu0 0.0
    %155 = vmatpush1.msra.mxu0 0.0
    %156 = vmatprep.subr.mxu0 0.0
    %157 = vmatpush1.msra.mxu0 0.0
    %158 = vmatprep.mubr.f32.mxu0 0.0
    %159 = vmatmul.mubr.f32.gmra.mrb[0].mxu0 %v92
    %v160 = vpop.f32.mrb[0].mxu0
    %v161 = vadd.f32 %v86, %v160
    %v162 = vpop.f32.mrb[0].mxu0
    %163 = vdwg.mxu0
    %vm164 = vcmask 33792
    %165 = vst.msk [vmem:[#allocation2] sm:$0x3] %vm164, %v161
    // Predicated region
    $region14: #{_lambda_.13} parent=1 // pred_check
      _
    $region15: #{_lambda_.13} parent=1 // pred_check_branch
      %167 = sbr.rel (0) target = $region17
    $region16: #{_lambda_.13} parent=1 // pred_region
      %s169 = ssub.s32 32, 32
      %170 = vsyncadd [#allocation3], %s169
      %s172 = sshll.u32 [#allocation2], 4
      %s173 = int_to_ptr.vmem [resolvable:$true] %s172
      %175 = dma.vmem_to_hbm [thread:$0]  %s173, 32, %s3, [#allocation3]
    $region17: #{_lambda_.13} parent=1 // pred_fallthru
      _
    // Predicated region
    $region18: #{_lambda_.13} parent=1 // pred_check
      _
    $region19: #{_lambda_.13} parent=1 // pred_check_branch
      %177 = sbr.rel (0) target = $region21
    $region20: #{_lambda_.13} parent=1 // pred_region
      %178 = dma.done [#allocation3], 32
    $region21: #{_lambda_.13} parent=1 // pred_fallthru
      _
    %179 = vsyncpa [#allocation3], 1

</llo_original>
